<compile_context>
chip_gen: v7x
topology: tpu7x:2x2x1
jax: 0.10.0
libtpu: 0.0.40
codegen_flags: <defaults>
</compile_context>

<pallas_src>
import functools

import jax
import jax.numpy as jnp
from jax.experimental import pallas as pl
from jax.experimental.pallas import tpu as pltpu

_EPS = 1e-5
_LANE = 128  # lane-dense output tile width (use 256 on v6e/v7x for Cout >= 256)


def _derive_vmem_limit():
    """Generation-aware VMEM budget: leave headroom for double-buffered tiles."""
    cap = 64 * 1024 * 1024  # conservative fallback (v7x-sized)
    try:
        info = pltpu.get_tpu_info()
        cap = int(getattr(info, "vmem_capacity_bytes", cap))
    except Exception:
        pass
    return min((cap * 3) // 4, 96 * 1024 * 1024)


_VMEM_LIMIT = _derive_vmem_limit()


# ----------------------------- Pallas kernels ------------------------------


def _conv_stats_kernel(x_ref, w_ref, y_ref, ssum_ref, ssq_ref, *, k, oh, ow, cin):
    """One sample x one Cout tile: direct conv (per-tap MXU matmul, f32 acc),
    write the pre-BN conv output, and accumulate per-channel sum / sum-of-squares
    across the sample axis (last grid axis, 'arbitrary')."""
    ms = oh * ow
    acc = None
    for di in range(k):
        for dj in range(k):
            # (oh, ow, cin) window read from the VMEM-resident padded tile.
            xt = x_ref[di:di + oh, dj:dj + ow, :].reshape(ms, cin)       # bf16
            row0 = (di * k + dj) * cin
            wt = w_ref[row0:row0 + cin, :]                               # bf16
            part = jnp.dot(xt, wt, preferred_element_type=jnp.float32)  # MXU
            acc = part if acc is None else acc + part

    y_ref[...] = acc  # pre-BN conv output (f32)

    psum = jnp.sum(acc, axis=0, keepdims=True)
    psq = jnp.sum(acc * acc, axis=0, keepdims=True)

    @pl.when(pl.program_id(1) == 0)
    def _():
        ssum_ref[...] = psum
        ssq_ref[...] = psq

    @pl.when(pl.program_id(1) > 0)
    def _():
        ssum_ref[...] = ssum_ref[...] + psum
        ssq_ref[...] = ssq_ref[...] + psq


def _bn_act_kernel(y_ref, scale_ref, shift_ref, o_ref, *, relu):
    """Per-element normalize: a single multiply-add with precomputed per-channel
    scale/shift, plus optional ReLU. Fully parallel over (M tile, Cout tile)."""
    o = y_ref[...] * scale_ref[...] + shift_ref[...]
    if relu:
        o = jnp.maximum(o, 0.0)
    o_ref[...] = o


# ------------------------------ ConvBlock -----------------------------------


def init_conv_block_params(key, in_channels, out_channels, kernel_size=3):
    """Weight layout is (kh, kw, Cin, Cout) (== PyTorch (Cout,Cin,kh,kw) transposed).
    Conv bias is intentionally omitted: train-mode BN subtracts the batch mean,
    which cancels a per-channel constant bias exactly."""
    k1, k2, k3 = jax.random.split(key, 3)
    fan_in = kernel_size * kernel_size * in_channels
    bound = float(fan_in) ** -0.5
    w = jax.random.uniform(
        k1, (kernel_size, kernel_size, in_channels, out_channels),
        jnp.float32, -bound, bound)
    gamma = 1.0 + 0.1 * jax.random.normal(k2, (out_channels,), jnp.float32)
    beta = 0.1 * jax.random.normal(k3, (out_channels,), jnp.float32)
    return {"w": w, "gamma": gamma, "beta": beta}


@functools.partial(
    jax.jit, static_argnames=("kernel_size", "stride", "padding", "activation"))
def conv_block_forward(params, x_nchw, *, kernel_size=3, stride=1, padding=1,
                       activation=True):
    """Conv2d -> BatchNorm2d (training-mode batch stats, biased var) -> [ReLU].
    Input/output are NCHW (PyTorch convention)."""
    if stride != 1:
        # TODO(synk): stride > 1 needs a phase-decomposed input (or strided
        # in-kernel window reads); demo uses the ConvBlock defaults (stride=1).
        raise NotImplementedError("Pallas ConvBlock path implements stride=1.")

    k = kernel_size
    x = jnp.transpose(x_nchw, (0, 2, 3, 1)).astype(jnp.float32)   # NHWC
    n, h, w_in, cin = x.shape
    cout = params["w"].shape[-1]
    oh = (h + 2 * padding - k) // stride + 1
    ow = (w_in + 2 * padding - k) // stride + 1
    hp, wp = h + 2 * padding, w_in + 2 * padding
    ms = oh * ow                      # rows per sample (one M tile per sample)
    m = n * ms
    assert ms % 8 == 0, "per-sample output tile must be sublane (8) aligned"

    # Lane-dense output: pad Cout up to a multiple of 128.
    tn = _LANE
    cout_p = ((cout + tn - 1) // tn) * tn
    n_ct = cout_p // tn

    # One-time wrapper-side prep: spatial pad + bf16 cast (halves operand DMA),
    # weight flattened to (k*k*Cin, Cout_pad) matching the in-kernel tap order.
    xp = jnp.pad(x, ((0, 0), (padding, padding), (padding, padding), (0, 0)))
    xp = xp.astype(jnp.bfloat16)
    w2d = params["w"].reshape(k * k * cin, cout)
    w2d = jnp.pad(w2d, ((0, 0), (0, cout_p - cout))).astype(jnp.bfloat16)
    gamma = jnp.pad(params["gamma"], (0, cout_p - cout),
                    constant_values=1.0).reshape(1, cout_p)
    beta = jnp.pad(params["beta"], (0, cout_p - cout)).reshape(1, cout_p)

    # ---- Pass A: conv matmuls + BN-statistics accumulation -----------------
    conv_kernel = functools.partial(_conv_stats_kernel, k=k, oh=oh, ow=ow, cin=cin)
    y, ssum, ssq = pl.pallas_call(
        conv_kernel,
        out_shape=(
            jax.ShapeDtypeStruct((m, cout_p), jnp.float32),   # pre-BN conv out
            jax.ShapeDtypeStruct((1, cout_p), jnp.float32),   # per-channel sum
            jax.ShapeDtypeStruct((1, cout_p), jnp.float32),   # per-channel sum sq
        ),
        grid=(n_ct, n),                                       # (Cout tiles, samples)
        in_specs=[
            # Halo'd NHWC input tile (whole padded sample), resident in VMEM.
            pl.BlockSpec((None, hp, wp, cin), lambda j, b: (b, 0, 0, 0)),
            pl.BlockSpec((k * k * cin, tn), lambda j, b: (0, j)),
        ],
        out_specs=(
            pl.BlockSpec((ms, tn), lambda j, b: (b, j)),
            pl.BlockSpec((1, tn), lambda j, b: (0, j)),       # accumulated over b
            pl.BlockSpec((1, tn), lambda j, b: (0, j)),       # accumulated over b
        ),
        compiler_params=pltpu.CompilerParams(
            dimension_semantics=("parallel", "arbitrary"),
            vmem_limit_bytes=_VMEM_LIMIT),
    )(xp, w2d)

    # ---- Tiny wrapper: batch stats -> per-channel scale / shift -------------
    inv_m = 1.0 / float(m)
    mean = ssum * inv_m
    var = jnp.maximum(ssq * inv_m - mean * mean, 0.0)          # biased variance
    scale = gamma * jax.lax.rsqrt(var + _EPS)
    shift = beta - mean * scale

    # ---- Pass B: normalize (+ReLU), fully parallel --------------------------
    bn_kernel = functools.partial(_bn_act_kernel, relu=activation)
    out = pl.pallas_call(
        bn_kernel,
        out_shape=jax.ShapeDtypeStruct((m, cout_p), jnp.float32),
        grid=(n, n_ct),
        in_specs=[
            pl.BlockSpec((ms, tn), lambda b, j: (b, j)),
            pl.BlockSpec((1, tn), lambda b, j: (0, j)),
            pl.BlockSpec((1, tn), lambda b, j: (0, j)),
        ],
        out_specs=pl.BlockSpec((ms, tn), lambda b, j: (b, j)),
        compiler_params=pltpu.CompilerParams(
            dimension_semantics=("parallel", "parallel"),
            vmem_limit_bytes=_VMEM_LIMIT),
    )(y, scale, shift)

    out = out[:, :cout].reshape(n, oh, ow, cout)
    return jnp.transpose(out, (0, 3, 1, 2))                    # back to NCHW


# ------------------------------ reference -----------------------------------


def _reference_conv_block(params, x_nchw, kernel_size, stride, padding, activation):
    """Plain-JAX reference: Conv2d (no bias; cancelled by BN) + train-mode BN + ReLU."""
    y = jax.lax.conv_general_dilated(
        x_nchw, params["w"], window_strides=(stride, stride),
        padding=[(padding, padding), (padding, padding)],
        dimension_numbers=("NCHW", "HWIO", "NCHW"))
    mean = jnp.mean(y, axis=(0, 2, 3), keepdims=True)
    var = jnp.mean(jnp.square(y - mean), axis=(0, 2, 3), keepdims=True)
    g = params["gamma"].reshape(1, -1, 1, 1)
    b = params["beta"].reshape(1, -1, 1, 1)
    y = (y - mean) * (g * jax.lax.rsqrt(var + _EPS)) + b
    return jnp.maximum(y, 0.0) if activation else y


# ----------------------------------- main ------------------------------------


if __name__ == "__main__":
    key = jax.random.PRNGKey(0)
    kp, kx = jax.random.split(key)

    in_channels, out_channels = 4, 32
    params = init_conv_block_params(kp, in_channels, out_channels, kernel_size=3)
    x = jax.random.normal(kx, (2, in_channels, 16, 16), jnp.float32)   # NCHW

    # activation=True path
    out = conv_block_forward(params, x, kernel_size=3, stride=1, padding=1,
                             activation=True)
    out = jax.block_until_ready(out)
    assert out.shape == (2, out_channels, 16, 16), out.shape
    assert bool(jnp.all(jnp.isfinite(out)))
    assert bool(jnp.all(out >= 0.0))
    ref = _reference_conv_block(params, x, 3, 1, 1, True)
    assert float(jnp.max(jnp.abs(out - ref))) < 5e-2

    # activation=False path
    out2 = conv_block_forward(params, x, kernel_size=3, stride=1, padding=1,
                              activation=False)
    out2 = jax.block_until_ready(out2)
    assert out2.shape == (2, out_channels, 16, 16), out2.shape
    assert bool(jnp.all(jnp.isfinite(out2)))
    ref2 = _reference_conv_block(params, x, 3, 1, 1, False)
    assert float(jnp.max(jnp.abs(out2 - ref2))) < 5e-2

    print("KERNEL_OK")
</pallas_src>

<mosaic_0001>
module attributes {stable_mosaic.version = 11 : i64} {
  func.func @_conv_stats_kernel(%arg0: i32, %arg1: i32, %arg2: memref<1x18x18x4xbf16, #tpu.memory_space<vmem>>, %arg3: memref<36x128xbf16, #tpu.memory_space<vmem>>, %arg4: memref<256x128xf32, #tpu.memory_space<vmem>>, %arg5: memref<1x128xf32, #tpu.memory_space<vmem>>, %arg6: memref<1x128xf32, #tpu.memory_space<vmem>>) attributes {dimension_semantics = [#tpu.dimension_semantics<parallel>, #tpu.dimension_semantics<arbitrary>], iteration_bounds = array<i64: 1, 2>, scalar_prefetch = 0 : i64, scratch_operands = 0 : i64, tpu.core_type = #tpu.core_type<tc>, window_params = [{transform_indices = @transform_0, window_bounds = array<i64: 1, 18, 18, 4>}, {transform_indices = @transform_1, window_bounds = array<i64: 36, 128>}, {transform_indices = @transform_2, window_bounds = array<i64: 256, 128>}, {transform_indices = @transform_3, window_bounds = array<i64: 1, 128>}, {transform_indices = @transform_4, window_bounds = array<i64: 1, 128>}]} {
    %c0 = arith.constant 0 : index
    %c0_0 = arith.constant 0 : index
    %c0_1 = arith.constant 0 : index
    %c0_2 = arith.constant 0 : index
    %0 = vector.load %arg2[%c0, %c0_0, %c0_1, %c0_2] : memref<1x18x18x4xbf16, #tpu.memory_space<vmem>>, vector<1x16x16x4xbf16>
    %1 = vector.shape_cast %0 : vector<1x16x16x4xbf16> to vector<16x16x4xbf16>
    %2 = vector.shape_cast %1 : vector<16x16x4xbf16> to vector<256x4xbf16>
    %c0_3 = arith.constant 0 : index
    %c0_4 = arith.constant 0 : index
    %3 = vector.load %arg3[%c0_3, %c0_4] : memref<36x128xbf16, #tpu.memory_space<vmem>>, vector<4x128xbf16>
    %cst = arith.constant dense<0.000000e+00> : vector<256x128xf32>
    %4 = tpu.matmul %2, %3, %cst {dimension_numbers = #tpu.dot_dimension_numbers<[1], [0], [0], [1], [0, 0, 1, 1], [], []>} : vector<256x4xbf16>, vector<4x128xbf16>, vector<256x128xf32> -> vector<256x128xf32>
    %c0_5 = arith.constant 0 : index
    %c0_6 = arith.constant 0 : index
    %c1 = arith.constant 1 : index
    %c0_7 = arith.constant 0 : index
    %5 = vector.load %arg2[%c0_5, %c0_6, %c1, %c0_7] : memref<1x18x18x4xbf16, #tpu.memory_space<vmem>>, vector<1x16x16x4xbf16>
    %6 = vector.shape_cast %5 : vector<1x16x16x4xbf16> to vector<16x16x4xbf16>
    %7 = vector.shape_cast %6 : vector<16x16x4xbf16> to vector<256x4xbf16>
    %c4 = arith.constant 4 : index
    %c0_8 = arith.constant 0 : index
    %8 = vector.load %arg3[%c4, %c0_8] : memref<36x128xbf16, #tpu.memory_space<vmem>>, vector<4x128xbf16>
    %cst_9 = arith.constant dense<0.000000e+00> : vector<256x128xf32>
    %9 = tpu.matmul %7, %8, %cst_9 {dimension_numbers = #tpu.dot_dimension_numbers<[1], [0], [0], [1], [0, 0, 1, 1], [], []>} : vector<256x4xbf16>, vector<4x128xbf16>, vector<256x128xf32> -> vector<256x128xf32>
    %10 = arith.addf %4, %9 : vector<256x128xf32>
    %c0_10 = arith.constant 0 : index
    %c0_11 = arith.constant 0 : index
    %c2 = arith.constant 2 : index
    %c0_12 = arith.constant 0 : index
    %11 = vector.load %arg2[%c0_10, %c0_11, %c2, %c0_12] : memref<1x18x18x4xbf16, #tpu.memory_space<vmem>>, vector<1x16x16x4xbf16>
    %12 = vector.shape_cast %11 : vector<1x16x16x4xbf16> to vector<16x16x4xbf16>
    %13 = vector.shape_cast %12 : vector<16x16x4xbf16> to vector<256x4xbf16>
    %c8 = arith.constant 8 : index
    %c0_13 = arith.constant 0 : index
    %14 = vector.load %arg3[%c8, %c0_13] : memref<36x128xbf16, #tpu.memory_space<vmem>>, vector<4x128xbf16>
    %cst_14 = arith.constant dense<0.000000e+00> : vector<256x128xf32>
    %15 = tpu.matmul %13, %14, %cst_14 {dimension_numbers = #tpu.dot_dimension_numbers<[1], [0], [0], [1], [0, 0, 1, 1], [], []>} : vector<256x4xbf16>, vector<4x128xbf16>, vector<256x128xf32> -> vector<256x128xf32>
    %16 = arith.addf %10, %15 : vector<256x128xf32>
    %c0_15 = arith.constant 0 : index
    %c1_16 = arith.constant 1 : index
    %c0_17 = arith.constant 0 : index
    %c0_18 = arith.constant 0 : index
    %17 = vector.load %arg2[%c0_15, %c1_16, %c0_17, %c0_18] : memref<1x18x18x4xbf16, #tpu.memory_space<vmem>>, vector<1x16x16x4xbf16>
    %18 = vector.shape_cast %17 : vector<1x16x16x4xbf16> to vector<16x16x4xbf16>
    %19 = vector.shape_cast %18 : vector<16x16x4xbf16> to vector<256x4xbf16>
    %c12 = arith.constant 12 : index
    %c0_19 = arith.constant 0 : index
    %20 = vector.load %arg3[%c12, %c0_19] : memref<36x128xbf16, #tpu.memory_space<vmem>>, vector<4x128xbf16>
    %cst_20 = arith.constant dense<0.000000e+00> : vector<256x128xf32>
    %21 = tpu.matmul %19, %20, %cst_20 {dimension_numbers = #tpu.dot_dimension_numbers<[1], [0], [0], [1], [0, 0, 1, 1], [], []>} : vector<256x4xbf16>, vector<4x128xbf16>, vector<256x128xf32> -> vector<256x128xf32>
    %22 = arith.addf %16, %21 : vector<256x128xf32>
    %c0_21 = arith.constant 0 : index
    %c1_22 = arith.constant 1 : index
    %c1_23 = arith.constant 1 : index
    %c0_24 = arith.constant 0 : index
    %23 = vector.load %arg2[%c0_21, %c1_22, %c1_23, %c0_24] : memref<1x18x18x4xbf16, #tpu.memory_space<vmem>>, vector<1x16x16x4xbf16>
    %24 = vector.shape_cast %23 : vector<1x16x16x4xbf16> to vector<16x16x4xbf16>
    %25 = vector.shape_cast %24 : vector<16x16x4xbf16> to vector<256x4xbf16>
    %c16 = arith.constant 16 : index
    %c0_25 = arith.constant 0 : index
    %26 = vector.load %arg3[%c16, %c0_25] : memref<36x128xbf16, #tpu.memory_space<vmem>>, vector<4x128xbf16>
    %cst_26 = arith.constant dense<0.000000e+00> : vector<256x128xf32>
    %27 = tpu.matmul %25, %26, %cst_26 {dimension_numbers = #tpu.dot_dimension_numbers<[1], [0], [0], [1], [0, 0, 1, 1], [], []>} : vector<256x4xbf16>, vector<4x128xbf16>, vector<256x128xf32> -> vector<256x128xf32>
    %28 = arith.addf %22, %27 : vector<256x128xf32>
    %c0_27 = arith.constant 0 : index
    %c1_28 = arith.constant 1 : index
    %c2_29 = arith.constant 2 : index
    %c0_30 = arith.constant 0 : index
    %29 = vector.load %arg2[%c0_27, %c1_28, %c2_29, %c0_30] : memref<1x18x18x4xbf16, #tpu.memory_space<vmem>>, vector<1x16x16x4xbf16>
    %30 = vector.shape_cast %29 : vector<1x16x16x4xbf16> to vector<16x16x4xbf16>
    %31 = vector.shape_cast %30 : vector<16x16x4xbf16> to vector<256x4xbf16>
    %c20 = arith.constant 20 : index
    %c0_31 = arith.constant 0 : index
    %32 = vector.load %arg3[%c20, %c0_31] : memref<36x128xbf16, #tpu.memory_space<vmem>>, vector<4x128xbf16>
    %cst_32 = arith.constant dense<0.000000e+00> : vector<256x128xf32>
    %33 = tpu.matmul %31, %32, %cst_32 {dimension_numbers = #tpu.dot_dimension_numbers<[1], [0], [0], [1], [0, 0, 1, 1], [], []>} : vector<256x4xbf16>, vector<4x128xbf16>, vector<256x128xf32> -> vector<256x128xf32>
    %34 = arith.addf %28, %33 : vector<256x128xf32>
    %c0_33 = arith.constant 0 : index
    %c2_34 = arith.constant 2 : index
    %c0_35 = arith.constant 0 : index
    %c0_36 = arith.constant 0 : index
    %35 = vector.load %arg2[%c0_33, %c2_34, %c0_35, %c0_36] : memref<1x18x18x4xbf16, #tpu.memory_space<vmem>>, vector<1x16x16x4xbf16>
    %36 = vector.shape_cast %35 : vector<1x16x16x4xbf16> to vector<16x16x4xbf16>
    %37 = vector.shape_cast %36 : vector<16x16x4xbf16> to vector<256x4xbf16>
    %c24 = arith.constant 24 : index
    %c0_37 = arith.constant 0 : index
    %38 = vector.load %arg3[%c24, %c0_37] : memref<36x128xbf16, #tpu.memory_space<vmem>>, vector<4x128xbf16>
    %cst_38 = arith.constant dense<0.000000e+00> : vector<256x128xf32>
    %39 = tpu.matmul %37, %38, %cst_38 {dimension_numbers = #tpu.dot_dimension_numbers<[1], [0], [0], [1], [0, 0, 1, 1], [], []>} : vector<256x4xbf16>, vector<4x128xbf16>, vector<256x128xf32> -> vector<256x128xf32>
    %40 = arith.addf %34, %39 : vector<256x128xf32>
    %c0_39 = arith.constant 0 : index
    %c2_40 = arith.constant 2 : index
    %c1_41 = arith.constant 1 : index
    %c0_42 = arith.constant 0 : index
    %41 = vector.load %arg2[%c0_39, %c2_40, %c1_41, %c0_42] : memref<1x18x18x4xbf16, #tpu.memory_space<vmem>>, vector<1x16x16x4xbf16>
    %42 = vector.shape_cast %41 : vector<1x16x16x4xbf16> to vector<16x16x4xbf16>
    %43 = vector.shape_cast %42 : vector<16x16x4xbf16> to vector<256x4xbf16>
    %c28 = arith.constant 28 : index
    %c0_43 = arith.constant 0 : index
    %44 = vector.load %arg3[%c28, %c0_43] : memref<36x128xbf16, #tpu.memory_space<vmem>>, vector<4x128xbf16>
    %cst_44 = arith.constant dense<0.000000e+00> : vector<256x128xf32>
    %45 = tpu.matmul %43, %44, %cst_44 {dimension_numbers = #tpu.dot_dimension_numbers<[1], [0], [0], [1], [0, 0, 1, 1], [], []>} : vector<256x4xbf16>, vector<4x128xbf16>, vector<256x128xf32> -> vector<256x128xf32>
    %46 = arith.addf %40, %45 : vector<256x128xf32>
    %c0_45 = arith.constant 0 : index
    %c2_46 = arith.constant 2 : index
    %c2_47 = arith.constant 2 : index
    %c0_48 = arith.constant 0 : index
    %47 = vector.load %arg2[%c0_45, %c2_46, %c2_47, %c0_48] : memref<1x18x18x4xbf16, #tpu.memory_space<vmem>>, vector<1x16x16x4xbf16>
    %48 = vector.shape_cast %47 : vector<1x16x16x4xbf16> to vector<16x16x4xbf16>
    %49 = vector.shape_cast %48 : vector<16x16x4xbf16> to vector<256x4xbf16>
    %c32 = arith.constant 32 : index
    %c0_49 = arith.constant 0 : index
    %50 = vector.load %arg3[%c32, %c0_49] : memref<36x128xbf16, #tpu.memory_space<vmem>>, vector<4x128xbf16>
    %cst_50 = arith.constant dense<0.000000e+00> : vector<256x128xf32>
    %51 = tpu.matmul %49, %50, %cst_50 {dimension_numbers = #tpu.dot_dimension_numbers<[1], [0], [0], [1], [0, 0, 1, 1], [], []>} : vector<256x4xbf16>, vector<4x128xbf16>, vector<256x128xf32> -> vector<256x128xf32>
    %52 = arith.addf %46, %51 : vector<256x128xf32>
    %c0_51 = arith.constant 0 : index
    %c0_52 = arith.constant 0 : index
    %53 = vector.load %arg4[%c0_51, %c0_52] : memref<256x128xf32, #tpu.memory_space<vmem>>, vector<256x128xf32>
    tpu.vector_store %arg4[%c0_51, %c0_52], %52 {strides = array<i32>} : memref<256x128xf32, #tpu.memory_space<vmem>>, vector<256x128xf32>,
    %cst_53 = arith.constant dense<0.000000e+00> : vector<128xf32>
    %54 = vector.multi_reduction <add>, %52, %cst_53 [0] : vector<256x128xf32> to vector<128xf32>
    %55 = vector.shape_cast %54 : vector<128xf32> to vector<1x128xf32>
    %56 = arith.mulf %52, %52 : vector<256x128xf32>
    %cst_54 = arith.constant dense<0.000000e+00> : vector<128xf32>
    %57 = vector.multi_reduction <add>, %56, %cst_54 [0] : vector<256x128xf32> to vector<128xf32>
    %58 = vector.shape_cast %57 : vector<128xf32> to vector<1x128xf32>
    %c0_i32 = arith.constant 0 : i32
    %59 = arith.cmpi eq, %arg1, %c0_i32 : i32
    %60 = arith.extui %59 : i1 to i32
    %c0_i32_55 = arith.constant 0 : i32
    %61 = arith.cmpi ne, %60, %c0_i32_55 : i32
    scf.if %61 {
      %c0_58 = arith.constant 0 : index
      %c0_59 = arith.constant 0 : index
      %65 = vector.load %arg5[%c0_58, %c0_59] : memref<1x128xf32, #tpu.memory_space<vmem>>, vector<1x128xf32>
      tpu.vector_store %arg5[%c0_58, %c0_59], %55 {strides = array<i32>} : memref<1x128xf32, #tpu.memory_space<vmem>>, vector<1x128xf32>,
      %c0_60 = arith.constant 0 : index
      %c0_61 = arith.constant 0 : index
      %66 = vector.load %arg6[%c0_60, %c0_61] : memref<1x128xf32, #tpu.memory_space<vmem>>, vector<1x128xf32>
      tpu.vector_store %arg6[%c0_60, %c0_61], %58 {strides = array<i32>} : memref<1x128xf32, #tpu.memory_space<vmem>>, vector<1x128xf32>,
    } else {
    }
    %c0_i32_56 = arith.constant 0 : i32
    %62 = arith.cmpi sgt, %arg1, %c0_i32_56 : i32
    %63 = arith.extui %62 : i1 to i32
    %c0_i32_57 = arith.constant 0 : i32
    %64 = arith.cmpi ne, %63, %c0_i32_57 : i32
    scf.if %64 {
      %c0_58 = arith.constant 0 : index
      %c0_59 = arith.constant 0 : index
      %65 = vector.load %arg5[%c0_58, %c0_59] : memref<1x128xf32, #tpu.memory_space<vmem>>, vector<1x128xf32>
      %66 = arith.addf %65, %55 : vector<1x128xf32>
      %c0_60 = arith.constant 0 : index
      %c0_61 = arith.constant 0 : index
      %67 = vector.load %arg5[%c0_60, %c0_61] : memref<1x128xf32, #tpu.memory_space<vmem>>, vector<1x128xf32>
      tpu.vector_store %arg5[%c0_60, %c0_61], %66 {strides = array<i32>} : memref<1x128xf32, #tpu.memory_space<vmem>>, vector<1x128xf32>,
      %c0_62 = arith.constant 0 : index
      %c0_63 = arith.constant 0 : index
      %68 = vector.load %arg6[%c0_62, %c0_63] : memref<1x128xf32, #tpu.memory_space<vmem>>, vector<1x128xf32>
      %69 = arith.addf %68, %58 : vector<1x128xf32>
      %c0_64 = arith.constant 0 : index
      %c0_65 = arith.constant 0 : index
      %70 = vector.load %arg6[%c0_64, %c0_65] : memref<1x128xf32, #tpu.memory_space<vmem>>, vector<1x128xf32>
      tpu.vector_store %arg6[%c0_64, %c0_65], %69 {strides = array<i32>} : memref<1x128xf32, #tpu.memory_space<vmem>>, vector<1x128xf32>,
    } else {
    }
    return
  }
  func.func @transform_0(%arg0: i32, %arg1: i32) -> (i32, i32, i32, i32) {
    %c0_i32 = arith.constant 0 : i32
    %c0_i32_0 = arith.constant 0 : i32
    %c0_i32_1 = arith.constant 0 : i32
    %c0_i32_2 = arith.constant 0 : i32
    return %arg1, %c0_i32, %c0_i32_0, %c0_i32_1 : i32, i32, i32, i32
  }
  func.func @transform_1(%arg0: i32, %arg1: i32) -> (i32, i32) {
    %c0_i32 = arith.constant 0 : i32
    %c0_i32_0 = arith.constant 0 : i32
    return %c0_i32, %arg0 : i32, i32
  }
  func.func @transform_2(%arg0: i32, %arg1: i32) -> (i32, i32) {
    %c0_i32 = arith.constant 0 : i32
    return %arg1, %arg0 : i32, i32
  }
  func.func @transform_3(%arg0: i32, %arg1: i32) -> (i32, i32) {
    %c0_i32 = arith.constant 0 : i32
    %c0_i32_0 = arith.constant 0 : i32
    return %c0_i32, %arg0 : i32, i32
  }
  func.func @transform_4(%arg0: i32, %arg1: i32) -> (i32, i32) {
    %c0_i32 = arith.constant 0 : i32
    %c0_i32_0 = arith.constant 0 : i32
    return %c0_i32, %arg0 : i32, i32
  }
}

module attributes {stable_mosaic.version = 11 : i64} {
  func.func @_bn_act_kernel(%arg0: i32, %arg1: i32, %arg2: memref<256x128xf32, #tpu.memory_space<vmem>>, %arg3: memref<1x128xf32, #tpu.memory_space<vmem>>, %arg4: memref<1x128xf32, #tpu.memory_space<vmem>>, %arg5: memref<256x128xf32, #tpu.memory_space<vmem>>) attributes {dimension_semantics = [#tpu.dimension_semantics<parallel>, #tpu.dimension_semantics<parallel>], iteration_bounds = array<i64: 2, 1>, scalar_prefetch = 0 : i64, scratch_operands = 0 : i64, tpu.core_type = #tpu.core_type<tc>, window_params = [{transform_indices = @transform_0, window_bounds = array<i64: 256, 128>}, {transform_indices = @transform_1, window_bounds = array<i64: 1, 128>}, {transform_indices = @transform_2, window_bounds = array<i64: 1, 128>}, {transform_indices = @transform_3, window_bounds = array<i64: 256, 128>}]} {
    %c0 = arith.constant 0 : index
    %c0_0 = arith.constant 0 : index
    %0 = vector.load %arg2[%c0, %c0_0] : memref<256x128xf32, #tpu.memory_space<vmem>>, vector<256x128xf32>
    %c0_1 = arith.constant 0 : index
    %c0_2 = arith.constant 0 : index
    %1 = vector.load %arg3[%c0_1, %c0_2] : memref<1x128xf32, #tpu.memory_space<vmem>>, vector<1x128xf32>
    %2 = vector.broadcast %1 : vector<1x128xf32> to vector<256x128xf32>
    %3 = arith.mulf %0, %2 : vector<256x128xf32>
    %c0_3 = arith.constant 0 : index
    %c0_4 = arith.constant 0 : index
    %4 = vector.load %arg4[%c0_3, %c0_4] : memref<1x128xf32, #tpu.memory_space<vmem>>, vector<1x128xf32>
    %5 = vector.broadcast %4 : vector<1x128xf32> to vector<256x128xf32>
    %6 = arith.addf %3, %5 : vector<256x128xf32>
    %cst = arith.constant 0.000000e+00 : f32
    %7 = vector.broadcast %cst : f32 to vector<256x128xf32>
    %8 = arith.maximumf %6, %7 : vector<256x128xf32>
    %c0_5 = arith.constant 0 : index
    %c0_6 = arith.constant 0 : index
    %9 = vector.load %arg5[%c0_5, %c0_6] : memref<256x128xf32, #tpu.memory_space<vmem>>, vector<256x128xf32>
    tpu.vector_store %arg5[%c0_5, %c0_6], %8 {strides = array<i32>} : memref<256x128xf32, #tpu.memory_space<vmem>>, vector<256x128xf32>,
    return
  }
  func.func @transform_0(%arg0: i32, %arg1: i32) -> (i32, i32) {
    %c0_i32 = arith.constant 0 : i32
    return %arg0, %arg1 : i32, i32
  }
  func.func @transform_1(%arg0: i32, %arg1: i32) -> (i32, i32) {
    %c0_i32 = arith.constant 0 : i32
    %c0_i32_0 = arith.constant 0 : i32
    return %c0_i32, %arg1 : i32, i32
  }
  func.func @transform_2(%arg0: i32, %arg1: i32) -> (i32, i32) {
    %c0_i32 = arith.constant 0 : i32
    %c0_i32_0 = arith.constant 0 : i32
    return %c0_i32, %arg1 : i32, i32
  }
  func.func @transform_3(%arg0: i32, %arg1: i32) -> (i32, i32) {
    %c0_i32 = arith.constant 0 : i32
    return %arg0, %arg1 : i32, i32
  }
}

</mosaic_0001>

<llo_original>
// kernel: conv_block_forward.3
$region0: #{conv_block_forward.3}
  #allocation0 [shape = 'u32[]', space=smem, size = 0x4, offset = 0x4, fixed_abs, tag = 'smem constant byte address 0x4 - core index']
  #allocation1 [shape = 'u32[144,128]{1,0:T(1,128)}', space=vmem, size = 0x12000, scoped, tag = 'internal scratch']
  %s0 = inlined_call_operand.vmem [shape: f32[512,128], index: 0, kind: input, shape index: {}]
  %s1 = inlined_call_operand.vmem [shape: f32[1,128], index: 1, kind: input, shape index: {}]
  %s2 = inlined_call_operand.vmem [shape: f32[1,128], index: 2, kind: input, shape index: {}]
  %s3 = inlined_call_operand.hbm [shape: f32[512,128], index: 3, kind: output, shape index: {}]
  %s4 = sld [smem:[#allocation0]]
  $region45: #{conv_block_forward.3} parent=0
    _
  %s6 = ssub.s32 1, %s4
  %s7 = scalar_select 0, %s6, %s4
  $region1: #{conv_block_forward.3} parent=0
    #allocation2 [shape = 'u8[262144]{0}', space=vmem, size = 0x40000, scoped, tag = 'output window, operand 0']
    #allocation3 [shape = 's32[2]{0}', space=sflag, size = 0x8, scoped, tag = 'scoped memory for conv_block_forward.3']
    %8 = vsyncpa [#allocation3], 0
    %s9 = scalar_lea.sflag [#allocation3], 1
    %10 = vsyncpa %s9, 0
    loop: start=0, step=1, limit=4
    $region2: #{conv_block_forward.3} parent=1 // loop_pre_header
      _
    $region3: #{conv_block_forward.3} parent=1 // loop_header
      %s12 = sphi 0, %s16
      %p13 = scmp.ge.s32.totalorder %s12, 4
      %s19 = sphi 0, %s31
      %s20 = sphi 0, %s27
      %s21 = sphi 0, %s19
      %s22 = sphi 0, %s20
      %s23 = sphi 0, %s21
      %s24 = sphi 0, %s22
      %s36 = sphi 0, %s38
      %s39 = sphi 0, %s36
      %s40 = sphi 0, %s39
      %s56 = sphi 0, %s40
      %s62 = sphi 0, %s64
      %s65 = sphi 0, %s62
      %s66 = sphi 0, %s65
      %s82 = sphi 0, %s66
      %s88 = sphi 0, %s90
      %s91 = sphi 0, %s88
      %s92 = sphi 0, %s91
      %s108 = sphi 0, %s92
      %s116 = sphi 0, %s118
      %s119 = sphi 0, %s116
      %s120 = sphi 0, %s119
      %s136 = sphi 0, %s120
    $region4: #{conv_block_forward.3} parent=1 // loop_header_branch
      %15 = sbr.rel (%p13) target = $region8
    $region5: #{conv_block_forward.3} parent=1 // loop_body
      %s17 = ssub.s32 %s12, 1
      %s18 = ssub.s32 %s12, 2
      %s25 = sadd.s32 1, %s20
      %p26 = scmp.ge.s32.totalorder %s25, 1
      %s27 = scalar_select %p26, 0, %s25
      %s28 = sadd.s32 1, %s19
      %s29 = scalar_select %p26, %s28, %s19
      %p30 = scmp.ge.s32.totalorder %s29, 2
      %s31 = scalar_select %p30, 0, %s29
      %s32 = ssub.s32 %s19, %s31
      %s33 = ssub.s32 %s20, %s27
      %s34 = sor.u32 %s32, %s33
      %p35 = scmp.eq.s32.totalorder %s34, 0
      %s37 = sadd.s32 %s36, 1
      %s38 = scalar_select %p35, %s36, %s37
      %p41 = pneg %p35
      %p42 = scmp.eq.s32.totalorder %s12, 1
      %p43 = por %p41, %p42
      %p44 = scmp.ne.s32.totalorder %s36, %s39
      %p45 = scmp.eq.s32.totalorder %s12, 0
      %p46 = por %p44, %p45
      %p47 = scmp.ne.s32.totalorder %s36, %s39
      %p48 = scmp.eq.s32.totalorder %s17, 1
      %p49 = por %p47, %p48
      %p50 = scmp.ne.s32.totalorder %s39, %s40
      %p51 = scmp.eq.s32.totalorder %s17, 0
      %p52 = por %p50, %p51
      %p53 = scmp.ne.s32.totalorder %s39, %s40
      %p54 = scmp.eq.s32.totalorder %s18, 1
      %p55 = por %p53, %p54
      %p57 = scmp.ne.s32.totalorder %s40, %s56
      %p58 = scmp.eq.s32.totalorder %s18, 0
      %p59 = por %p57, %p58
      %s60 = ssub.s32 %s20, %s27
      %p61 = scmp.eq.s32.totalorder %s60, 0
      %s63 = sadd.s32 %s62, 1
      %s64 = scalar_select %p61, %s62, %s63
      %p67 = pneg %p61
      %p68 = scmp.eq.s32.totalorder %s12, 1
      %p69 = por %p67, %p68
      %p70 = scmp.ne.s32.totalorder %s62, %s65
      %p71 = scmp.eq.s32.totalorder %s12, 0
      %p72 = por %p70, %p71
      %p73 = scmp.ne.s32.totalorder %s62, %s65
      %p74 = scmp.eq.s32.totalorder %s17, 1
      %p75 = por %p73, %p74
      %p76 = scmp.ne.s32.totalorder %s65, %s66
      %p77 = scmp.eq.s32.totalorder %s17, 0
      %p78 = por %p76, %p77
      %p79 = scmp.ne.s32.totalorder %s65, %s66
      %p80 = scmp.eq.s32.totalorder %s18, 1
      %p81 = por %p79, %p80
      %p83 = scmp.ne.s32.totalorder %s66, %s82
      %p84 = scmp.eq.s32.totalorder %s18, 0
      %p85 = por %p83, %p84
      %s86 = ssub.s32 %s20, %s27
      %p87 = scmp.eq.s32.totalorder %s86, 0
      %s89 = sadd.s32 %s88, 1
      %s90 = scalar_select %p87, %s88, %s89
      %p93 = pneg %p87
      %p94 = scmp.eq.s32.totalorder %s12, 1
      %p95 = por %p93, %p94
      %p96 = scmp.ne.s32.totalorder %s88, %s91
      %p97 = scmp.eq.s32.totalorder %s12, 0
      %p98 = por %p96, %p97
      %p99 = scmp.ne.s32.totalorder %s88, %s91
      %p100 = scmp.eq.s32.totalorder %s17, 1
      %p101 = por %p99, %p100
      %p102 = scmp.ne.s32.totalorder %s91, %s92
      %p103 = scmp.eq.s32.totalorder %s17, 0
      %p104 = por %p102, %p103
      %p105 = scmp.ne.s32.totalorder %s91, %s92
      %p106 = scmp.eq.s32.totalorder %s18, 1
      %p107 = por %p105, %p106
      %p109 = scmp.ne.s32.totalorder %s92, %s108
      %p110 = scmp.eq.s32.totalorder %s18, 0
      %p111 = por %p109, %p110
      %s112 = ssub.s32 %s19, %s31
      %s113 = ssub.s32 %s20, %s27
      %s114 = sor.u32 %s112, %s113
      %p115 = scmp.eq.s32.totalorder %s114, 0
      %s117 = sadd.s32 %s116, 1
      %s118 = scalar_select %p115, %s116, %s117
      %p121 = pneg %p115
      %p122 = scmp.eq.s32.totalorder %s12, 1
      %p123 = por %p121, %p122
      %p124 = scmp.ne.s32.totalorder %s116, %s119
      %p125 = scmp.eq.s32.totalorder %s12, 0
      %p126 = por %p124, %p125
      %p127 = scmp.ne.s32.totalorder %s116, %s119
      %p128 = scmp.eq.s32.totalorder %s17, 1
      %p129 = por %p127, %p128
      %p130 = scmp.ne.s32.totalorder %s119, %s120
      %p131 = scmp.eq.s32.totalorder %s17, 0
      %p132 = por %p130, %p131
      %p133 = scmp.ne.s32.totalorder %s119, %s120
      %p134 = scmp.eq.s32.totalorder %s18, 1
      %p135 = por %p133, %p134
      %p137 = scmp.ne.s32.totalorder %s120, %s136
      %p138 = scmp.eq.s32.totalorder %s18, 0
      %p139 = por %p137, %p138
      %p140 = scmp.le.s32.totalorder 1, %s12
      %p141 = scmp.lt.s32.totalorder %s12, 3
      %p142 = pnand %p140, %p141
      %p143 = pneg %p142
      // Predicated region
      $region9: #{conv_block_forward.3} parent=5 // pred_check
        _
      $region10: #{conv_block_forward.3} parent=5 // pred_check_branch
        %145 = sbr.rel (%p142) target = $region12
      $region11: #{conv_block_forward.3} parent=5 // pred_region
        %s146 = ssub.s32 %s12, 1
        // Predicated region
        $region13: #{conv_block_forward.3} parent=11 // pred_check
          %p147 = pneg %p78
        $region14: #{conv_block_forward.3} parent=11 // pred_check_branch
          %149 = sbr.rel (%p147) target = $region16
        $region15: #{conv_block_forward.3} parent=11 // pred_region
          %p150 = scmp.lt.s32.totalorder %s22, 0
          %s151 = scalar_select %p150, %s22, 0
          %s152 = scalar_lea.vmem %s1, %s151
        $region16: #{conv_block_forward.3} parent=11 // pred_fallthru
          _
        // Predicated region
        $region17: #{conv_block_forward.3} parent=11 // pred_check
          %p153 = pneg %p104
        $region18: #{conv_block_forward.3} parent=11 // pred_check_branch
          %155 = sbr.rel (%p153) target = $region20
        $region19: #{conv_block_forward.3} parent=11 // pred_region
          %p156 = scmp.lt.s32.totalorder %s22, 0
          %s157 = scalar_select %p156, %s22, 0
          %s158 = scalar_lea.vmem %s2, %s157
        $region20: #{conv_block_forward.3} parent=11 // pred_fallthru
          _
      $region12: #{conv_block_forward.3} parent=5 // pred_fallthru
        _
      %p159 = scmp.lt.s32.totalorder %s12, 2
      // Predicated region
      $region21: #{conv_block_forward.3} parent=5 // pred_check
        %p160 = pneg %p159
      $region22: #{conv_block_forward.3} parent=5 // pred_check_branch
        %162 = sbr.rel (%p160) target = $region24
      $region23: #{conv_block_forward.3} parent=5 // pred_region
        // Predicated region
        $region25: #{conv_block_forward.3} parent=23 // pred_check
          %p163 = pneg %p46
        $region26: #{conv_block_forward.3} parent=23 // pred_check_branch
          %165 = sbr.rel (%p163) target = $region28
        $region27: #{conv_block_forward.3} parent=23 // pred_region
          %s166 = smul.u32 32, %s19
          %p167 = scmp.lt.s32.totalorder %s166, 63
          %s168 = scalar_select %p167, %s166, 63
          %p169 = scmp.lt.s32.totalorder %s20, 0
          %s170 = scalar_select %p169, %s20, 0
          %s171 = sadd.s32 %s170, %s168
          %s172 = smul.addr %s171, 8
          %s173 = scalar_lea.vmem %s0, %s172
          %s174 = smul.u32 32, %s19
        $region28: #{conv_block_forward.3} parent=23 // pred_fallthru
          _
      $region24: #{conv_block_forward.3} parent=5 // pred_fallthru
        _
      %p175 = scmp.le.s32.totalorder 1, %s12
      %p176 = scmp.lt.s32.totalorder %s12, 3
      %p177 = pnand %p175, %p176
      %p178 = pneg %p177
      // Predicated region
      $region29: #{conv_block_forward.3} parent=5 // pred_check
        _
      $region30: #{conv_block_forward.3} parent=5 // pred_check_branch
        %180 = sbr.rel (%p177) target = $region32
      $region31: #{conv_block_forward.3} parent=5 // pred_region
        %s181 = ssub.s32 %s12, 1
        %s182 = smul.u32 32, %s21
        %p183 = scmp.lt.s32.totalorder %s182, 63
        %s184 = scalar_select %p183, %s182, 63
        %p185 = scmp.lt.s32.totalorder %s22, 0
        %s186 = scalar_select %p185, %s22, 0
        %s187 = sadd.s32 %s186, %s184
        %s188 = smul.addr %s187, 8
        %s189 = scalar_lea.vmem %s0, %s188
        %p190 = pneg %p52
        %p191 = pneg %p49
        %p192 = scmp.lt.s32.totalorder %s22, 0
        %s193 = scalar_select %p192, %s22, 0
        %s194 = scalar_lea.vmem %s1, %s193
        %p195 = pneg %p78
        %p196 = pneg %p75
        %p197 = scmp.lt.s32.totalorder %s22, 0
        %s198 = scalar_select %p197, %s22, 0
        %s199 = scalar_lea.vmem %s2, %s198
        %p200 = pneg %p104
        %p201 = pneg %p101
        %p202 = pneg %p132
        %p203 = pneg %p129
        %s204 = sand.u32 %s119, 1
        %s205 = scalar_lea.sflag [#allocation3], %s204
        %s206 = sand.u32 %s119, 1
        %s207 = smul.addr %s206, 256
        %s208 = scalar_lea.vmem [#allocation2], %s207
        %s209 = smul.u32 32, %s21
        %p210 = scmp.lt.s32.totalorder %s209, 63
        %s211 = scalar_select %p210, %s209, 63
        %p212 = scmp.lt.s32.totalorder %s22, 0
        %s213 = scalar_select %p212, %s22, 0
        %s214 = sadd.s32 %s213, %s211
        %s215 = smul.addr %s214, 8
        %s216 = scalar_lea.vmem %s0, %s215
        %s217 = smul.u32 32, %s21
        %p218 = scmp.lt.s32.totalorder %s22, 0
        %s219 = scalar_select %p218, %s22, 0
        %s220 = scalar_lea.vmem %s1, %s219
        %p221 = scmp.lt.s32.totalorder %s22, 0
        %s222 = scalar_select %p221, %s22, 0
        %s223 = scalar_lea.vmem %s2, %s222
        %s224 = smul.u32 32, %s21
        %v225 = vld [vmem:[%s216] sm:$0xff]
        %v226 = vld [vmem:[%s216 + $0x8] sm:$0xff]
        %v227 = vld [vmem:[%s216 + $0x10] sm:$0xff]
        %v228 = vld [vmem:[%s216 + $0x18] sm:$0xff]
        %v229 = vld [vmem:[%s216 + $0x20] sm:$0xff]
        %v230 = vld [vmem:[%s216 + $0x28] sm:$0xff]
        %v231 = vld [vmem:[%s216 + $0x30] sm:$0xff]
        %v232 = vld [vmem:[%s216 + $0x38] sm:$0xff]
        %v233 = vld [vmem:[%s216 + $0x40] sm:$0xff]
        %v234 = vld [vmem:[%s216 + $0x48] sm:$0xff]
        %v235 = vld [vmem:[%s216 + $0x50] sm:$0xff]
        %v236 = vld [vmem:[%s216 + $0x58] sm:$0xff]
        %v237 = vld [vmem:[%s216 + $0x60] sm:$0xff]
        %v238 = vld [vmem:[%s216 + $0x68] sm:$0xff]
        %v239 = vld [vmem:[%s216 + $0x70] sm:$0xff]
        %v240 = vld [vmem:[%s216 + $0x78] sm:$0xff]
        %v241 = vld [vmem:[%s216 + $0x80] sm:$0xff]
        %v242 = vld [vmem:[%s216 + $0x88] sm:$0xff]
        %v243 = vld [vmem:[%s216 + $0x90] sm:$0xff]
        %v244 = vld [vmem:[%s216 + $0x98] sm:$0xff]
        %v245 = vld [vmem:[%s216 + $0xa0] sm:$0xff]
        %v246 = vld [vmem:[%s216 + $0xa8] sm:$0xff]
        %v247 = vld [vmem:[%s216 + $0xb0] sm:$0xff]
        %v248 = vld [vmem:[%s216 + $0xb8] sm:$0xff]
        %v249 = vld [vmem:[%s216 + $0xc0] sm:$0xff]
        %v250 = vld [vmem:[%s216 + $0xc8] sm:$0xff]
        %v251 = vld [vmem:[%s216 + $0xd0] sm:$0xff]
        %v252 = vld [vmem:[%s216 + $0xd8] sm:$0xff]
        %v253 = vld [vmem:[%s216 + $0xe0] sm:$0xff]
        %v254 = vld [vmem:[%s216 + $0xe8] sm:$0xff]
        %v255 = vld [vmem:[%s216 + $0xf0] sm:$0xff]
        %v256 = vld [vmem:[%s216 + $0xf8] sm:$0xff]
        %v257 = vld [vmem:[%s220] sm:$0x1]
        %v259 = vlaneseq
        %v260 = vshrl.u32 %v259, 7
        %v261 = vsub.s32 0, %v260
        %v262 = vrot.slane %v257, %v261
        %v264 = vmul.f32 %v225, %v262
        %v265 = vmul.f32 %v226, %v262
        %v266 = vmul.f32 %v227, %v262
        %v267 = vmul.f32 %v228, %v262
        %v268 = vmul.f32 %v229, %v262
        %v269 = vmul.f32 %v230, %v262
        %v270 = vmul.f32 %v231, %v262
        %v271 = vmul.f32 %v232, %v262
        %v272 = vmul.f32 %v233, %v262
        %v273 = vmul.f32 %v234, %v262
        %v274 = vmul.f32 %v235, %v262
        %v275 = vmul.f32 %v236, %v262
        %v276 = vmul.f32 %v237, %v262
        %v277 = vmul.f32 %v238, %v262
        %v278 = vmul.f32 %v239, %v262
        %v279 = vmul.f32 %v240, %v262
        %v280 = vmul.f32 %v241, %v262
        %v281 = vmul.f32 %v242, %v262
        %v282 = vmul.f32 %v243, %v262
        %v283 = vmul.f32 %v244, %v262
        %v284 = vmul.f32 %v245, %v262
        %v285 = vmul.f32 %v246, %v262
        %v286 = vmul.f32 %v247, %v262
        %v287 = vmul.f32 %v248, %v262
        %v288 = vmul.f32 %v249, %v262
        %v289 = vmul.f32 %v250, %v262
        %v290 = vmul.f32 %v251, %v262
        %v291 = vmul.f32 %v252, %v262
        %v292 = vmul.f32 %v253, %v262
        %v293 = vmul.f32 %v254, %v262
        %v294 = vmul.f32 %v255, %v262
        %v295 = vmul.f32 %v256, %v262
        %v296 = vld [vmem:[%s223] sm:$0x1]
        %v298 = vlaneseq
        %v299 = vshrl.u32 %v298, 7
        %v300 = vsub.s32 0, %v299
        %v301 = vrot.slane %v296, %v300
        %v303 = vadd.f32 %v264, %v301
        %v304 = vadd.f32 %v265, %v301
        %v305 = vadd.f32 %v266, %v301
        %v306 = vadd.f32 %v267, %v301
        %v307 = vadd.f32 %v268, %v301
        %v308 = vadd.f32 %v269, %v301
        %v309 = vadd.f32 %v270, %v301
        %v310 = vadd.f32 %v271, %v301
        %v311 = vadd.f32 %v272, %v301
        %v312 = vadd.f32 %v273, %v301
        %v313 = vadd.f32 %v274, %v301
        %v314 = vadd.f32 %v275, %v301
        %v315 = vadd.f32 %v276, %v301
        %v316 = vadd.f32 %v277, %v301
        %v317 = vadd.f32 %v278, %v301
        %v318 = vadd.f32 %v279, %v301
        %v319 = vadd.f32 %v280, %v301
        %v320 = vadd.f32 %v281, %v301
        %v321 = vadd.f32 %v282, %v301
        %v322 = vadd.f32 %v283, %v301
        %v323 = vadd.f32 %v284, %v301
        %v324 = vadd.f32 %v285, %v301
        %v325 = vadd.f32 %v286, %v301
        %v326 = vadd.f32 %v287, %v301
        %v327 = vadd.f32 %v288, %v301
        %v328 = vadd.f32 %v289, %v301
        %v329 = vadd.f32 %v290, %v301
        %v330 = vadd.f32 %v291, %v301
        %v331 = vadd.f32 %v292, %v301
        %v332 = vadd.f32 %v293, %v301
        %v333 = vadd.f32 %v294, %v301
        %v334 = vadd.f32 %v295, %v301
        %v335 = vmax.f32 %v303, 0.0
        %v336 = vmax.f32 %v304, 0.0
        %v337 = vmax.f32 %v305, 0.0
        %v338 = vmax.f32 %v306, 0.0
        %v339 = vmax.f32 %v307, 0.0
        %v340 = vmax.f32 %v308, 0.0
        %v341 = vmax.f32 %v309, 0.0
        %v342 = vmax.f32 %v310, 0.0
        %v343 = vmax.f32 %v311, 0.0
        %v344 = vmax.f32 %v312, 0.0
        %v345 = vmax.f32 %v313, 0.0
        %v346 = vmax.f32 %v314, 0.0
        %v347 = vmax.f32 %v315, 0.0
        %v348 = vmax.f32 %v316, 0.0
        %v349 = vmax.f32 %v317, 0.0
        %v350 = vmax.f32 %v318, 0.0
        %v351 = vmax.f32 %v319, 0.0
        %v352 = vmax.f32 %v320, 0.0
        %v353 = vmax.f32 %v321, 0.0
        %v354 = vmax.f32 %v322, 0.0
        %v355 = vmax.f32 %v323, 0.0
        %v356 = vmax.f32 %v324, 0.0
        %v357 = vmax.f32 %v325, 0.0
        %v358 = vmax.f32 %v326, 0.0
        %v359 = vmax.f32 %v327, 0.0
        %v360 = vmax.f32 %v328, 0.0
        %v361 = vmax.f32 %v329, 0.0
        %v362 = vmax.f32 %v330, 0.0
        %v363 = vmax.f32 %v331, 0.0
        %v364 = vmax.f32 %v332, 0.0
        %v365 = vmax.f32 %v333, 0.0
        %v366 = vmax.f32 %v334, 0.0
        %367 = vst [vmem:[%s208] sm:$0xff] %v335
        %368 = vst [vmem:[%s208 + $0x8] sm:$0xff] %v336
        %369 = vst [vmem:[%s208 + $0x10] sm:$0xff] %v337
        %370 = vst [vmem:[%s208 + $0x18] sm:$0xff] %v338
        %371 = vst [vmem:[%s208 + $0x20] sm:$0xff] %v339
        %372 = vst [vmem:[%s208 + $0x28] sm:$0xff] %v340
        %373 = vst [vmem:[%s208 + $0x30] sm:$0xff] %v341
        %374 = vst [vmem:[%s208 + $0x38] sm:$0xff] %v342
        %375 = vst [vmem:[%s208 + $0x40] sm:$0xff] %v343
        %376 = vst [vmem:[%s208 + $0x48] sm:$0xff] %v344
        %377 = vst [vmem:[%s208 + $0x50] sm:$0xff] %v345
        %378 = vst [vmem:[%s208 + $0x58] sm:$0xff] %v346
        %379 = vst [vmem:[%s208 + $0x60] sm:$0xff] %v347
        %380 = vst [vmem:[%s208 + $0x68] sm:$0xff] %v348
        %381 = vst [vmem:[%s208 + $0x70] sm:$0xff] %v349
        %382 = vst [vmem:[%s208 + $0x78] sm:$0xff] %v350
        %383 = vst [vmem:[%s208 + $0x80] sm:$0xff] %v351
        %384 = vst [vmem:[%s208 + $0x88] sm:$0xff] %v352
        %385 = vst [vmem:[%s208 + $0x90] sm:$0xff] %v353
        %386 = vst [vmem:[%s208 + $0x98] sm:$0xff] %v354
        %387 = vst [vmem:[%s208 + $0xa0] sm:$0xff] %v355
        %388 = vst [vmem:[%s208 + $0xa8] sm:$0xff] %v356
        %389 = vst [vmem:[%s208 + $0xb0] sm:$0xff] %v357
        %390 = vst [vmem:[%s208 + $0xb8] sm:$0xff] %v358
        %391 = vst [vmem:[%s208 + $0xc0] sm:$0xff] %v359
        %392 = vst [vmem:[%s208 + $0xc8] sm:$0xff] %v360
        %393 = vst [vmem:[%s208 + $0xd0] sm:$0xff] %v361
        %394 = vst [vmem:[%s208 + $0xd8] sm:$0xff] %v362
        %395 = vst [vmem:[%s208 + $0xe0] sm:$0xff] %v363
        %396 = vst [vmem:[%s208 + $0xe8] sm:$0xff] %v364
        %397 = vst [vmem:[%s208 + $0xf0] sm:$0xff] %v365
        %398 = vst [vmem:[%s208 + $0xf8] sm:$0xff] %v366
        %s399 = sand.u32 %s119, 1
        %s400 = scalar_lea.sflag [#allocation3], %s399
        %s401 = sand.u32 %s119, 1
        %s402 = smul.addr %s401, 256
        %s403 = scalar_lea.vmem [#allocation2], %s402
        // Predicated region
        $region33: #{conv_block_forward.3} parent=31 // pred_check
          %p404 = pneg %p129
        $region34: #{conv_block_forward.3} parent=31 // pred_check_branch
          %406 = sbr.rel (%p404) target = $region36
        $region35: #{conv_block_forward.3} parent=31 // pred_region
          %s407 = smul.u32 32, %s21
          %s409 = ssub.s32 4096, 4096
          %410 = vsyncadd %s400, %s409
          %s411 = sadd.s32 %s22, %s407
          %s412 = smul.addr %s411, 128
          %s413 = scalar_lea.hbm %s3, %s412
          %s414 = sshll.u32 %s403, 4
          %s415 = int_to_ptr.vmem [resolvable:$true] %s414
          %420 = dma.vmem_to_hbm [thread:$0]  %s415, 4096, %s413, %s400, 128, 128, 8
        $region36: #{conv_block_forward.3} parent=31 // pred_fallthru
          _
      $region32: #{conv_block_forward.3} parent=5 // pred_fallthru
        _
      %p421 = scmp.le.s32.totalorder 2, %s12
      // Predicated region
      $region37: #{conv_block_forward.3} parent=5 // pred_check
        %p422 = pneg %p421
      $region38: #{conv_block_forward.3} parent=5 // pred_check_branch
        %424 = sbr.rel (%p422) target = $region40
      $region39: #{conv_block_forward.3} parent=5 // pred_region
        %s425 = ssub.s32 %s12, 2
        // Predicated region
        $region41: #{conv_block_forward.3} parent=39 // pred_check
          %p426 = pneg %p135
        $region42: #{conv_block_forward.3} parent=39 // pred_check_branch
          %428 = sbr.rel (%p426) target = $region44
        $region43: #{conv_block_forward.3} parent=39 // pred_region
          %s429 = sand.u32 %s120, 1
          %s430 = scalar_lea.sflag [#allocation3], %s429
          %s431 = sand.u32 %s120, 1
          %s432 = smul.addr %s431, 256
          %s433 = scalar_lea.vmem [#allocation2], %s432
          %434 = dma.done %s430, 4096
        $region44: #{conv_block_forward.3} parent=39 // pred_fallthru
          _
      $region40: #{conv_block_forward.3} parent=5 // pred_fallthru
        _
    $region6: #{conv_block_forward.3} parent=1 // loop_footer
      %s16 = sadd.s32 1, %s12
    $region7: #{conv_block_forward.3} parent=1 // loop_footer_branch
      %11 = sbr.rel target = $region3
    $region8: #{conv_block_forward.3} parent=1 // loop_exit
      _
    %435 = vsyncpa [#allocation3], 1
    %s436 = scalar_lea.sflag [#allocation3], 1
    %437 = vsyncpa %s436, 1

// kernel: conv_block_forward.2
$region0: #{conv_block_forward.2}
  #allocation0 [shape = 'u32[]', space=smem, size = 0x4, offset = 0x4, fixed_abs, tag = 'smem constant byte address 0x4 - core index']
  #allocation1 [shape = 'u32[144,128]{1,0:T(1,128)}', space=vmem, size = 0x12000, scoped, tag = 'internal scratch']
  %s0 = inlined_call_operand.vmem [shape: bf16[2,18,18,4], index: 0, kind: input, shape index: {}]
  %s1 = inlined_call_operand.vmem [shape: bf16[36,128], index: 1, kind: input, shape index: {}]
  %s2 = inlined_call_operand.vmem [shape: f32[512,128], index: 2, kind: output, shape index: {0}]
  %s3 = inlined_call_operand.vmem [shape: f32[1,128], index: 3, kind: output, shape index: {1}]
  %s4 = inlined_call_operand.vmem [shape: f32[1,128], index: 4, kind: output, shape index: {2}]
  %5 = xla_tuple %s2, %s3, %s4
  %s6 = sld [smem:[#allocation0]]
  $region65: #{conv_block_forward.2} parent=0
    _
  %s8 = ssub.s32 1, %s6
  %s9 = scalar_select 0, %s8, %s6
  loop: start=0, step=1, limit=4
  $region2: #{conv_block_forward.2} parent=0 // loop_pre_header
    _
  $region3: #{conv_block_forward.2} parent=0 // loop_header
    %s11 = sphi 0, %s15
    %p12 = scmp.ge.s32.totalorder %s11, 4
    %s18 = sphi 0, %s30
    %s19 = sphi 0, %s26
    %s20 = sphi 0, %s18
    %s21 = sphi 0, %s19
    %s22 = sphi 0, %s20
    %s23 = sphi 0, %s21
    %s33 = sphi 0, %s35
    %s36 = sphi 0, %s33
    %s37 = sphi 0, %s36
    %s53 = sphi 0, %s37
    %s59 = sphi 0, %s61
    %s62 = sphi 0, %s59
    %s63 = sphi 0, %s62
    %s79 = sphi 0, %s63
    %s87 = sphi 0, %s89
    %s90 = sphi 0, %s87
    %s91 = sphi 0, %s90
    %s107 = sphi 0, %s91
    %s113 = sphi 0, %s115
    %s116 = sphi 0, %s113
    %s117 = sphi 0, %s116
    %s133 = sphi 0, %s117
    %s139 = sphi 0, %s141
    %s142 = sphi 0, %s139
    %s143 = sphi 0, %s142
    %s159 = sphi 0, %s143
  $region4: #{conv_block_forward.2} parent=0 // loop_header_branch
    %14 = sbr.rel (%p12) target = $region8
  $region5: #{conv_block_forward.2} parent=0 // loop_body
    %s16 = ssub.s32 %s11, 1
    %s17 = ssub.s32 %s11, 2
    %s24 = sadd.s32 1, %s19
    %p25 = scmp.ge.s32.totalorder %s24, 2
    %s26 = scalar_select %p25, 0, %s24
    %s27 = sadd.s32 1, %s18
    %s28 = scalar_select %p25, %s27, %s18
    %p29 = scmp.ge.s32.totalorder %s28, 1
    %s30 = scalar_select %p29, 0, %s28
    %s31 = ssub.s32 %s19, %s26
    %p32 = scmp.eq.s32.totalorder %s31, 0
    %s34 = sadd.s32 %s33, 1
    %s35 = scalar_select %p32, %s33, %s34
    %p38 = pneg %p32
    %p39 = scmp.eq.s32.totalorder %s11, 1
    %p40 = por %p38, %p39
    %p41 = scmp.ne.s32.totalorder %s33, %s36
    %p42 = scmp.eq.s32.totalorder %s11, 0
    %p43 = por %p41, %p42
    %p44 = scmp.ne.s32.totalorder %s33, %s36
    %p45 = scmp.eq.s32.totalorder %s16, 1
    %p46 = por %p44, %p45
    %p47 = scmp.ne.s32.totalorder %s36, %s37
    %p48 = scmp.eq.s32.totalorder %s16, 0
    %p49 = por %p47, %p48
    %p50 = scmp.ne.s32.totalorder %s36, %s37
    %p51 = scmp.eq.s32.totalorder %s17, 1
    %p52 = por %p50, %p51
    %p54 = scmp.ne.s32.totalorder %s37, %s53
    %p55 = scmp.eq.s32.totalorder %s17, 0
    %p56 = por %p54, %p55
    %s57 = ssub.s32 %s18, %s30
    %p58 = scmp.eq.s32.totalorder %s57, 0
    %s60 = sadd.s32 %s59, 1
    %s61 = scalar_select %p58, %s59, %s60
    %p64 = pneg %p58
    %p65 = scmp.eq.s32.totalorder %s11, 1
    %p66 = por %p64, %p65
    %p67 = scmp.ne.s32.totalorder %s59, %s62
    %p68 = scmp.eq.s32.totalorder %s11, 0
    %p69 = por %p67, %p68
    %p70 = scmp.ne.s32.totalorder %s59, %s62
    %p71 = scmp.eq.s32.totalorder %s16, 1
    %p72 = por %p70, %p71
    %p73 = scmp.ne.s32.totalorder %s62, %s63
    %p74 = scmp.eq.s32.totalorder %s16, 0
    %p75 = por %p73, %p74
    %p76 = scmp.ne.s32.totalorder %s62, %s63
    %p77 = scmp.eq.s32.totalorder %s17, 1
    %p78 = por %p76, %p77
    %p80 = scmp.ne.s32.totalorder %s63, %s79
    %p81 = scmp.eq.s32.totalorder %s17, 0
    %p82 = por %p80, %p81
    %s83 = ssub.s32 %s19, %s26
    %s84 = ssub.s32 %s18, %s30
    %s85 = sor.u32 %s83, %s84
    %p86 = scmp.eq.s32.totalorder %s85, 0
    %s88 = sadd.s32 %s87, 1
    %s89 = scalar_select %p86, %s87, %s88
    %p92 = pneg %p86
    %p93 = scmp.eq.s32.totalorder %s11, 1
    %p94 = por %p92, %p93
    %p95 = scmp.ne.s32.totalorder %s87, %s90
    %p96 = scmp.eq.s32.totalorder %s11, 0
    %p97 = por %p95, %p96
    %p98 = scmp.ne.s32.totalorder %s87, %s90
    %p99 = scmp.eq.s32.totalorder %s16, 1
    %p100 = por %p98, %p99
    %p101 = scmp.ne.s32.totalorder %s90, %s91
    %p102 = scmp.eq.s32.totalorder %s16, 0
    %p103 = por %p101, %p102
    %p104 = scmp.ne.s32.totalorder %s90, %s91
    %p105 = scmp.eq.s32.totalorder %s17, 1
    %p106 = por %p104, %p105
    %p108 = scmp.ne.s32.totalorder %s91, %s107
    %p109 = scmp.eq.s32.totalorder %s17, 0
    %p110 = por %p108, %p109
    %s111 = ssub.s32 %s18, %s30
    %p112 = scmp.eq.s32.totalorder %s111, 0
    %s114 = sadd.s32 %s113, 1
    %s115 = scalar_select %p112, %s113, %s114
    %p118 = pneg %p112
    %p119 = scmp.eq.s32.totalorder %s11, 1
    %p120 = por %p118, %p119
    %p121 = scmp.ne.s32.totalorder %s113, %s116
    %p122 = scmp.eq.s32.totalorder %s11, 0
    %p123 = por %p121, %p122
    %p124 = scmp.ne.s32.totalorder %s113, %s116
    %p125 = scmp.eq.s32.totalorder %s16, 1
    %p126 = por %p124, %p125
    %p127 = scmp.ne.s32.totalorder %s116, %s117
    %p128 = scmp.eq.s32.totalorder %s16, 0
    %p129 = por %p127, %p128
    %p130 = scmp.ne.s32.totalorder %s116, %s117
    %p131 = scmp.eq.s32.totalorder %s17, 1
    %p132 = por %p130, %p131
    %p134 = scmp.ne.s32.totalorder %s117, %s133
    %p135 = scmp.eq.s32.totalorder %s17, 0
    %p136 = por %p134, %p135
    %s137 = ssub.s32 %s18, %s30
    %p138 = scmp.eq.s32.totalorder %s137, 0
    %s140 = sadd.s32 %s139, 1
    %s141 = scalar_select %p138, %s139, %s140
    %p144 = pneg %p138
    %p145 = scmp.eq.s32.totalorder %s11, 1
    %p146 = por %p144, %p145
    %p147 = scmp.ne.s32.totalorder %s139, %s142
    %p148 = scmp.eq.s32.totalorder %s11, 0
    %p149 = por %p147, %p148
    %p150 = scmp.ne.s32.totalorder %s139, %s142
    %p151 = scmp.eq.s32.totalorder %s16, 1
    %p152 = por %p150, %p151
    %p153 = scmp.ne.s32.totalorder %s142, %s143
    %p154 = scmp.eq.s32.totalorder %s16, 0
    %p155 = por %p153, %p154
    %p156 = scmp.ne.s32.totalorder %s142, %s143
    %p157 = scmp.eq.s32.totalorder %s17, 1
    %p158 = por %p156, %p157
    %p160 = scmp.ne.s32.totalorder %s143, %s159
    %p161 = scmp.eq.s32.totalorder %s17, 0
    %p162 = por %p160, %p161
    %p163 = scmp.le.s32.totalorder 1, %s11
    %p164 = scmp.lt.s32.totalorder %s11, 3
    %p165 = pnand %p163, %p164
    %p166 = pneg %p165
    // Predicated region
    $region9: #{conv_block_forward.2} parent=5 // pred_check
      _
    $region10: #{conv_block_forward.2} parent=5 // pred_check_branch
      %168 = sbr.rel (%p165) target = $region12
    $region11: #{conv_block_forward.2} parent=5 // pred_region
      %s169 = ssub.s32 %s11, 1
      // Predicated region
      $region13: #{conv_block_forward.2} parent=11 // pred_check
        %p170 = pneg %p75
      $region14: #{conv_block_forward.2} parent=11 // pred_check_branch
        %172 = sbr.rel (%p170) target = $region16
      $region15: #{conv_block_forward.2} parent=11 // pred_region
        %p173 = scmp.lt.s32.totalorder %s20, 0
        %s174 = scalar_select %p173, %s20, 0
        %s175 = smul.addr %s174, 4
        %s176 = scalar_lea.vmem %s1, %s175
      $region16: #{conv_block_forward.2} parent=11 // pred_fallthru
        _
    $region12: #{conv_block_forward.2} parent=5 // pred_fallthru
      _
    %p177 = scmp.lt.s32.totalorder %s11, 2
    // Predicated region
    $region17: #{conv_block_forward.2} parent=5 // pred_check
      %p178 = pneg %p177
    $region18: #{conv_block_forward.2} parent=5 // pred_check_branch
      %180 = sbr.rel (%p178) target = $region20
    $region19: #{conv_block_forward.2} parent=5 // pred_region
      // Predicated region
      $region21: #{conv_block_forward.2} parent=19 // pred_check
        %p181 = pneg %p43
      $region22: #{conv_block_forward.2} parent=19 // pred_check_branch
        %183 = sbr.rel (%p181) target = $region24
      $region23: #{conv_block_forward.2} parent=19 // pred_region
        %p184 = scmp.lt.s32.totalorder %s19, 1
        %s185 = scalar_select %p184, %s19, 1
        %s186 = smul.addr %s185, 54
        %s187 = smul.addr %s186, 4
        %s188 = scalar_lea.vmem %s0, %s187
      $region24: #{conv_block_forward.2} parent=19 // pred_fallthru
        _
    $region20: #{conv_block_forward.2} parent=5 // pred_fallthru
      _
    %p189 = scmp.le.s32.totalorder 1, %s11
    %p190 = scmp.lt.s32.totalorder %s11, 3
    %p191 = pnand %p189, %p190
    %p192 = pneg %p191
    // Predicated region
    $region25: #{conv_block_forward.2} parent=5 // pred_check
      _
    $region26: #{conv_block_forward.2} parent=5 // pred_check_branch
      %194 = sbr.rel (%p191) target = $region28
    $region27: #{conv_block_forward.2} parent=5 // pred_region
      %s195 = ssub.s32 %s11, 1
      %p196 = scmp.lt.s32.totalorder %s21, 1
      %s197 = scalar_select %p196, %s21, 1
      %s198 = smul.addr %s197, 54
      %s199 = smul.addr %s198, 4
      %s200 = scalar_lea.vmem %s0, %s199
      %p201 = pneg %p49
      %p202 = pneg %p46
      %p203 = scmp.lt.s32.totalorder %s20, 0
      %s204 = scalar_select %p203, %s20, 0
      %s205 = smul.addr %s204, 4
      %s206 = scalar_lea.vmem %s1, %s205
      %p207 = pneg %p75
      %p208 = pneg %p72
      %p209 = pneg %p103
      %p210 = pneg %p100
      %s211 = smul.u32 32, %s21
      %p212 = scmp.lt.s32.totalorder %s211, 63
      %s213 = scalar_select %p212, %s211, 63
      %p214 = scmp.lt.s32.totalorder %s20, 0
      %s215 = scalar_select %p214, %s20, 0
      %s216 = sadd.s32 %s215, %s213
      %s217 = smul.addr %s216, 8
      %s218 = scalar_lea.vmem %s2, %s217
      %p219 = pneg %p129
      %p220 = pneg %p126
      %p221 = scmp.lt.s32.totalorder %s20, 0
      %s222 = scalar_select %p221, %s20, 0
      %s223 = scalar_lea.vmem %s3, %s222
      %p224 = pneg %p155
      %p225 = pneg %p152
      %p226 = scmp.lt.s32.totalorder %s20, 0
      %s227 = scalar_select %p226, %s20, 0
      %s228 = scalar_lea.vmem %s4, %s227
      %p229 = scmp.lt.s32.totalorder %s21, 1
      %s230 = scalar_select %p229, %s21, 1
      %s231 = smul.addr %s230, 54
      %s232 = smul.addr %s231, 4
      %s233 = scalar_lea.vmem %s0, %s232
      %p234 = scmp.lt.s32.totalorder %s20, 0
      %s235 = scalar_select %p234, %s20, 0
      %s236 = smul.addr %s235, 4
      %s237 = scalar_lea.vmem %s1, %s236
      %s238 = smul.u32 32, %s21
      %p239 = scmp.lt.s32.totalorder %s238, 63
      %s240 = scalar_select %p239, %s238, 63
      %p241 = scmp.lt.s32.totalorder %s20, 0
      %s242 = scalar_select %p241, %s20, 0
      %s243 = sadd.s32 %s242, %s240
      %s244 = smul.addr %s243, 8
      %s245 = scalar_lea.vmem %s2, %s244
      %s246 = smul.u32 32, %s21
      %p247 = scmp.lt.s32.totalorder %s20, 0
      %s248 = scalar_select %p247, %s20, 0
      %s249 = scalar_lea.vmem %s3, %s248
      %p250 = scmp.lt.s32.totalorder %s20, 0
      %s251 = scalar_select %p250, %s20, 0
      %s252 = scalar_lea.vmem %s4, %s251
      %v254 = vld [vmem:[%s233] sm:$0xf]
      %v255 = vld [vmem:[%s233 + $0x4] sm:$0xf]
      %v256 = vld [vmem:[%s233 + $0xc] sm:$0xf]
      %v257 = vld [vmem:[%s233 + $0x10] sm:$0xf]
      %v258 = vld [vmem:[%s233 + $0x18] sm:$0xf]
      %v259 = vld [vmem:[%s233 + $0x1c] sm:$0xf]
      %v260 = vld [vmem:[%s233 + $0x24] sm:$0xf]
      %v261 = vld [vmem:[%s233 + $0x28] sm:$0xf]
      %v262 = vld [vmem:[%s233 + $0x30] sm:$0xf]
      %v263 = vld [vmem:[%s233 + $0x34] sm:$0xf]
      %v264 = vld [vmem:[%s233 + $0x3c] sm:$0xf]
      %v265 = vld [vmem:[%s233 + $0x40] sm:$0xf]
      %v266 = vld [vmem:[%s233 + $0x48] sm:$0xf]
      %v267 = vld [vmem:[%s233 + $0x4c] sm:$0xf]
      %v268 = vld [vmem:[%s233 + $0x54] sm:$0xf]
      %v269 = vld [vmem:[%s233 + $0x58] sm:$0xf]
      %v270 = vld [vmem:[%s233 + $0x60] sm:$0xf]
      %v271 = vld [vmem:[%s233 + $0x64] sm:$0xf]
      %v272 = vld [vmem:[%s233 + $0x6c] sm:$0xf]
      %v273 = vld [vmem:[%s233 + $0x70] sm:$0xf]
      %v274 = vld [vmem:[%s233 + $0x78] sm:$0xf]
      %v275 = vld [vmem:[%s233 + $0x7c] sm:$0xf]
      %v276 = vld [vmem:[%s233 + $0x84] sm:$0xf]
      %v277 = vld [vmem:[%s233 + $0x88] sm:$0xf]
      %v278 = vld [vmem:[%s233 + $0x90] sm:$0xf]
      %v279 = vld [vmem:[%s233 + $0x94] sm:$0xf]
      %v280 = vld [vmem:[%s233 + $0x9c] sm:$0xf]
      %v281 = vld [vmem:[%s233 + $0xa0] sm:$0xf]
      %v282 = vld [vmem:[%s233 + $0xa8] sm:$0xf]
      %v283 = vld [vmem:[%s233 + $0xac] sm:$0xf]
      %v284 = vld [vmem:[%s233 + $0xb4] sm:$0xf]
      %v285 = vld [vmem:[%s233 + $0xb8] sm:$0xf]
      %v286 = vld [vmem:[%s237] sm:$0x3]
      %v287 = vld [vmem:[%s233 + $0x8] sm:$0x1]
      %v288 = vld [vmem:[%s233 + $0x14] sm:$0x1]
      %v289 = vld [vmem:[%s233 + $0x20] sm:$0x1]
      %v290 = vld [vmem:[%s233 + $0x2c] sm:$0x1]
      %v291 = vld [vmem:[%s233 + $0x38] sm:$0x1]
      %v292 = vld [vmem:[%s233 + $0x44] sm:$0x1]
      %v293 = vld [vmem:[%s233 + $0x50] sm:$0x1]
      %v294 = vld [vmem:[%s233 + $0x5c] sm:$0x1]
      %v295 = vld [vmem:[%s233 + $0x68] sm:$0x1]
      %v296 = vld [vmem:[%s233 + $0x74] sm:$0x1]
      %v297 = vld [vmem:[%s233 + $0x80] sm:$0x1]
      %v298 = vld [vmem:[%s233 + $0x8c] sm:$0x1]
      %v299 = vld [vmem:[%s233 + $0x98] sm:$0x1]
      %v300 = vld [vmem:[%s233 + $0xa4] sm:$0x1]
      %v301 = vld [vmem:[%s233 + $0xb0] sm:$0x1]
      %v302 = vld [vmem:[%s233 + $0xbc] sm:$0x1]
      %vm303 = vsmask.f32 3328
      %vm304 = vsmask.f32 7440
      %vm305 = vmor %vm303, %vm304
      %v307 = vshrl.u32 %v254, 16
      %v309 = vrot.slane %v307, 4
      %v310 = vshll.u32 %v254, 16
      %v312 = vrot.slane %v310, 5
      %v313 = vor.u32 %v309, %v312
      %v314 = vrot.slane %v313, 4
      %v316 = vshll.u32 %v255, 16
      %v318 = vrot.slane %v316, 5
      %v319 = vsel %vm305, %v314, %v318
      %v320 = vshrl.u32 %v255, 16
      %v322 = vrot.slane %v320, 4
      %v323 = vor.u32 %v322, %v318
      %v324 = vrot.slane %v323, 4
      %v326 = vshll.u32 %v287, 16
      %v328 = vrot.slane %v326, 5
      %v329 = vsel %vm305, %v324, %v328
      %v331 = vshrl.u32 %v256, 16
      %v333 = vrot.slane %v331, 4
      %v334 = vshll.u32 %v256, 16
      %v336 = vrot.slane %v334, 5
      %v337 = vor.u32 %v333, %v336
      %v338 = vrot.slane %v337, 4
      %v340 = vshll.u32 %v257, 16
      %v342 = vrot.slane %v340, 5
      %v343 = vsel %vm305, %v338, %v342
      %v344 = vshrl.u32 %v257, 16
      %v346 = vrot.slane %v344, 4
      %v347 = vor.u32 %v346, %v342
      %v348 = vrot.slane %v347, 4
      %v350 = vshll.u32 %v288, 16
      %v352 = vrot.slane %v350, 5
      %v353 = vsel %vm305, %v348, %v352
      %v355 = vshrl.u32 %v258, 16
      %v357 = vrot.slane %v355, 4
      %v358 = vshll.u32 %v258, 16
      %v360 = vrot.slane %v358, 5
      %v361 = vor.u32 %v357, %v360
      %v362 = vrot.slane %v361, 4
      %v364 = vshll.u32 %v259, 16
      %v366 = vrot.slane %v364, 5
      %v367 = vsel %vm305, %v362, %v366
      %v368 = vshrl.u32 %v259, 16
      %v370 = vrot.slane %v368, 4
      %v371 = vor.u32 %v370, %v366
      %v372 = vrot.slane %v371, 4
      %v374 = vshll.u32 %v289, 16
      %v376 = vrot.slane %v374, 5
      %v377 = vsel %vm305, %v372, %v376
      %v379 = vshrl.u32 %v260, 16
      %v381 = vrot.slane %v379, 4
      %v382 = vshll.u32 %v260, 16
      %v384 = vrot.slane %v382, 5
      %v385 = vor.u32 %v381, %v384
      %v386 = vrot.slane %v385, 4
      %v388 = vshll.u32 %v261, 16
      %v390 = vrot.slane %v388, 5
      %v391 = vsel %vm305, %v386, %v390
      %v392 = vshrl.u32 %v261, 16
      %v394 = vrot.slane %v392, 4
      %v395 = vor.u32 %v394, %v390
      %v396 = vrot.slane %v395, 4
      %v398 = vshll.u32 %v290, 16
      %v400 = vrot.slane %v398, 5
      %v401 = vsel %vm305, %v396, %v400
      %v403 = vshrl.u32 %v262, 16
      %v405 = vrot.slane %v403, 4
      %v406 = vshll.u32 %v262, 16
      %v408 = vrot.slane %v406, 5
      %v409 = vor.u32 %v405, %v408
      %v410 = vrot.slane %v409, 4
      %v412 = vshll.u32 %v263, 16
      %v414 = vrot.slane %v412, 5
      %v415 = vsel %vm305, %v410, %v414
      %v416 = vshrl.u32 %v263, 16
      %v418 = vrot.slane %v416, 4
      %v419 = vor.u32 %v418, %v414
      %v420 = vrot.slane %v419, 4
      %v422 = vshll.u32 %v291, 16
      %v424 = vrot.slane %v422, 5
      %v425 = vsel %vm305, %v420, %v424
      %v427 = vshrl.u32 %v264, 16
      %v429 = vrot.slane %v427, 4
      %v430 = vshll.u32 %v264, 16
      %v432 = vrot.slane %v430, 5
      %v433 = vor.u32 %v429, %v432
      %v434 = vrot.slane %v433, 4
      %v436 = vshll.u32 %v265, 16
      %v438 = vrot.slane %v436, 5
      %v439 = vsel %vm305, %v434, %v438
      %v440 = vshrl.u32 %v265, 16
      %v442 = vrot.slane %v440, 4
      %v443 = vor.u32 %v442, %v438
      %v444 = vrot.slane %v443, 4
      %v446 = vshll.u32 %v292, 16
      %v448 = vrot.slane %v446, 5
      %v449 = vsel %vm305, %v444, %v448
      %v451 = vshrl.u32 %v266, 16
      %v453 = vrot.slane %v451, 4
      %v454 = vshll.u32 %v266, 16
      %v456 = vrot.slane %v454, 5
      %v457 = vor.u32 %v453, %v456
      %v458 = vrot.slane %v457, 4
      %v460 = vshll.u32 %v267, 16
      %v462 = vrot.slane %v460, 5
      %v463 = vsel %vm305, %v458, %v462
      %v464 = vshrl.u32 %v267, 16
      %v466 = vrot.slane %v464, 4
      %v467 = vor.u32 %v466, %v462
      %v468 = vrot.slane %v467, 4
      %v470 = vshll.u32 %v293, 16
      %v472 = vrot.slane %v470, 5
      %v473 = vsel %vm305, %v468, %v472
      %v475 = vshrl.u32 %v268, 16
      %v477 = vrot.slane %v475, 4
      %v478 = vshll.u32 %v268, 16
      %v480 = vrot.slane %v478, 5
      %v481 = vor.u32 %v477, %v480
      %v482 = vrot.slane %v481, 4
      %v484 = vshll.u32 %v269, 16
      %v486 = vrot.slane %v484, 5
      %v487 = vsel %vm305, %v482, %v486
      %v488 = vshrl.u32 %v269, 16
      %v490 = vrot.slane %v488, 4
      %v491 = vor.u32 %v490, %v486
      %v492 = vrot.slane %v491, 4
      %v494 = vshll.u32 %v294, 16
      %v496 = vrot.slane %v494, 5
      %v497 = vsel %vm305, %v492, %v496
      %v499 = vshrl.u32 %v270, 16
      %v501 = vrot.slane %v499, 4
      %v502 = vshll.u32 %v270, 16
      %v504 = vrot.slane %v502, 5
      %v505 = vor.u32 %v501, %v504
      %v506 = vrot.slane %v505, 4
      %v508 = vshll.u32 %v271, 16
      %v510 = vrot.slane %v508, 5
      %v511 = vsel %vm305, %v506, %v510
      %v512 = vshrl.u32 %v271, 16
      %v514 = vrot.slane %v512, 4
      %v515 = vor.u32 %v514, %v510
      %v516 = vrot.slane %v515, 4
      %v518 = vshll.u32 %v295, 16
      %v520 = vrot.slane %v518, 5
      %v521 = vsel %vm305, %v516, %v520
      %v523 = vshrl.u32 %v272, 16
      %v525 = vrot.slane %v523, 4
      %v526 = vshll.u32 %v272, 16
      %v528 = vrot.slane %v526, 5
      %v529 = vor.u32 %v525, %v528
      %v530 = vrot.slane %v529, 4
      %v532 = vshll.u32 %v273, 16
      %v534 = vrot.slane %v532, 5
      %v535 = vsel %vm305, %v530, %v534
      %v536 = vshrl.u32 %v273, 16
      %v538 = vrot.slane %v536, 4
      %v539 = vor.u32 %v538, %v534
      %v540 = vrot.slane %v539, 4
      %v542 = vshll.u32 %v296, 16
      %v544 = vrot.slane %v542, 5
      %v545 = vsel %vm305, %v540, %v544
      %v547 = vshrl.u32 %v274, 16
      %v549 = vrot.slane %v547, 4
      %v550 = vshll.u32 %v274, 16
      %v552 = vrot.slane %v550, 5
      %v553 = vor.u32 %v549, %v552
      %v554 = vrot.slane %v553, 4
      %v556 = vshll.u32 %v275, 16
      %v558 = vrot.slane %v556, 5
      %v559 = vsel %vm305, %v554, %v558
      %v560 = vshrl.u32 %v275, 16
      %v562 = vrot.slane %v560, 4
      %v563 = vor.u32 %v562, %v558
      %v564 = vrot.slane %v563, 4
      %v566 = vshll.u32 %v297, 16
      %v568 = vrot.slane %v566, 5
      %v569 = vsel %vm305, %v564, %v568
      %v571 = vshrl.u32 %v276, 16
      %v573 = vrot.slane %v571, 4
      %v574 = vshll.u32 %v276, 16
      %v576 = vrot.slane %v574, 5
      %v577 = vor.u32 %v573, %v576
      %v578 = vrot.slane %v577, 4
      %v580 = vshll.u32 %v277, 16
      %v582 = vrot.slane %v580, 5
      %v583 = vsel %vm305, %v578, %v582
      %v584 = vshrl.u32 %v277, 16
      %v586 = vrot.slane %v584, 4
      %v587 = vor.u32 %v586, %v582
      %v588 = vrot.slane %v587, 4
      %v590 = vshll.u32 %v298, 16
      %v592 = vrot.slane %v590, 5
      %v593 = vsel %vm305, %v588, %v592
      %v595 = vshrl.u32 %v278, 16
      %v597 = vrot.slane %v595, 4
      %v598 = vshll.u32 %v278, 16
      %v600 = vrot.slane %v598, 5
      %v601 = vor.u32 %v597, %v600
      %v602 = vrot.slane %v601, 4
      %v604 = vshll.u32 %v279, 16
      %v606 = vrot.slane %v604, 5
      %v607 = vsel %vm305, %v602, %v606
      %v608 = vshrl.u32 %v279, 16
      %v610 = vrot.slane %v608, 4
      %v611 = vor.u32 %v610, %v606
      %v612 = vrot.slane %v611, 4
      %v614 = vshll.u32 %v299, 16
      %v616 = vrot.slane %v614, 5
      %v617 = vsel %vm305, %v612, %v616
      %v619 = vshrl.u32 %v280, 16
      %v621 = vrot.slane %v619, 4
      %v622 = vshll.u32 %v280, 16
      %v624 = vrot.slane %v622, 5
      %v625 = vor.u32 %v621, %v624
      %v626 = vrot.slane %v625, 4
      %v628 = vshll.u32 %v281, 16
      %v630 = vrot.slane %v628, 5
      %v631 = vsel %vm305, %v626, %v630
      %v632 = vshrl.u32 %v281, 16
      %v634 = vrot.slane %v632, 4
      %v635 = vor.u32 %v634, %v630
      %v636 = vrot.slane %v635, 4
      %v638 = vshll.u32 %v300, 16
      %v640 = vrot.slane %v638, 5
      %v641 = vsel %vm305, %v636, %v640
      %v643 = vshrl.u32 %v282, 16
      %v645 = vrot.slane %v643, 4
      %v646 = vshll.u32 %v282, 16
      %v648 = vrot.slane %v646, 5
      %v649 = vor.u32 %v645, %v648
      %v650 = vrot.slane %v649, 4
      %v652 = vshll.u32 %v283, 16
      %v654 = vrot.slane %v652, 5
      %v655 = vsel %vm305, %v650, %v654
      %v656 = vshrl.u32 %v283, 16
      %v658 = vrot.slane %v656, 4
      %v659 = vor.u32 %v658, %v654
      %v660 = vrot.slane %v659, 4
      %v662 = vshll.u32 %v301, 16
      %v664 = vrot.slane %v662, 5
      %v665 = vsel %vm305, %v660, %v664
      %v667 = vshrl.u32 %v284, 16
      %v669 = vrot.slane %v667, 4
      %v670 = vshll.u32 %v284, 16
      %v672 = vrot.slane %v670, 5
      %v673 = vor.u32 %v669, %v672
      %v674 = vrot.slane %v673, 4
      %v676 = vshll.u32 %v285, 16
      %v678 = vrot.slane %v676, 5
      %v679 = vsel %vm305, %v674, %v678
      %v680 = vshrl.u32 %v285, 16
      %v682 = vrot.slane %v680, 4
      %v683 = vor.u32 %v682, %v678
      %v684 = vrot.slane %v683, 4
      %v686 = vshll.u32 %v302, 16
      %v688 = vrot.slane %v686, 5
      %v689 = vsel %vm305, %v684, %v688
      %v690 = vld [vmem:[%s237] sm:$0xc]
      %v691 = vunpack.c.l.b16 %v319
      %v692 = vunpack.c.l.b16 %v329
      %v693 = vunpack.c.l.b16 %v343
      %v694 = vunpack.c.l.b16 %v353
      %v695 = vunpack.c.l.b16 %v367
      %v696 = vunpack.c.l.b16 %v377
      %v697 = vunpack.c.l.b16 %v391
      %v698 = vunpack.c.l.b16 %v401
      %v699 = vunpack.c.l.b16 %v415
      %v700 = vunpack.c.l.b16 %v425
      %v701 = vunpack.c.l.b16 %v439
      %v702 = vunpack.c.l.b16 %v449
      %v703 = vunpack.c.l.b16 %v463
      %v704 = vunpack.c.l.b16 %v473
      %v705 = vunpack.c.l.b16 %v487
      %v706 = vunpack.c.l.b16 %v497
      %v707 = vunpack.c.l.b16 %v511
      %v708 = vunpack.c.l.b16 %v521
      %v709 = vunpack.c.l.b16 %v535
      %v710 = vunpack.c.l.b16 %v545
      %v711 = vunpack.c.l.b16 %v559
      %v712 = vunpack.c.l.b16 %v569
      %v713 = vunpack.c.l.b16 %v583
      %v714 = vunpack.c.l.b16 %v593
      %v715 = vunpack.c.l.b16 %v607
      %v716 = vunpack.c.l.b16 %v617
      %v717 = vunpack.c.l.b16 %v631
      %v718 = vunpack.c.l.b16 %v641
      %v719 = vunpack.c.l.b16 %v655
      %v720 = vunpack.c.l.b16 %v665
      %v721 = vunpack.c.l.b16 %v679
      %v722 = vunpack.c.l.b16 %v689
      %v723 = vpack.c.b16 %v692, %v691
      %v724 = vpack.c.b16 %v694, %v693
      %v725 = vpack.c.b16 %v696, %v695
      %v726 = vpack.c.b16 %v698, %v697
      %v727 = vpack.c.b16 %v700, %v699
      %v728 = vpack.c.b16 %v702, %v701
      %v729 = vpack.c.b16 %v704, %v703
      %v730 = vpack.c.b16 %v706, %v705
      %v731 = vpack.c.b16 %v708, %v707
      %v732 = vpack.c.b16 %v710, %v709
      %v733 = vpack.c.b16 %v712, %v711
      %v734 = vpack.c.b16 %v714, %v713
      %v735 = vpack.c.b16 %v716, %v715
      %v736 = vpack.c.b16 %v718, %v717
      %v737 = vpack.c.b16 %v720, %v719
      %v738 = vpack.c.b16 %v722, %v721
      %v740 = vunpack.c.l.b16 %v690
      %v741 = vpack.c.b16 %v740, %v740
      %v742 = vrot.slane %v741, 2
      %vm743 = vcmask 31744
      %v745 = vsel %vm743, %v723, 0
      %v748 = vsel %vm743, %v724, 0
      %v751 = vsel %vm743, %v725, 0
      %v754 = vsel %vm743, %v726, 0
      %v757 = vsel %vm743, %v727, 0
      %v760 = vsel %vm743, %v728, 0
      %v763 = vsel %vm743, %v729, 0
      %v766 = vsel %vm743, %v730, 0
      %v769 = vsel %vm743, %v731, 0
      %v772 = vsel %vm743, %v732, 0
      %v775 = vsel %vm743, %v733, 0
      %v778 = vsel %vm743, %v734, 0
      %v781 = vsel %vm743, %v735, 0
      %v784 = vsel %vm743, %v736, 0
      %v787 = vsel %vm743, %v737, 0
      %v790 = vsel %vm743, %v738, 0
      %vm792 = vcmask 1041408
      %v794 = vsel %vm792, %v742, 0
      %796 = vmatprep.subr.bf16.mxu0 0
      %797 = vmatpush1.bf16.msra.mxu0 %v794
      %798 = vmatprep.subr.bf16.mxu0 0
      %799 = vmatpush1.bf16.msra.mxu0 0
      %800 = vmatprep.subr.bf16.mxu0 0
      %801 = vmatpush1.bf16.msra.mxu0 0
      %802 = vmatprep.subr.bf16.mxu0 0
      %803 = vmatpush1.bf16.msra.mxu0 0
      %804 = vmatprep.subr.bf16.mxu0 0
      %805 = vmatpush1.bf16.msra.mxu0 0
      %806 = vmatprep.subr.bf16.mxu0 0
      %807 = vmatpush1.bf16.msra.mxu0 0
      %808 = vmatprep.subr.bf16.mxu0 0
      %809 = vmatpush1.bf16.msra.mxu0 0
      %810 = vmatprep.subr.bf16.mxu0 0
      %811 = vmatpush1.bf16.msra.mxu0 0
      %812 = vmatprep.subr.bf16.mxu0 0
      %813 = vmatpush1.bf16.msra.mxu0 0
      %814 = vmatprep.subr.bf16.mxu0 0
      %815 = vmatpush1.bf16.msra.mxu0 0
      %816 = vmatprep.subr.bf16.mxu0 0
      %817 = vmatpush1.bf16.msra.mxu0 0
      %818 = vmatprep.subr.bf16.mxu0 0
      %819 = vmatpush1.bf16.msra.mxu0 0
      %820 = vmatprep.subr.bf16.mxu0 0
      %821 = vmatpush1.bf16.msra.mxu0 0
      %822 = vmatprep.subr.bf16.mxu0 0
      %823 = vmatpush1.bf16.msra.mxu0 0
      %824 = vmatprep.subr.bf16.mxu0 0
      %825 = vmatpush1.bf16.msra.mxu0 0
      %826 = vmatprep.subr.bf16.mxu0 0
      %827 = vmatpush1.bf16.msra.mxu0 0
      %828 = vmatprep.mubr.bf16.mxu0 0
      %829 = vmatmul.mubr.bf16.gmra.mrb[0].mxu0 %v745
      %v830 = vpop.f32.mrb[0].mxu0
      %v831 = vadd.f32 0.0, %v830
      %v832 = vpop.f32.mrb[0].mxu0
      %v833 = vpop.f32.mrb[0].mxu0
      %v834 = vadd.f32 0.0, %v833
      %v835 = vpop.f32.mrb[0].mxu0
      %836 = vmatprep.mubr.bf16.mxu0 0
      %837 = vmatmul.mubr.bf16.gmra.mrb[0].mxu0 %v748
      %v838 = vpop.f32.mrb[0].mxu0
      %v839 = vadd.f32 0.0, %v838
      %v840 = vpop.f32.mrb[0].mxu0
      %v841 = vpop.f32.mrb[0].mxu0
      %v842 = vadd.f32 0.0, %v841
      %v843 = vpop.f32.mrb[0].mxu0
      %844 = vmatprep.mubr.bf16.mxu0 0
      %845 = vmatmul.mubr.bf16.gmra.mrb[0].mxu0 %v751
      %v846 = vpop.f32.mrb[0].mxu0
      %v847 = vadd.f32 0.0, %v846
      %v848 = vpop.f32.mrb[0].mxu0
      %v849 = vpop.f32.mrb[0].mxu0
      %v850 = vadd.f32 0.0, %v849
      %v851 = vpop.f32.mrb[0].mxu0
      %852 = vmatprep.mubr.bf16.mxu0 0
      %853 = vmatmul.mubr.bf16.gmra.mrb[0].mxu0 %v754
      %v854 = vpop.f32.mrb[0].mxu0
      %v855 = vadd.f32 0.0, %v854
      %v856 = vpop.f32.mrb[0].mxu0
      %v857 = vpop.f32.mrb[0].mxu0
      %v858 = vadd.f32 0.0, %v857
      %v859 = vpop.f32.mrb[0].mxu0
      %860 = vmatprep.mubr.bf16.mxu0 0
      %861 = vmatmul.mubr.bf16.gmra.mrb[0].mxu0 %v757
      %v862 = vpop.f32.mrb[0].mxu0
      %v863 = vadd.f32 0.0, %v862
      %v864 = vpop.f32.mrb[0].mxu0
      %v865 = vpop.f32.mrb[0].mxu0
      %v866 = vadd.f32 0.0, %v865
      %v867 = vpop.f32.mrb[0].mxu0
      %868 = vmatprep.mubr.bf16.mxu0 0
      %869 = vmatmul.mubr.bf16.gmra.mrb[0].mxu0 %v760
      %v870 = vpop.f32.mrb[0].mxu0
      %v871 = vadd.f32 0.0, %v870
      %v872 = vpop.f32.mrb[0].mxu0
      %v873 = vpop.f32.mrb[0].mxu0
      %v874 = vadd.f32 0.0, %v873
      %v875 = vpop.f32.mrb[0].mxu0
      %876 = vmatprep.mubr.bf16.mxu0 0
      %877 = vmatmul.mubr.bf16.gmra.mrb[0].mxu0 %v763
      %v878 = vpop.f32.mrb[0].mxu0
      %v879 = vadd.f32 0.0, %v878
      %v880 = vpop.f32.mrb[0].mxu0
      %v881 = vpop.f32.mrb[0].mxu0
      %v882 = vadd.f32 0.0, %v881
      %v883 = vpop.f32.mrb[0].mxu0
      %884 = vmatprep.mubr.bf16.mxu0 0
      %885 = vmatmul.mubr.bf16.gmra.mrb[0].mxu0 %v766
      %v886 = vpop.f32.mrb[0].mxu0
      %v887 = vadd.f32 0.0, %v886
      %v888 = vpop.f32.mrb[0].mxu0
      %v889 = vpop.f32.mrb[0].mxu0
      %v890 = vadd.f32 0.0, %v889
      %v891 = vpop.f32.mrb[0].mxu0
      %892 = vmatprep.mubr.bf16.mxu0 0
      %893 = vmatmul.mubr.bf16.gmra.mrb[0].mxu0 %v769
      %v894 = vpop.f32.mrb[0].mxu0
      %v895 = vadd.f32 0.0, %v894
      %v896 = vpop.f32.mrb[0].mxu0
      %v897 = vpop.f32.mrb[0].mxu0
      %v898 = vadd.f32 0.0, %v897
      %v899 = vpop.f32.mrb[0].mxu0
      %900 = vmatprep.mubr.bf16.mxu0 0
      %901 = vmatmul.mubr.bf16.gmra.mrb[0].mxu0 %v772
      %v902 = vpop.f32.mrb[0].mxu0
      %v903 = vadd.f32 0.0, %v902
      %v904 = vpop.f32.mrb[0].mxu0
      %v905 = vpop.f32.mrb[0].mxu0
      %v906 = vadd.f32 0.0, %v905
      %v907 = vpop.f32.mrb[0].mxu0
      %908 = vmatprep.mubr.bf16.mxu0 0
      %909 = vmatmul.mubr.bf16.gmra.mrb[0].mxu0 %v775
      %v910 = vpop.f32.mrb[0].mxu0
      %v911 = vadd.f32 0.0, %v910
      %v912 = vpop.f32.mrb[0].mxu0
      %v913 = vpop.f32.mrb[0].mxu0
      %v914 = vadd.f32 0.0, %v913
      %v915 = vpop.f32.mrb[0].mxu0
      %916 = vmatprep.mubr.bf16.mxu0 0
      %917 = vmatmul.mubr.bf16.gmra.mrb[0].mxu0 %v778
      %v918 = vpop.f32.mrb[0].mxu0
      %v919 = vadd.f32 0.0, %v918
      %v920 = vpop.f32.mrb[0].mxu0
      %v921 = vpop.f32.mrb[0].mxu0
      %v922 = vadd.f32 0.0, %v921
      %v923 = vpop.f32.mrb[0].mxu0
      %924 = vmatprep.mubr.bf16.mxu0 0
      %925 = vmatmul.mubr.bf16.gmra.mrb[0].mxu0 %v781
      %v926 = vpop.f32.mrb[0].mxu0
      %v927 = vadd.f32 0.0, %v926
      %v928 = vpop.f32.mrb[0].mxu0
      %v929 = vpop.f32.mrb[0].mxu0
      %v930 = vadd.f32 0.0, %v929
      %v931 = vpop.f32.mrb[0].mxu0
      %932 = vmatprep.mubr.bf16.mxu0 0
      %933 = vmatmul.mubr.bf16.gmra.mrb[0].mxu0 %v784
      %v934 = vpop.f32.mrb[0].mxu0
      %v935 = vadd.f32 0.0, %v934
      %v936 = vpop.f32.mrb[0].mxu0
      %v937 = vpop.f32.mrb[0].mxu0
      %v938 = vadd.f32 0.0, %v937
      %v939 = vpop.f32.mrb[0].mxu0
      %940 = vmatprep.mubr.bf16.mxu0 0
      %941 = vmatmul.mubr.bf16.gmra.mrb[0].mxu0 %v787
      %v942 = vpop.f32.mrb[0].mxu0
      %v943 = vadd.f32 0.0, %v942
      %v944 = vpop.f32.mrb[0].mxu0
      %v945 = vpop.f32.mrb[0].mxu0
      %v946 = vadd.f32 0.0, %v945
      %v947 = vpop.f32.mrb[0].mxu0
      %948 = vmatprep.mubr.bf16.mxu0 0
      %949 = vmatmul.mubr.bf16.gmra.mrb[0].mxu0 %v790
      %v950 = vpop.f32.mrb[0].mxu0
      %v951 = vadd.f32 0.0, %v950
      %v952 = vpop.f32.mrb[0].mxu0
      %v953 = vpop.f32.mrb[0].mxu0
      %v954 = vadd.f32 0.0, %v953
      %v955 = vpop.f32.mrb[0].mxu0
      %956 = vdwg.mxu0
      %v989 = vunpack.c.l.b16 %v254
      %v990 = vunpack.c.l.b16 %v255
      %v991 = vunpack.c.l.b16 %v256
      %v992 = vunpack.c.l.b16 %v257
      %v993 = vunpack.c.l.b16 %v258
      %v994 = vunpack.c.l.b16 %v259
      %v995 = vunpack.c.l.b16 %v260
      %v996 = vunpack.c.l.b16 %v261
      %v997 = vunpack.c.l.b16 %v262
      %v998 = vunpack.c.l.b16 %v263
      %v999 = vunpack.c.l.b16 %v264
      %v1000 = vunpack.c.l.b16 %v265
      %v1001 = vunpack.c.l.b16 %v266
      %v1002 = vunpack.c.l.b16 %v267
      %v1003 = vunpack.c.l.b16 %v268
      %v1004 = vunpack.c.l.b16 %v269
      %v1005 = vunpack.c.l.b16 %v270
      %v1006 = vunpack.c.l.b16 %v271
      %v1007 = vunpack.c.l.b16 %v272
      %v1008 = vunpack.c.l.b16 %v273
      %v1009 = vunpack.c.l.b16 %v274
      %v1010 = vunpack.c.l.b16 %v275
      %v1011 = vunpack.c.l.b16 %v276
      %v1012 = vunpack.c.l.b16 %v277
      %v1013 = vunpack.c.l.b16 %v278
      %v1014 = vunpack.c.l.b16 %v279
      %v1015 = vunpack.c.l.b16 %v280
      %v1016 = vunpack.c.l.b16 %v281
      %v1017 = vunpack.c.l.b16 %v282
      %v1018 = vunpack.c.l.b16 %v283
      %v1019 = vunpack.c.l.b16 %v284
      %v1020 = vunpack.c.l.b16 %v285
      %v1021 = vpack.c.b16 %v990, %v989
      %v1022 = vpack.c.b16 %v992, %v991
      %v1023 = vpack.c.b16 %v994, %v993
      %v1024 = vpack.c.b16 %v996, %v995
      %v1025 = vpack.c.b16 %v998, %v997
      %v1026 = vpack.c.b16 %v1000, %v999
      %v1027 = vpack.c.b16 %v1002, %v1001
      %v1028 = vpack.c.b16 %v1004, %v1003
      %v1029 = vpack.c.b16 %v1006, %v1005
      %v1030 = vpack.c.b16 %v1008, %v1007
      %v1031 = vpack.c.b16 %v1010, %v1009
      %v1032 = vpack.c.b16 %v1012, %v1011
      %v1033 = vpack.c.b16 %v1014, %v1013
      %v1034 = vpack.c.b16 %v1016, %v1015
      %v1035 = vpack.c.b16 %v1018, %v1017
      %v1036 = vpack.c.b16 %v1020, %v1019
      %v1038 = vsel %vm743, %v1021, 0
      %v1041 = vsel %vm743, %v1022, 0
      %v1044 = vsel %vm743, %v1023, 0
      %v1047 = vsel %vm743, %v1024, 0
      %v1050 = vsel %vm743, %v1025, 0
      %v1053 = vsel %vm743, %v1026, 0
      %v1056 = vsel %vm743, %v1027, 0
      %v1059 = vsel %vm743, %v1028, 0
      %v1062 = vsel %vm743, %v1029, 0
      %v1065 = vsel %vm743, %v1030, 0
      %v1068 = vsel %vm743, %v1031, 0
      %v1071 = vsel %vm743, %v1032, 0
      %v1074 = vsel %vm743, %v1033, 0
      %v1077 = vsel %vm743, %v1034, 0
      %v1080 = vsel %vm743, %v1035, 0
      %v1083 = vsel %vm743, %v1036, 0
      %v1086 = vsel %vm792, %v286, 0
      %1088 = vmatprep.subr.bf16.mxu0 0
      %1089 = vmatpush1.bf16.msra.mxu0 %v1086
      %1090 = vmatprep.subr.bf16.mxu0 0
      %1091 = vmatpush1.bf16.msra.mxu0 0
      %1092 = vmatprep.subr.bf16.mxu0 0
      %1093 = vmatpush1.bf16.msra.mxu0 0
      %1094 = vmatprep.subr.bf16.mxu0 0
      %1095 = vmatpush1.bf16.msra.mxu0 0
      %1096 = vmatprep.subr.bf16.mxu0 0
      %1097 = vmatpush1.bf16.msra.mxu0 0
      %1098 = vmatprep.subr.bf16.mxu0 0
      %1099 = vmatpush1.bf16.msra.mxu0 0
      %1100 = vmatprep.subr.bf16.mxu0 0
      %1101 = vmatpush1.bf16.msra.mxu0 0
      %1102 = vmatprep.subr.bf16.mxu0 0
      %1103 = vmatpush1.bf16.msra.mxu0 0
      %1104 = vmatprep.subr.bf16.mxu0 0
      %1105 = vmatpush1.bf16.msra.mxu0 0
      %1106 = vmatprep.subr.bf16.mxu0 0
      %1107 = vmatpush1.bf16.msra.mxu0 0
      %1108 = vmatprep.subr.bf16.mxu0 0
      %1109 = vmatpush1.bf16.msra.mxu0 0
      %1110 = vmatprep.subr.bf16.mxu0 0
      %1111 = vmatpush1.bf16.msra.mxu0 0
      %1112 = vmatprep.subr.bf16.mxu0 0
      %1113 = vmatpush1.bf16.msra.mxu0 0
      %1114 = vmatprep.subr.bf16.mxu0 0
      %1115 = vmatpush1.bf16.msra.mxu0 0
      %1116 = vmatprep.subr.bf16.mxu0 0
      %1117 = vmatpush1.bf16.msra.mxu0 0
      %1118 = vmatprep.subr.bf16.mxu0 0
      %1119 = vmatpush1.bf16.msra.mxu0 0
      %1120 = vmatprep.mubr.bf16.mxu0 0
      %1121 = vmatmul.mubr.bf16.gmra.mrb[0].mxu0 %v1038
      %v1122 = vpop.f32.mrb[0].mxu0
      %v1123 = vadd.f32 %v831, %v1122
      %v1124 = vpop.f32.mrb[0].mxu0
      %v1125 = vpop.f32.mrb[0].mxu0
      %v1126 = vadd.f32 %v834, %v1125
      %v1127 = vpop.f32.mrb[0].mxu0
      %1128 = vmatprep.mubr.bf16.mxu0 0
      %1129 = vmatmul.mubr.bf16.gmra.mrb[0].mxu0 %v1041
      %v1130 = vpop.f32.mrb[0].mxu0
      %v1131 = vadd.f32 %v839, %v1130
      %v1132 = vpop.f32.mrb[0].mxu0
      %v1133 = vpop.f32.mrb[0].mxu0
      %v1134 = vadd.f32 %v842, %v1133
      %v1135 = vpop.f32.mrb[0].mxu0
      %1136 = vmatprep.mubr.bf16.mxu0 0
      %1137 = vmatmul.mubr.bf16.gmra.mrb[0].mxu0 %v1044
      %v1138 = vpop.f32.mrb[0].mxu0
      %v1139 = vadd.f32 %v847, %v1138
      %v1140 = vpop.f32.mrb[0].mxu0
      %v1141 = vpop.f32.mrb[0].mxu0
      %v1142 = vadd.f32 %v850, %v1141
      %v1143 = vpop.f32.mrb[0].mxu0
      %1144 = vmatprep.mubr.bf16.mxu0 0
      %1145 = vmatmul.mubr.bf16.gmra.mrb[0].mxu0 %v1047
      %v1146 = vpop.f32.mrb[0].mxu0
      %v1147 = vadd.f32 %v855, %v1146
      %v1148 = vpop.f32.mrb[0].mxu0
      %v1149 = vpop.f32.mrb[0].mxu0
      %v1150 = vadd.f32 %v858, %v1149
      %v1151 = vpop.f32.mrb[0].mxu0
      %1152 = vmatprep.mubr.bf16.mxu0 0
      %1153 = vmatmul.mubr.bf16.gmra.mrb[0].mxu0 %v1050
      %v1154 = vpop.f32.mrb[0].mxu0
      %v1155 = vadd.f32 %v863, %v1154
      %v1156 = vpop.f32.mrb[0].mxu0
      %v1157 = vpop.f32.mrb[0].mxu0
      %v1158 = vadd.f32 %v866, %v1157
      %v1159 = vpop.f32.mrb[0].mxu0
      %1160 = vmatprep.mubr.bf16.mxu0 0
      %1161 = vmatmul.mubr.bf16.gmra.mrb[0].mxu0 %v1053
      %v1162 = vpop.f32.mrb[0].mxu0
      %v1163 = vadd.f32 %v871, %v1162
      %v1164 = vpop.f32.mrb[0].mxu0
      %v1165 = vpop.f32.mrb[0].mxu0
      %v1166 = vadd.f32 %v874, %v1165
      %v1167 = vpop.f32.mrb[0].mxu0
      %1168 = vmatprep.mubr.bf16.mxu0 0
      %1169 = vmatmul.mubr.bf16.gmra.mrb[0].mxu0 %v1056
      %v1170 = vpop.f32.mrb[0].mxu0
      %v1171 = vadd.f32 %v879, %v1170
      %v1172 = vpop.f32.mrb[0].mxu0
      %v1173 = vpop.f32.mrb[0].mxu0
      %v1174 = vadd.f32 %v882, %v1173
      %v1175 = vpop.f32.mrb[0].mxu0
      %1176 = vmatprep.mubr.bf16.mxu0 0
      %1177 = vmatmul.mubr.bf16.gmra.mrb[0].mxu0 %v1059
      %v1178 = vpop.f32.mrb[0].mxu0
      %v1179 = vadd.f32 %v887, %v1178
      %v1180 = vpop.f32.mrb[0].mxu0
      %v1181 = vpop.f32.mrb[0].mxu0
      %v1182 = vadd.f32 %v890, %v1181
      %v1183 = vpop.f32.mrb[0].mxu0
      %1184 = vmatprep.mubr.bf16.mxu0 0
      %1185 = vmatmul.mubr.bf16.gmra.mrb[0].mxu0 %v1062
      %v1186 = vpop.f32.mrb[0].mxu0
      %v1187 = vadd.f32 %v895, %v1186
      %v1188 = vpop.f32.mrb[0].mxu0
      %v1189 = vpop.f32.mrb[0].mxu0
      %v1190 = vadd.f32 %v898, %v1189
      %v1191 = vpop.f32.mrb[0].mxu0
      %1192 = vmatprep.mubr.bf16.mxu0 0
      %1193 = vmatmul.mubr.bf16.gmra.mrb[0].mxu0 %v1065
      %v1194 = vpop.f32.mrb[0].mxu0
      %v1195 = vadd.f32 %v903, %v1194
      %v1196 = vpop.f32.mrb[0].mxu0
      %v1197 = vpop.f32.mrb[0].mxu0
      %v1198 = vadd.f32 %v906, %v1197
      %v1199 = vpop.f32.mrb[0].mxu0
      %1200 = vmatprep.mubr.bf16.mxu0 0
      %1201 = vmatmul.mubr.bf16.gmra.mrb[0].mxu0 %v1068
      %v1202 = vpop.f32.mrb[0].mxu0
      %v1203 = vadd.f32 %v911, %v1202
      %v1204 = vpop.f32.mrb[0].mxu0
      %v1205 = vpop.f32.mrb[0].mxu0
      %v1206 = vadd.f32 %v914, %v1205
      %v1207 = vpop.f32.mrb[0].mxu0
      %1208 = vmatprep.mubr.bf16.mxu0 0
      %1209 = vmatmul.mubr.bf16.gmra.mrb[0].mxu0 %v1071
      %v1210 = vpop.f32.mrb[0].mxu0
      %v1211 = vadd.f32 %v919, %v1210
      %v1212 = vpop.f32.mrb[0].mxu0
      %v1213 = vpop.f32.mrb[0].mxu0
      %v1214 = vadd.f32 %v922, %v1213
      %v1215 = vpop.f32.mrb[0].mxu0
      %1216 = vmatprep.mubr.bf16.mxu0 0
      %1217 = vmatmul.mubr.bf16.gmra.mrb[0].mxu0 %v1074
      %v1218 = vpop.f32.mrb[0].mxu0
      %v1219 = vadd.f32 %v927, %v1218
      %v1220 = vpop.f32.mrb[0].mxu0
      %v1221 = vpop.f32.mrb[0].mxu0
      %v1222 = vadd.f32 %v930, %v1221
      %v1223 = vpop.f32.mrb[0].mxu0
      %1224 = vmatprep.mubr.bf16.mxu0 0
      %1225 = vmatmul.mubr.bf16.gmra.mrb[0].mxu0 %v1077
      %v1226 = vpop.f32.mrb[0].mxu0
      %v1227 = vadd.f32 %v935, %v1226
      %v1228 = vpop.f32.mrb[0].mxu0
      %v1229 = vpop.f32.mrb[0].mxu0
      %v1230 = vadd.f32 %v938, %v1229
      %v1231 = vpop.f32.mrb[0].mxu0
      %1232 = vmatprep.mubr.bf16.mxu0 0
      %1233 = vmatmul.mubr.bf16.gmra.mrb[0].mxu0 %v1080
      %v1234 = vpop.f32.mrb[0].mxu0
      %v1235 = vadd.f32 %v943, %v1234
      %v1236 = vpop.f32.mrb[0].mxu0
      %v1237 = vpop.f32.mrb[0].mxu0
      %v1238 = vadd.f32 %v946, %v1237
      %v1239 = vpop.f32.mrb[0].mxu0
      %1240 = vmatprep.mubr.bf16.mxu0 0
      %1241 = vmatmul.mubr.bf16.gmra.mrb[0].mxu0 %v1083
      %v1242 = vpop.f32.mrb[0].mxu0
      %v1243 = vadd.f32 %v951, %v1242
      %v1244 = vpop.f32.mrb[0].mxu0
      %v1245 = vpop.f32.mrb[0].mxu0
      %v1246 = vadd.f32 %v954, %v1245
      %v1247 = vpop.f32.mrb[0].mxu0
      %1248 = vdwg.mxu0
      %v1249 = vld [vmem:[%s233] sm:$0xe]
      %v1250 = vld [vmem:[%s233 + $0xc] sm:$0xe]
      %v1251 = vld [vmem:[%s233 + $0x18] sm:$0xe]
      %v1252 = vld [vmem:[%s233 + $0x24] sm:$0xe]
      %v1253 = vld [vmem:[%s233 + $0x30] sm:$0xe]
      %v1254 = vld [vmem:[%s233 + $0x3c] sm:$0xe]
      %v1255 = vld [vmem:[%s233 + $0x48] sm:$0xe]
      %v1256 = vld [vmem:[%s233 + $0x54] sm:$0xe]
      %v1257 = vld [vmem:[%s233 + $0x60] sm:$0xe]
      %v1258 = vld [vmem:[%s233 + $0x6c] sm:$0xe]
      %v1259 = vld [vmem:[%s233 + $0x78] sm:$0xe]
      %v1260 = vld [vmem:[%s233 + $0x84] sm:$0xe]
      %v1261 = vld [vmem:[%s233 + $0x90] sm:$0xe]
      %v1262 = vld [vmem:[%s233 + $0x9c] sm:$0xe]
      %v1263 = vld [vmem:[%s233 + $0xa8] sm:$0xe]
      %v1264 = vld [vmem:[%s233 + $0xb4] sm:$0xe]
      %vm1297 = vcmask 1042432
      %vm1298 = vcmask 1046532
      %vm1299 = vmor %vm1297, %vm1298
      %v1300 = vrot.slane %v1249, 5
      %v1301 = vrot.slane %v1300, 4
      %v1302 = vrot.slane %v255, 5
      %v1303 = vsel %vm1299, %v1301, %v1302
      %v1304 = vrot.slane %v1302, 4
      %v1305 = vrot.slane %v287, 5
      %v1306 = vsel %vm1299, %v1304, %v1305
      %v1307 = vrot.slane %v1250, 5
      %v1308 = vrot.slane %v1307, 4
      %v1309 = vrot.slane %v257, 5
      %v1310 = vsel %vm1299, %v1308, %v1309
      %v1311 = vrot.slane %v1309, 4
      %v1312 = vrot.slane %v288, 5
      %v1313 = vsel %vm1299, %v1311, %v1312
      %v1314 = vrot.slane %v1251, 5
      %v1315 = vrot.slane %v1314, 4
      %v1316 = vrot.slane %v259, 5
      %v1317 = vsel %vm1299, %v1315, %v1316
      %v1318 = vrot.slane %v1316, 4
      %v1319 = vrot.slane %v289, 5
      %v1320 = vsel %vm1299, %v1318, %v1319
      %v1321 = vrot.slane %v1252, 5
      %v1322 = vrot.slane %v1321, 4
      %v1323 = vrot.slane %v261, 5
      %v1324 = vsel %vm1299, %v1322, %v1323
      %v1325 = vrot.slane %v1323, 4
      %v1326 = vrot.slane %v290, 5
      %v1327 = vsel %vm1299, %v1325, %v1326
      %v1328 = vrot.slane %v1253, 5
      %v1329 = vrot.slane %v1328, 4
      %v1330 = vrot.slane %v263, 5
      %v1331 = vsel %vm1299, %v1329, %v1330
      %v1332 = vrot.slane %v1330, 4
      %v1333 = vrot.slane %v291, 5
      %v1334 = vsel %vm1299, %v1332, %v1333
      %v1335 = vrot.slane %v1254, 5
      %v1336 = vrot.slane %v1335, 4
      %v1337 = vrot.slane %v265, 5
      %v1338 = vsel %vm1299, %v1336, %v1337
      %v1339 = vrot.slane %v1337, 4
      %v1340 = vrot.slane %v292, 5
      %v1341 = vsel %vm1299, %v1339, %v1340
      %v1342 = vrot.slane %v1255, 5
      %v1343 = vrot.slane %v1342, 4
      %v1344 = vrot.slane %v267, 5
      %v1345 = vsel %vm1299, %v1343, %v1344
      %v1346 = vrot.slane %v1344, 4
      %v1347 = vrot.slane %v293, 5
      %v1348 = vsel %vm1299, %v1346, %v1347
      %v1349 = vrot.slane %v1256, 5
      %v1350 = vrot.slane %v1349, 4
      %v1351 = vrot.slane %v269, 5
      %v1352 = vsel %vm1299, %v1350, %v1351
      %v1353 = vrot.slane %v1351, 4
      %v1354 = vrot.slane %v294, 5
      %v1355 = vsel %vm1299, %v1353, %v1354
      %v1356 = vrot.slane %v1257, 5
      %v1357 = vrot.slane %v1356, 4
      %v1358 = vrot.slane %v271, 5
      %v1359 = vsel %vm1299, %v1357, %v1358
      %v1360 = vrot.slane %v1358, 4
      %v1361 = vrot.slane %v295, 5
      %v1362 = vsel %vm1299, %v1360, %v1361
      %v1363 = vrot.slane %v1258, 5
      %v1364 = vrot.slane %v1363, 4
      %v1365 = vrot.slane %v273, 5
      %v1366 = vsel %vm1299, %v1364, %v1365
      %v1367 = vrot.slane %v1365, 4
      %v1368 = vrot.slane %v296, 5
      %v1369 = vsel %vm1299, %v1367, %v1368
      %v1370 = vrot.slane %v1259, 5
      %v1371 = vrot.slane %v1370, 4
      %v1372 = vrot.slane %v275, 5
      %v1373 = vsel %vm1299, %v1371, %v1372
      %v1374 = vrot.slane %v1372, 4
      %v1375 = vrot.slane %v297, 5
      %v1376 = vsel %vm1299, %v1374, %v1375
      %v1377 = vrot.slane %v1260, 5
      %v1378 = vrot.slane %v1377, 4
      %v1379 = vrot.slane %v277, 5
      %v1380 = vsel %vm1299, %v1378, %v1379
      %v1381 = vrot.slane %v1379, 4
      %v1382 = vrot.slane %v298, 5
      %v1383 = vsel %vm1299, %v1381, %v1382
      %v1384 = vrot.slane %v1261, 5
      %v1385 = vrot.slane %v1384, 4
      %v1386 = vrot.slane %v279, 5
      %v1387 = vsel %vm1299, %v1385, %v1386
      %v1388 = vrot.slane %v1386, 4
      %v1389 = vrot.slane %v299, 5
      %v1390 = vsel %vm1299, %v1388, %v1389
      %v1391 = vrot.slane %v1262, 5
      %v1392 = vrot.slane %v1391, 4
      %v1393 = vrot.slane %v281, 5
      %v1394 = vsel %vm1299, %v1392, %v1393
      %v1395 = vrot.slane %v1393, 4
      %v1396 = vrot.slane %v300, 5
      %v1397 = vsel %vm1299, %v1395, %v1396
      %v1398 = vrot.slane %v1263, 5
      %v1399 = vrot.slane %v1398, 4
      %v1400 = vrot.slane %v283, 5
      %v1401 = vsel %vm1299, %v1399, %v1400
      %v1402 = vrot.slane %v1400, 4
      %v1403 = vrot.slane %v301, 5
      %v1404 = vsel %vm1299, %v1402, %v1403
      %v1405 = vrot.slane %v1264, 5
      %v1406 = vrot.slane %v1405, 4
      %v1407 = vrot.slane %v285, 5
      %v1408 = vsel %vm1299, %v1406, %v1407
      %v1409 = vrot.slane %v1407, 4
      %v1410 = vrot.slane %v302, 5
      %v1411 = vsel %vm1299, %v1409, %v1410
      %v1412 = vld [vmem:[%s237 + $0x4] sm:$0x3]
      %v1413 = vunpack.c.l.b16 %v1303
      %v1414 = vunpack.c.l.b16 %v1306
      %v1415 = vunpack.c.l.b16 %v1310
      %v1416 = vunpack.c.l.b16 %v1313
      %v1417 = vunpack.c.l.b16 %v1317
      %v1418 = vunpack.c.l.b16 %v1320
      %v1419 = vunpack.c.l.b16 %v1324
      %v1420 = vunpack.c.l.b16 %v1327
      %v1421 = vunpack.c.l.b16 %v1331
      %v1422 = vunpack.c.l.b16 %v1334
      %v1423 = vunpack.c.l.b16 %v1338
      %v1424 = vunpack.c.l.b16 %v1341
      %v1425 = vunpack.c.l.b16 %v1345
      %v1426 = vunpack.c.l.b16 %v1348
      %v1427 = vunpack.c.l.b16 %v1352
      %v1428 = vunpack.c.l.b16 %v1355
      %v1429 = vunpack.c.l.b16 %v1359
      %v1430 = vunpack.c.l.b16 %v1362
      %v1431 = vunpack.c.l.b16 %v1366
      %v1432 = vunpack.c.l.b16 %v1369
      %v1433 = vunpack.c.l.b16 %v1373
      %v1434 = vunpack.c.l.b16 %v1376
      %v1435 = vunpack.c.l.b16 %v1380
      %v1436 = vunpack.c.l.b16 %v1383
      %v1437 = vunpack.c.l.b16 %v1387
      %v1438 = vunpack.c.l.b16 %v1390
      %v1439 = vunpack.c.l.b16 %v1394
      %v1440 = vunpack.c.l.b16 %v1397
      %v1441 = vunpack.c.l.b16 %v1401
      %v1442 = vunpack.c.l.b16 %v1404
      %v1443 = vunpack.c.l.b16 %v1408
      %v1444 = vunpack.c.l.b16 %v1411
      %v1445 = vpack.c.b16 %v1414, %v1413
      %v1446 = vpack.c.b16 %v1416, %v1415
      %v1447 = vpack.c.b16 %v1418, %v1417
      %v1448 = vpack.c.b16 %v1420, %v1419
      %v1449 = vpack.c.b16 %v1422, %v1421
      %v1450 = vpack.c.b16 %v1424, %v1423
      %v1451 = vpack.c.b16 %v1426, %v1425
      %v1452 = vpack.c.b16 %v1428, %v1427
      %v1453 = vpack.c.b16 %v1430, %v1429
      %v1454 = vpack.c.b16 %v1432, %v1431
      %v1455 = vpack.c.b16 %v1434, %v1433
      %v1456 = vpack.c.b16 %v1436, %v1435
      %v1457 = vpack.c.b16 %v1438, %v1437
      %v1458 = vpack.c.b16 %v1440, %v1439
      %v1459 = vpack.c.b16 %v1442, %v1441
      %v1460 = vpack.c.b16 %v1444, %v1443
      %v1462 = vsel %vm743, %v1445, 0
      %v1465 = vsel %vm743, %v1446, 0
      %v1468 = vsel %vm743, %v1447, 0
      %v1471 = vsel %vm743, %v1448, 0
      %v1474 = vsel %vm743, %v1449, 0
      %v1477 = vsel %vm743, %v1450, 0
      %v1480 = vsel %vm743, %v1451, 0
      %v1483 = vsel %vm743, %v1452, 0
      %v1486 = vsel %vm743, %v1453, 0
      %v1489 = vsel %vm743, %v1454, 0
      %v1492 = vsel %vm743, %v1455, 0
      %v1495 = vsel %vm743, %v1456, 0
      %v1498 = vsel %vm743, %v1457, 0
      %v1501 = vsel %vm743, %v1458, 0
      %v1504 = vsel %vm743, %v1459, 0
      %v1507 = vsel %vm743, %v1460, 0
      %v1510 = vsel %vm792, %v1412, 0
      %1512 = vmatprep.subr.bf16.mxu0 0
      %1513 = vmatpush1.bf16.msra.mxu0 %v1510
      %1514 = vmatprep.subr.bf16.mxu0 0
      %1515 = vmatpush1.bf16.msra.mxu0 0
      %1516 = vmatprep.subr.bf16.mxu0 0
      %1517 = vmatpush1.bf16.msra.mxu0 0
      %1518 = vmatprep.subr.bf16.mxu0 0
      %1519 = vmatpush1.bf16.msra.mxu0 0
      %1520 = vmatprep.subr.bf16.mxu0 0
      %1521 = vmatpush1.bf16.msra.mxu0 0
      %1522 = vmatprep.subr.bf16.mxu0 0
      %1523 = vmatpush1.bf16.msra.mxu0 0
      %1524 = vmatprep.subr.bf16.mxu0 0
      %1525 = vmatpush1.bf16.msra.mxu0 0
      %1526 = vmatprep.subr.bf16.mxu0 0
      %1527 = vmatpush1.bf16.msra.mxu0 0
      %1528 = vmatprep.subr.bf16.mxu0 0
      %1529 = vmatpush1.bf16.msra.mxu0 0
      %1530 = vmatprep.subr.bf16.mxu0 0
      %1531 = vmatpush1.bf16.msra.mxu0 0
      %1532 = vmatprep.subr.bf16.mxu0 0
      %1533 = vmatpush1.bf16.msra.mxu0 0
      %1534 = vmatprep.subr.bf16.mxu0 0
      %1535 = vmatpush1.bf16.msra.mxu0 0
      %1536 = vmatprep.subr.bf16.mxu0 0
      %1537 = vmatpush1.bf16.msra.mxu0 0
      %1538 = vmatprep.subr.bf16.mxu0 0
      %1539 = vmatpush1.bf16.msra.mxu0 0
      %1540 = vmatprep.subr.bf16.mxu0 0
      %1541 = vmatpush1.bf16.msra.mxu0 0
      %1542 = vmatprep.subr.bf16.mxu0 0
      %1543 = vmatpush1.bf16.msra.mxu0 0
      %1544 = vmatprep.mubr.bf16.mxu0 0
      %1545 = vmatmul.mubr.bf16.gmra.mrb[0].mxu0 %v1462
      %v1546 = vpop.f32.mrb[0].mxu0
      %v1547 = vadd.f32 0.0, %v1546
      %v1548 = vpop.f32.mrb[0].mxu0
      %v1549 = vpop.f32.mrb[0].mxu0
      %v1550 = vadd.f32 0.0, %v1549
      %v1551 = vpop.f32.mrb[0].mxu0
      %1552 = vmatprep.mubr.bf16.mxu0 0
      %1553 = vmatmul.mubr.bf16.gmra.mrb[0].mxu0 %v1465
      %v1554 = vpop.f32.mrb[0].mxu0
      %v1555 = vadd.f32 0.0, %v1554
      %v1556 = vpop.f32.mrb[0].mxu0
      %v1557 = vpop.f32.mrb[0].mxu0
      %v1558 = vadd.f32 0.0, %v1557
      %v1559 = vpop.f32.mrb[0].mxu0
      %1560 = vmatprep.mubr.bf16.mxu0 0
      %1561 = vmatmul.mubr.bf16.gmra.mrb[0].mxu0 %v1468
      %v1562 = vpop.f32.mrb[0].mxu0
      %v1563 = vadd.f32 0.0, %v1562
      %v1564 = vpop.f32.mrb[0].mxu0
      %v1565 = vpop.f32.mrb[0].mxu0
      %v1566 = vadd.f32 0.0, %v1565
      %v1567 = vpop.f32.mrb[0].mxu0
      %1568 = vmatprep.mubr.bf16.mxu0 0
      %1569 = vmatmul.mubr.bf16.gmra.mrb[0].mxu0 %v1471
      %v1570 = vpop.f32.mrb[0].mxu0
      %v1571 = vadd.f32 0.0, %v1570
      %v1572 = vpop.f32.mrb[0].mxu0
      %v1573 = vpop.f32.mrb[0].mxu0
      %v1574 = vadd.f32 0.0, %v1573
      %v1575 = vpop.f32.mrb[0].mxu0
      %1576 = vmatprep.mubr.bf16.mxu0 0
      %1577 = vmatmul.mubr.bf16.gmra.mrb[0].mxu0 %v1474
      %v1578 = vpop.f32.mrb[0].mxu0
      %v1579 = vadd.f32 0.0, %v1578
      %v1580 = vpop.f32.mrb[0].mxu0
      %v1581 = vpop.f32.mrb[0].mxu0
      %v1582 = vadd.f32 0.0, %v1581
      %v1583 = vpop.f32.mrb[0].mxu0
      %1584 = vmatprep.mubr.bf16.mxu0 0
      %1585 = vmatmul.mubr.bf16.gmra.mrb[0].mxu0 %v1477
      %v1586 = vpop.f32.mrb[0].mxu0
      %v1587 = vadd.f32 0.0, %v1586
      %v1588 = vpop.f32.mrb[0].mxu0
      %v1589 = vpop.f32.mrb[0].mxu0
      %v1590 = vadd.f32 0.0, %v1589
      %v1591 = vpop.f32.mrb[0].mxu0
      %1592 = vmatprep.mubr.bf16.mxu0 0
      %1593 = vmatmul.mubr.bf16.gmra.mrb[0].mxu0 %v1480
      %v1594 = vpop.f32.mrb[0].mxu0
      %v1595 = vadd.f32 0.0, %v1594
      %v1596 = vpop.f32.mrb[0].mxu0
      %v1597 = vpop.f32.mrb[0].mxu0
      %v1598 = vadd.f32 0.0, %v1597
      %v1599 = vpop.f32.mrb[0].mxu0
      %1600 = vmatprep.mubr.bf16.mxu0 0
      %1601 = vmatmul.mubr.bf16.gmra.mrb[0].mxu0 %v1483
      %v1602 = vpop.f32.mrb[0].mxu0
      %v1603 = vadd.f32 0.0, %v1602
      %v1604 = vpop.f32.mrb[0].mxu0
      %v1605 = vpop.f32.mrb[0].mxu0
      %v1606 = vadd.f32 0.0, %v1605
      %v1607 = vpop.f32.mrb[0].mxu0
      %1608 = vmatprep.mubr.bf16.mxu0 0
      %1609 = vmatmul.mubr.bf16.gmra.mrb[0].mxu0 %v1486
      %v1610 = vpop.f32.mrb[0].mxu0
      %v1611 = vadd.f32 0.0, %v1610
      %v1612 = vpop.f32.mrb[0].mxu0
      %v1613 = vpop.f32.mrb[0].mxu0
      %v1614 = vadd.f32 0.0, %v1613
      %v1615 = vpop.f32.mrb[0].mxu0
      %1616 = vmatprep.mubr.bf16.mxu0 0
      %1617 = vmatmul.mubr.bf16.gmra.mrb[0].mxu0 %v1489
      %v1618 = vpop.f32.mrb[0].mxu0
      %v1619 = vadd.f32 0.0, %v1618
      %v1620 = vpop.f32.mrb[0].mxu0
      %v1621 = vpop.f32.mrb[0].mxu0
      %v1622 = vadd.f32 0.0, %v1621
      %v1623 = vpop.f32.mrb[0].mxu0
      %1624 = vmatprep.mubr.bf16.mxu0 0
      %1625 = vmatmul.mubr.bf16.gmra.mrb[0].mxu0 %v1492
      %v1626 = vpop.f32.mrb[0].mxu0
      %v1627 = vadd.f32 0.0, %v1626
      %v1628 = vpop.f32.mrb[0].mxu0
      %v1629 = vpop.f32.mrb[0].mxu0
      %v1630 = vadd.f32 0.0, %v1629
      %v1631 = vpop.f32.mrb[0].mxu0
      %1632 = vmatprep.mubr.bf16.mxu0 0
      %1633 = vmatmul.mubr.bf16.gmra.mrb[0].mxu0 %v1495
      %v1634 = vpop.f32.mrb[0].mxu0
      %v1635 = vadd.f32 0.0, %v1634
      %v1636 = vpop.f32.mrb[0].mxu0
      %v1637 = vpop.f32.mrb[0].mxu0
      %v1638 = vadd.f32 0.0, %v1637
      %v1639 = vpop.f32.mrb[0].mxu0
      %1640 = vmatprep.mubr.bf16.mxu0 0
      %1641 = vmatmul.mubr.bf16.gmra.mrb[0].mxu0 %v1498
      %v1642 = vpop.f32.mrb[0].mxu0
      %v1643 = vadd.f32 0.0, %v1642
      %v1644 = vpop.f32.mrb[0].mxu0
      %v1645 = vpop.f32.mrb[0].mxu0
      %v1646 = vadd.f32 0.0, %v1645
      %v1647 = vpop.f32.mrb[0].mxu0
      %1648 = vmatprep.mubr.bf16.mxu0 0
      %1649 = vmatmul.mubr.bf16.gmra.mrb[0].mxu0 %v1501
      %v1650 = vpop.f32.mrb[0].mxu0
      %v1651 = vadd.f32 0.0, %v1650
      %v1652 = vpop.f32.mrb[0].mxu0
      %v1653 = vpop.f32.mrb[0].mxu0
      %v1654 = vadd.f32 0.0, %v1653
      %v1655 = vpop.f32.mrb[0].mxu0
      %1656 = vmatprep.mubr.bf16.mxu0 0
      %1657 = vmatmul.mubr.bf16.gmra.mrb[0].mxu0 %v1504
      %v1658 = vpop.f32.mrb[0].mxu0
      %v1659 = vadd.f32 0.0, %v1658
      %v1660 = vpop.f32.mrb[0].mxu0
      %v1661 = vpop.f32.mrb[0].mxu0
      %v1662 = vadd.f32 0.0, %v1661
      %v1663 = vpop.f32.mrb[0].mxu0
      %1664 = vmatprep.mubr.bf16.mxu0 0
      %1665 = vmatmul.mubr.bf16.gmra.mrb[0].mxu0 %v1507
      %v1666 = vpop.f32.mrb[0].mxu0
      %v1667 = vadd.f32 0.0, %v1666
      %v1668 = vpop.f32.mrb[0].mxu0
      %v1669 = vpop.f32.mrb[0].mxu0
      %v1670 = vadd.f32 0.0, %v1669
      %v1671 = vpop.f32.mrb[0].mxu0
      %1672 = vdwg.mxu0
      %v1673 = vadd.f32 %v1123, %v1547
      %v1674 = vadd.f32 %v1126, %v1550
      %v1675 = vadd.f32 %v1131, %v1555
      %v1676 = vadd.f32 %v1134, %v1558
      %v1677 = vadd.f32 %v1139, %v1563
      %v1678 = vadd.f32 %v1142, %v1566
      %v1679 = vadd.f32 %v1147, %v1571
      %v1680 = vadd.f32 %v1150, %v1574
      %v1681 = vadd.f32 %v1155, %v1579
      %v1682 = vadd.f32 %v1158, %v1582
      %v1683 = vadd.f32 %v1163, %v1587
      %v1684 = vadd.f32 %v1166, %v1590
      %v1685 = vadd.f32 %v1171, %v1595
      %v1686 = vadd.f32 %v1174, %v1598
      %v1687 = vadd.f32 %v1179, %v1603
      %v1688 = vadd.f32 %v1182, %v1606
      %v1689 = vadd.f32 %v1187, %v1611
      %v1690 = vadd.f32 %v1190, %v1614
      %v1691 = vadd.f32 %v1195, %v1619
      %v1692 = vadd.f32 %v1198, %v1622
      %v1693 = vadd.f32 %v1203, %v1627
      %v1694 = vadd.f32 %v1206, %v1630
      %v1695 = vadd.f32 %v1211, %v1635
      %v1696 = vadd.f32 %v1214, %v1638
      %v1697 = vadd.f32 %v1219, %v1643
      %v1698 = vadd.f32 %v1222, %v1646
      %v1699 = vadd.f32 %v1227, %v1651
      %v1700 = vadd.f32 %v1230, %v1654
      %v1701 = vadd.f32 %v1235, %v1659
      %v1702 = vadd.f32 %v1238, %v1662
      %v1703 = vadd.f32 %v1243, %v1667
      %v1704 = vadd.f32 %v1246, %v1670
      %s1705 = scalar_lea.vmem %s233, 12
      %v1706 = vld [vmem:[%s1705] sm:$0xf]
      %v1707 = vld [vmem:[%s1705 + $0x4] sm:$0xf]
      %v1708 = vld [vmem:[%s1705 + $0xc] sm:$0xf]
      %v1709 = vld [vmem:[%s1705 + $0x10] sm:$0xf]
      %v1710 = vld [vmem:[%s1705 + $0x18] sm:$0xf]
      %v1711 = vld [vmem:[%s1705 + $0x1c] sm:$0xf]
      %v1712 = vld [vmem:[%s1705 + $0x24] sm:$0xf]
      %v1713 = vld [vmem:[%s1705 + $0x28] sm:$0xf]
      %v1714 = vld [vmem:[%s1705 + $0x30] sm:$0xf]
      %v1715 = vld [vmem:[%s1705 + $0x34] sm:$0xf]
      %v1716 = vld [vmem:[%s1705 + $0x3c] sm:$0xf]
      %v1717 = vld [vmem:[%s1705 + $0x40] sm:$0xf]
      %v1718 = vld [vmem:[%s1705 + $0x48] sm:$0xf]
      %v1719 = vld [vmem:[%s1705 + $0x4c] sm:$0xf]
      %v1720 = vld [vmem:[%s1705 + $0x54] sm:$0xf]
      %v1721 = vld [vmem:[%s1705 + $0x58] sm:$0xf]
      %v1722 = vld [vmem:[%s1705 + $0x60] sm:$0xf]
      %v1723 = vld [vmem:[%s1705 + $0x64] sm:$0xf]
      %v1724 = vld [vmem:[%s1705 + $0x6c] sm:$0xf]
      %v1725 = vld [vmem:[%s1705 + $0x70] sm:$0xf]
      %v1726 = vld [vmem:[%s1705 + $0x78] sm:$0xf]
      %v1727 = vld [vmem:[%s1705 + $0x7c] sm:$0xf]
      %v1728 = vld [vmem:[%s1705 + $0x84] sm:$0xf]
      %v1729 = vld [vmem:[%s1705 + $0x88] sm:$0xf]
      %v1730 = vld [vmem:[%s1705 + $0x90] sm:$0xf]
      %v1731 = vld [vmem:[%s1705 + $0x94] sm:$0xf]
      %v1732 = vld [vmem:[%s1705 + $0x9c] sm:$0xf]
      %v1733 = vld [vmem:[%s1705 + $0xa0] sm:$0xf]
      %v1734 = vld [vmem:[%s1705 + $0xa8] sm:$0xf]
      %v1735 = vld [vmem:[%s1705 + $0xac] sm:$0xf]
      %v1736 = vld [vmem:[%s1705 + $0xb4] sm:$0xf]
      %v1737 = vld [vmem:[%s1705 + $0xb8] sm:$0xf]
      %v1738 = vld [vmem:[%s237 + $0x4] sm:$0xc]
      %v1771 = vunpack.c.l.b16 %v1706
      %v1772 = vunpack.c.l.b16 %v1707
      %v1773 = vunpack.c.l.b16 %v1708
      %v1774 = vunpack.c.l.b16 %v1709
      %v1775 = vunpack.c.l.b16 %v1710
      %v1776 = vunpack.c.l.b16 %v1711
      %v1777 = vunpack.c.l.b16 %v1712
      %v1778 = vunpack.c.l.b16 %v1713
      %v1779 = vunpack.c.l.b16 %v1714
      %v1780 = vunpack.c.l.b16 %v1715
      %v1781 = vunpack.c.l.b16 %v1716
      %v1782 = vunpack.c.l.b16 %v1717
      %v1783 = vunpack.c.l.b16 %v1718
      %v1784 = vunpack.c.l.b16 %v1719
      %v1785 = vunpack.c.l.b16 %v1720
      %v1786 = vunpack.c.l.b16 %v1721
      %v1787 = vunpack.c.l.b16 %v1722
      %v1788 = vunpack.c.l.b16 %v1723
      %v1789 = vunpack.c.l.b16 %v1724
      %v1790 = vunpack.c.l.b16 %v1725
      %v1791 = vunpack.c.l.b16 %v1726
      %v1792 = vunpack.c.l.b16 %v1727
      %v1793 = vunpack.c.l.b16 %v1728
      %v1794 = vunpack.c.l.b16 %v1729
      %v1795 = vunpack.c.l.b16 %v1730
      %v1796 = vunpack.c.l.b16 %v1731
      %v1797 = vunpack.c.l.b16 %v1732
      %v1798 = vunpack.c.l.b16 %v1733
      %v1799 = vunpack.c.l.b16 %v1734
      %v1800 = vunpack.c.l.b16 %v1735
      %v1801 = vunpack.c.l.b16 %v1736
      %v1802 = vunpack.c.l.b16 %v1737
      %v1803 = vpack.c.b16 %v1772, %v1771
      %v1804 = vpack.c.b16 %v1774, %v1773
      %v1805 = vpack.c.b16 %v1776, %v1775
      %v1806 = vpack.c.b16 %v1778, %v1777
      %v1807 = vpack.c.b16 %v1780, %v1779
      %v1808 = vpack.c.b16 %v1782, %v1781
      %v1809 = vpack.c.b16 %v1784, %v1783
      %v1810 = vpack.c.b16 %v1786, %v1785
      %v1811 = vpack.c.b16 %v1788, %v1787
      %v1812 = vpack.c.b16 %v1790, %v1789
      %v1813 = vpack.c.b16 %v1792, %v1791
      %v1814 = vpack.c.b16 %v1794, %v1793
      %v1815 = vpack.c.b16 %v1796, %v1795
      %v1816 = vpack.c.b16 %v1798, %v1797
      %v1817 = vpack.c.b16 %v1800, %v1799
      %v1818 = vpack.c.b16 %v1802, %v1801
      %v1820 = vunpack.c.l.b16 %v1738
      %v1821 = vpack.c.b16 %v1820, %v1820
      %v1822 = vrot.slane %v1821, 2
      %v1824 = vsel %vm743, %v1803, 0
      %v1827 = vsel %vm743, %v1804, 0
      %v1830 = vsel %vm743, %v1805, 0
      %v1833 = vsel %vm743, %v1806, 0
      %v1836 = vsel %vm743, %v1807, 0
      %v1839 = vsel %vm743, %v1808, 0
      %v1842 = vsel %vm743, %v1809, 0
      %v1845 = vsel %vm743, %v1810, 0
      %v1848 = vsel %vm743, %v1811, 0
      %v1851 = vsel %vm743, %v1812, 0
      %v1854 = vsel %vm743, %v1813, 0
      %v1857 = vsel %vm743, %v1814, 0
      %v1860 = vsel %vm743, %v1815, 0
      %v1863 = vsel %vm743, %v1816, 0
      %v1866 = vsel %vm743, %v1817, 0
      %v1869 = vsel %vm743, %v1818, 0
      %v1872 = vsel %vm792, %v1822, 0
      %1874 = vmatprep.subr.bf16.mxu0 0
      %1875 = vmatpush1.bf16.msra.mxu0 %v1872
      %1876 = vmatprep.subr.bf16.mxu0 0
      %1877 = vmatpush1.bf16.msra.mxu0 0
      %1878 = vmatprep.subr.bf16.mxu0 0
      %1879 = vmatpush1.bf16.msra.mxu0 0
      %1880 = vmatprep.subr.bf16.mxu0 0
      %1881 = vmatpush1.bf16.msra.mxu0 0
      %1882 = vmatprep.subr.bf16.mxu0 0
      %1883 = vmatpush1.bf16.msra.mxu0 0
      %1884 = vmatprep.subr.bf16.mxu0 0
      %1885 = vmatpush1.bf16.msra.mxu0 0
      %1886 = vmatprep.subr.bf16.mxu0 0
      %1887 = vmatpush1.bf16.msra.mxu0 0
      %1888 = vmatprep.subr.bf16.mxu0 0
      %1889 = vmatpush1.bf16.msra.mxu0 0
      %1890 = vmatprep.subr.bf16.mxu0 0
      %1891 = vmatpush1.bf16.msra.mxu0 0
      %1892 = vmatprep.subr.bf16.mxu0 0
      %1893 = vmatpush1.bf16.msra.mxu0 0
      %1894 = vmatprep.subr.bf16.mxu0 0
      %1895 = vmatpush1.bf16.msra.mxu0 0
      %1896 = vmatprep.subr.bf16.mxu0 0
      %1897 = vmatpush1.bf16.msra.mxu0 0
      %1898 = vmatprep.subr.bf16.mxu0 0
      %1899 = vmatpush1.bf16.msra.mxu0 0
      %1900 = vmatprep.subr.bf16.mxu0 0
      %1901 = vmatpush1.bf16.msra.mxu0 0
      %1902 = vmatprep.subr.bf16.mxu0 0
      %1903 = vmatpush1.bf16.msra.mxu0 0
      %1904 = vmatprep.subr.bf16.mxu0 0
      %1905 = vmatpush1.bf16.msra.mxu0 0
      %1906 = vmatprep.mubr.bf16.mxu0 0
      %1907 = vmatmul.mubr.bf16.gmra.mrb[0].mxu0 %v1824
      %v1908 = vpop.f32.mrb[0].mxu0
      %v1909 = vadd.f32 0.0, %v1908
      %v1910 = vpop.f32.mrb[0].mxu0
      %v1911 = vpop.f32.mrb[0].mxu0
      %v1912 = vadd.f32 0.0, %v1911
      %v1913 = vpop.f32.mrb[0].mxu0
      %1914 = vmatprep.mubr.bf16.mxu0 0
      %1915 = vmatmul.mubr.bf16.gmra.mrb[0].mxu0 %v1827
      %v1916 = vpop.f32.mrb[0].mxu0
      %v1917 = vadd.f32 0.0, %v1916
      %v1918 = vpop.f32.mrb[0].mxu0
      %v1919 = vpop.f32.mrb[0].mxu0
      %v1920 = vadd.f32 0.0, %v1919
      %v1921 = vpop.f32.mrb[0].mxu0
      %1922 = vmatprep.mubr.bf16.mxu0 0
      %1923 = vmatmul.mubr.bf16.gmra.mrb[0].mxu0 %v1830
      %v1924 = vpop.f32.mrb[0].mxu0
      %v1925 = vadd.f32 0.0, %v1924
      %v1926 = vpop.f32.mrb[0].mxu0
      %v1927 = vpop.f32.mrb[0].mxu0
      %v1928 = vadd.f32 0.0, %v1927
      %v1929 = vpop.f32.mrb[0].mxu0
      %1930 = vmatprep.mubr.bf16.mxu0 0
      %1931 = vmatmul.mubr.bf16.gmra.mrb[0].mxu0 %v1833
      %v1932 = vpop.f32.mrb[0].mxu0
      %v1933 = vadd.f32 0.0, %v1932
      %v1934 = vpop.f32.mrb[0].mxu0
      %v1935 = vpop.f32.mrb[0].mxu0
      %v1936 = vadd.f32 0.0, %v1935
      %v1937 = vpop.f32.mrb[0].mxu0
      %1938 = vmatprep.mubr.bf16.mxu0 0
      %1939 = vmatmul.mubr.bf16.gmra.mrb[0].mxu0 %v1836
      %v1940 = vpop.f32.mrb[0].mxu0
      %v1941 = vadd.f32 0.0, %v1940
      %v1942 = vpop.f32.mrb[0].mxu0
      %v1943 = vpop.f32.mrb[0].mxu0
      %v1944 = vadd.f32 0.0, %v1943
      %v1945 = vpop.f32.mrb[0].mxu0
      %1946 = vmatprep.mubr.bf16.mxu0 0
      %1947 = vmatmul.mubr.bf16.gmra.mrb[0].mxu0 %v1839
      %v1948 = vpop.f32.mrb[0].mxu0
      %v1949 = vadd.f32 0.0, %v1948
      %v1950 = vpop.f32.mrb[0].mxu0
      %v1951 = vpop.f32.mrb[0].mxu0
      %v1952 = vadd.f32 0.0, %v1951
      %v1953 = vpop.f32.mrb[0].mxu0
      %1954 = vmatprep.mubr.bf16.mxu0 0
      %1955 = vmatmul.mubr.bf16.gmra.mrb[0].mxu0 %v1842
      %v1956 = vpop.f32.mrb[0].mxu0
      %v1957 = vadd.f32 0.0, %v1956
      %v1958 = vpop.f32.mrb[0].mxu0
      %v1959 = vpop.f32.mrb[0].mxu0
      %v1960 = vadd.f32 0.0, %v1959
      %v1961 = vpop.f32.mrb[0].mxu0
      %1962 = vmatprep.mubr.bf16.mxu0 0
      %1963 = vmatmul.mubr.bf16.gmra.mrb[0].mxu0 %v1845
      %v1964 = vpop.f32.mrb[0].mxu0
      %v1965 = vadd.f32 0.0, %v1964
      %v1966 = vpop.f32.mrb[0].mxu0
      %v1967 = vpop.f32.mrb[0].mxu0
      %v1968 = vadd.f32 0.0, %v1967
      %v1969 = vpop.f32.mrb[0].mxu0
      %1970 = vmatprep.mubr.bf16.mxu0 0
      %1971 = vmatmul.mubr.bf16.gmra.mrb[0].mxu0 %v1848
      %v1972 = vpop.f32.mrb[0].mxu0
      %v1973 = vadd.f32 0.0, %v1972
      %v1974 = vpop.f32.mrb[0].mxu0
      %v1975 = vpop.f32.mrb[0].mxu0
      %v1976 = vadd.f32 0.0, %v1975
      %v1977 = vpop.f32.mrb[0].mxu0
      %1978 = vmatprep.mubr.bf16.mxu0 0
      %1979 = vmatmul.mubr.bf16.gmra.mrb[0].mxu0 %v1851
      %v1980 = vpop.f32.mrb[0].mxu0
      %v1981 = vadd.f32 0.0, %v1980
      %v1982 = vpop.f32.mrb[0].mxu0
      %v1983 = vpop.f32.mrb[0].mxu0
      %v1984 = vadd.f32 0.0, %v1983
      %v1985 = vpop.f32.mrb[0].mxu0
      %1986 = vmatprep.mubr.bf16.mxu0 0
      %1987 = vmatmul.mubr.bf16.gmra.mrb[0].mxu0 %v1854
      %v1988 = vpop.f32.mrb[0].mxu0
      %v1989 = vadd.f32 0.0, %v1988
      %v1990 = vpop.f32.mrb[0].mxu0
      %v1991 = vpop.f32.mrb[0].mxu0
      %v1992 = vadd.f32 0.0, %v1991
      %v1993 = vpop.f32.mrb[0].mxu0
      %1994 = vmatprep.mubr.bf16.mxu0 0
      %1995 = vmatmul.mubr.bf16.gmra.mrb[0].mxu0 %v1857
      %v1996 = vpop.f32.mrb[0].mxu0
      %v1997 = vadd.f32 0.0, %v1996
      %v1998 = vpop.f32.mrb[0].mxu0
      %v1999 = vpop.f32.mrb[0].mxu0
      %v2000 = vadd.f32 0.0, %v1999
      %v2001 = vpop.f32.mrb[0].mxu0
      %2002 = vmatprep.mubr.bf16.mxu0 0
      %2003 = vmatmul.mubr.bf16.gmra.mrb[0].mxu0 %v1860
      %v2004 = vpop.f32.mrb[0].mxu0
      %v2005 = vadd.f32 0.0, %v2004
      %v2006 = vpop.f32.mrb[0].mxu0
      %v2007 = vpop.f32.mrb[0].mxu0
      %v2008 = vadd.f32 0.0, %v2007
      %v2009 = vpop.f32.mrb[0].mxu0
      %2010 = vmatprep.mubr.bf16.mxu0 0
      %2011 = vmatmul.mubr.bf16.gmra.mrb[0].mxu0 %v1863
      %v2012 = vpop.f32.mrb[0].mxu0
      %v2013 = vadd.f32 0.0, %v2012
      %v2014 = vpop.f32.mrb[0].mxu0
      %v2015 = vpop.f32.mrb[0].mxu0
      %v2016 = vadd.f32 0.0, %v2015
      %v2017 = vpop.f32.mrb[0].mxu0
      %2018 = vmatprep.mubr.bf16.mxu0 0
      %2019 = vmatmul.mubr.bf16.gmra.mrb[0].mxu0 %v1866
      %v2020 = vpop.f32.mrb[0].mxu0
      %v2021 = vadd.f32 0.0, %v2020
      %v2022 = vpop.f32.mrb[0].mxu0
      %v2023 = vpop.f32.mrb[0].mxu0
      %v2024 = vadd.f32 0.0, %v2023
      %v2025 = vpop.f32.mrb[0].mxu0
      %2026 = vmatprep.mubr.bf16.mxu0 0
      %2027 = vmatmul.mubr.bf16.gmra.mrb[0].mxu0 %v1869
      %v2028 = vpop.f32.mrb[0].mxu0
      %v2029 = vadd.f32 0.0, %v2028
      %v2030 = vpop.f32.mrb[0].mxu0
      %v2031 = vpop.f32.mrb[0].mxu0
      %v2032 = vadd.f32 0.0, %v2031
      %v2033 = vpop.f32.mrb[0].mxu0
      %2034 = vdwg.mxu0
      %v2035 = vadd.f32 %v1673, %v1909
      %v2036 = vadd.f32 %v1674, %v1912
      %v2037 = vadd.f32 %v1675, %v1917
      %v2038 = vadd.f32 %v1676, %v1920
      %v2039 = vadd.f32 %v1677, %v1925
      %v2040 = vadd.f32 %v1678, %v1928
      %v2041 = vadd.f32 %v1679, %v1933
      %v2042 = vadd.f32 %v1680, %v1936
      %v2043 = vadd.f32 %v1681, %v1941
      %v2044 = vadd.f32 %v1682, %v1944
      %v2045 = vadd.f32 %v1683, %v1949
      %v2046 = vadd.f32 %v1684, %v1952
      %v2047 = vadd.f32 %v1685, %v1957
      %v2048 = vadd.f32 %v1686, %v1960
      %v2049 = vadd.f32 %v1687, %v1965
      %v2050 = vadd.f32 %v1688, %v1968
      %v2051 = vadd.f32 %v1689, %v1973
      %v2052 = vadd.f32 %v1690, %v1976
      %v2053 = vadd.f32 %v1691, %v1981
      %v2054 = vadd.f32 %v1692, %v1984
      %v2055 = vadd.f32 %v1693, %v1989
      %v2056 = vadd.f32 %v1694, %v1992
      %v2057 = vadd.f32 %v1695, %v1997
      %v2058 = vadd.f32 %v1696, %v2000
      %v2059 = vadd.f32 %v1697, %v2005
      %v2060 = vadd.f32 %v1698, %v2008
      %v2061 = vadd.f32 %v1699, %v2013
      %v2062 = vadd.f32 %v1700, %v2016
      %v2063 = vadd.f32 %v1701, %v2021
      %v2064 = vadd.f32 %v1702, %v2024
      %v2065 = vadd.f32 %v1703, %v2029
      %v2066 = vadd.f32 %v1704, %v2032
      %v2067 = vld [vmem:[%s1705] sm:$0xf]
      %v2068 = vld [vmem:[%s1705 + $0x4] sm:$0xf]
      %v2069 = vld [vmem:[%s1705 + $0x8] sm:$0x1]
      %v2070 = vld [vmem:[%s1705 + $0xc] sm:$0xf]
      %v2071 = vld [vmem:[%s1705 + $0x10] sm:$0xf]
      %v2072 = vld [vmem:[%s1705 + $0x14] sm:$0x1]
      %v2073 = vld [vmem:[%s1705 + $0x18] sm:$0xf]
      %v2074 = vld [vmem:[%s1705 + $0x1c] sm:$0xf]
      %v2075 = vld [vmem:[%s1705 + $0x20] sm:$0x1]
      %v2076 = vld [vmem:[%s1705 + $0x24] sm:$0xf]
      %v2077 = vld [vmem:[%s1705 + $0x28] sm:$0xf]
      %v2078 = vld [vmem:[%s1705 + $0x2c] sm:$0x1]
      %v2079 = vld [vmem:[%s1705 + $0x30] sm:$0xf]
      %v2080 = vld [vmem:[%s1705 + $0x34] sm:$0xf]
      %v2081 = vld [vmem:[%s1705 + $0x38] sm:$0x1]
      %v2082 = vld [vmem:[%s1705 + $0x3c] sm:$0xf]
      %v2083 = vld [vmem:[%s1705 + $0x40] sm:$0xf]
      %v2084 = vld [vmem:[%s1705 + $0x44] sm:$0x1]
      %v2085 = vld [vmem:[%s1705 + $0x48] sm:$0xf]
      %v2086 = vld [vmem:[%s1705 + $0x4c] sm:$0xf]
      %v2087 = vld [vmem:[%s1705 + $0x50] sm:$0x1]
      %v2088 = vld [vmem:[%s1705 + $0x54] sm:$0xf]
      %v2089 = vld [vmem:[%s1705 + $0x58] sm:$0xf]
      %v2090 = vld [vmem:[%s1705 + $0x5c] sm:$0x1]
      %v2091 = vld [vmem:[%s1705 + $0x60] sm:$0xf]
      %v2092 = vld [vmem:[%s1705 + $0x64] sm:$0xf]
      %v2093 = vld [vmem:[%s1705 + $0x68] sm:$0x1]
      %v2094 = vld [vmem:[%s1705 + $0x6c] sm:$0xf]
      %v2095 = vld [vmem:[%s1705 + $0x70] sm:$0xf]
      %v2096 = vld [vmem:[%s1705 + $0x74] sm:$0x1]
      %v2097 = vld [vmem:[%s1705 + $0x78] sm:$0xf]
      %v2098 = vld [vmem:[%s1705 + $0x7c] sm:$0xf]
      %v2099 = vld [vmem:[%s1705 + $0x80] sm:$0x1]
      %v2100 = vld [vmem:[%s1705 + $0x84] sm:$0xf]
      %v2101 = vld [vmem:[%s1705 + $0x88] sm:$0xf]
      %v2102 = vld [vmem:[%s1705 + $0x8c] sm:$0x1]
      %v2103 = vld [vmem:[%s1705 + $0x90] sm:$0xf]
      %v2104 = vld [vmem:[%s1705 + $0x94] sm:$0xf]
      %v2105 = vld [vmem:[%s1705 + $0x98] sm:$0x1]
      %v2106 = vld [vmem:[%s1705 + $0x9c] sm:$0xf]
      %v2107 = vld [vmem:[%s1705 + $0xa0] sm:$0xf]
      %v2108 = vld [vmem:[%s1705 + $0xa4] sm:$0x1]
      %v2109 = vld [vmem:[%s1705 + $0xa8] sm:$0xf]
      %v2110 = vld [vmem:[%s1705 + $0xac] sm:$0xf]
      %v2111 = vld [vmem:[%s1705 + $0xb0] sm:$0x1]
      %v2112 = vld [vmem:[%s1705 + $0xb4] sm:$0xf]
      %v2113 = vld [vmem:[%s1705 + $0xb8] sm:$0xf]
      %v2114 = vld [vmem:[%s1705 + $0xbc] sm:$0x1]
      %v2116 = vshrl.u32 %v2067, 16
      %v2118 = vrot.slane %v2116, 4
      %v2119 = vshll.u32 %v2067, 16
      %v2121 = vrot.slane %v2119, 5
      %v2122 = vor.u32 %v2118, %v2121
      %v2123 = vrot.slane %v2122, 4
      %v2125 = vshll.u32 %v2068, 16
      %v2127 = vrot.slane %v2125, 5
      %v2128 = vsel %vm305, %v2123, %v2127
      %v2129 = vshrl.u32 %v2068, 16
      %v2131 = vrot.slane %v2129, 4
      %v2132 = vor.u32 %v2131, %v2127
      %v2133 = vrot.slane %v2132, 4
      %v2135 = vshll.u32 %v2069, 16
      %v2137 = vrot.slane %v2135, 5
      %v2138 = vsel %vm305, %v2133, %v2137
      %v2140 = vshrl.u32 %v2070, 16
      %v2142 = vrot.slane %v2140, 4
      %v2143 = vshll.u32 %v2070, 16
      %v2145 = vrot.slane %v2143, 5
      %v2146 = vor.u32 %v2142, %v2145
      %v2147 = vrot.slane %v2146, 4
      %v2149 = vshll.u32 %v2071, 16
      %v2151 = vrot.slane %v2149, 5
      %v2152 = vsel %vm305, %v2147, %v2151
      %v2153 = vshrl.u32 %v2071, 16
      %v2155 = vrot.slane %v2153, 4
      %v2156 = vor.u32 %v2155, %v2151
      %v2157 = vrot.slane %v2156, 4
      %v2159 = vshll.u32 %v2072, 16
      %v2161 = vrot.slane %v2159, 5
      %v2162 = vsel %vm305, %v2157, %v2161
      %v2164 = vshrl.u32 %v2073, 16
      %v2166 = vrot.slane %v2164, 4
      %v2167 = vshll.u32 %v2073, 16
      %v2169 = vrot.slane %v2167, 5
      %v2170 = vor.u32 %v2166, %v2169
      %v2171 = vrot.slane %v2170, 4
      %v2173 = vshll.u32 %v2074, 16
      %v2175 = vrot.slane %v2173, 5
      %v2176 = vsel %vm305, %v2171, %v2175
      %v2177 = vshrl.u32 %v2074, 16
      %v2179 = vrot.slane %v2177, 4
      %v2180 = vor.u32 %v2179, %v2175
      %v2181 = vrot.slane %v2180, 4
      %v2183 = vshll.u32 %v2075, 16
      %v2185 = vrot.slane %v2183, 5
      %v2186 = vsel %vm305, %v2181, %v2185
      %v2188 = vshrl.u32 %v2076, 16
      %v2190 = vrot.slane %v2188, 4
      %v2191 = vshll.u32 %v2076, 16
      %v2193 = vrot.slane %v2191, 5
      %v2194 = vor.u32 %v2190, %v2193
      %v2195 = vrot.slane %v2194, 4
      %v2197 = vshll.u32 %v2077, 16
      %v2199 = vrot.slane %v2197, 5
      %v2200 = vsel %vm305, %v2195, %v2199
      %v2201 = vshrl.u32 %v2077, 16
      %v2203 = vrot.slane %v2201, 4
      %v2204 = vor.u32 %v2203, %v2199
      %v2205 = vrot.slane %v2204, 4
      %v2207 = vshll.u32 %v2078, 16
      %v2209 = vrot.slane %v2207, 5
      %v2210 = vsel %vm305, %v2205, %v2209
      %v2212 = vshrl.u32 %v2079, 16
      %v2214 = vrot.slane %v2212, 4
      %v2215 = vshll.u32 %v2079, 16
      %v2217 = vrot.slane %v2215, 5
      %v2218 = vor.u32 %v2214, %v2217
      %v2219 = vrot.slane %v2218, 4
      %v2221 = vshll.u32 %v2080, 16
      %v2223 = vrot.slane %v2221, 5
      %v2224 = vsel %vm305, %v2219, %v2223
      %v2225 = vshrl.u32 %v2080, 16
      %v2227 = vrot.slane %v2225, 4
      %v2228 = vor.u32 %v2227, %v2223
      %v2229 = vrot.slane %v2228, 4
      %v2231 = vshll.u32 %v2081, 16
      %v2233 = vrot.slane %v2231, 5
      %v2234 = vsel %vm305, %v2229, %v2233
      %v2236 = vshrl.u32 %v2082, 16
      %v2238 = vrot.slane %v2236, 4
      %v2239 = vshll.u32 %v2082, 16
      %v2241 = vrot.slane %v2239, 5
      %v2242 = vor.u32 %v2238, %v2241
      %v2243 = vrot.slane %v2242, 4
      %v2245 = vshll.u32 %v2083, 16
      %v2247 = vrot.slane %v2245, 5
      %v2248 = vsel %vm305, %v2243, %v2247
      %v2249 = vshrl.u32 %v2083, 16
      %v2251 = vrot.slane %v2249, 4
      %v2252 = vor.u32 %v2251, %v2247
      %v2253 = vrot.slane %v2252, 4
      %v2255 = vshll.u32 %v2084, 16
      %v2257 = vrot.slane %v2255, 5
      %v2258 = vsel %vm305, %v2253, %v2257
      %v2260 = vshrl.u32 %v2085, 16
      %v2262 = vrot.slane %v2260, 4
      %v2263 = vshll.u32 %v2085, 16
      %v2265 = vrot.slane %v2263, 5
      %v2266 = vor.u32 %v2262, %v2265
      %v2267 = vrot.slane %v2266, 4
      %v2269 = vshll.u32 %v2086, 16
      %v2271 = vrot.slane %v2269, 5
      %v2272 = vsel %vm305, %v2267, %v2271
      %v2273 = vshrl.u32 %v2086, 16
      %v2275 = vrot.slane %v2273, 4
      %v2276 = vor.u32 %v2275, %v2271
      %v2277 = vrot.slane %v2276, 4
      %v2279 = vshll.u32 %v2087, 16
      %v2281 = vrot.slane %v2279, 5
      %v2282 = vsel %vm305, %v2277, %v2281
      %v2284 = vshrl.u32 %v2088, 16
      %v2286 = vrot.slane %v2284, 4
      %v2287 = vshll.u32 %v2088, 16
      %v2289 = vrot.slane %v2287, 5
      %v2290 = vor.u32 %v2286, %v2289
      %v2291 = vrot.slane %v2290, 4
      %v2293 = vshll.u32 %v2089, 16
      %v2295 = vrot.slane %v2293, 5
      %v2296 = vsel %vm305, %v2291, %v2295
      %v2297 = vshrl.u32 %v2089, 16
      %v2299 = vrot.slane %v2297, 4
      %v2300 = vor.u32 %v2299, %v2295
      %v2301 = vrot.slane %v2300, 4
      %v2303 = vshll.u32 %v2090, 16
      %v2305 = vrot.slane %v2303, 5
      %v2306 = vsel %vm305, %v2301, %v2305
      %v2308 = vshrl.u32 %v2091, 16
      %v2310 = vrot.slane %v2308, 4
      %v2311 = vshll.u32 %v2091, 16
      %v2313 = vrot.slane %v2311, 5
      %v2314 = vor.u32 %v2310, %v2313
      %v2315 = vrot.slane %v2314, 4
      %v2317 = vshll.u32 %v2092, 16
      %v2319 = vrot.slane %v2317, 5
      %v2320 = vsel %vm305, %v2315, %v2319
      %v2321 = vshrl.u32 %v2092, 16
      %v2323 = vrot.slane %v2321, 4
      %v2324 = vor.u32 %v2323, %v2319
      %v2325 = vrot.slane %v2324, 4
      %v2327 = vshll.u32 %v2093, 16
      %v2329 = vrot.slane %v2327, 5
      %v2330 = vsel %vm305, %v2325, %v2329
      %v2332 = vshrl.u32 %v2094, 16
      %v2334 = vrot.slane %v2332, 4
      %v2335 = vshll.u32 %v2094, 16
      %v2337 = vrot.slane %v2335, 5
      %v2338 = vor.u32 %v2334, %v2337
      %v2339 = vrot.slane %v2338, 4
      %v2341 = vshll.u32 %v2095, 16
      %v2343 = vrot.slane %v2341, 5
      %v2344 = vsel %vm305, %v2339, %v2343
      %v2345 = vshrl.u32 %v2095, 16
      %v2347 = vrot.slane %v2345, 4
      %v2348 = vor.u32 %v2347, %v2343
      %v2349 = vrot.slane %v2348, 4
      %v2351 = vshll.u32 %v2096, 16
      %v2353 = vrot.slane %v2351, 5
      %v2354 = vsel %vm305, %v2349, %v2353
      %v2356 = vshrl.u32 %v2097, 16
      %v2358 = vrot.slane %v2356, 4
      %v2359 = vshll.u32 %v2097, 16
      %v2361 = vrot.slane %v2359, 5
      %v2362 = vor.u32 %v2358, %v2361
      %v2363 = vrot.slane %v2362, 4
      %v2365 = vshll.u32 %v2098, 16
      %v2367 = vrot.slane %v2365, 5
      %v2368 = vsel %vm305, %v2363, %v2367
      %v2369 = vshrl.u32 %v2098, 16
      %v2371 = vrot.slane %v2369, 4
      %v2372 = vor.u32 %v2371, %v2367
      %v2373 = vrot.slane %v2372, 4
      %v2375 = vshll.u32 %v2099, 16
      %v2377 = vrot.slane %v2375, 5
      %v2378 = vsel %vm305, %v2373, %v2377
      %v2380 = vshrl.u32 %v2100, 16
      %v2382 = vrot.slane %v2380, 4
      %v2383 = vshll.u32 %v2100, 16
      %v2385 = vrot.slane %v2383, 5
      %v2386 = vor.u32 %v2382, %v2385
      %v2387 = vrot.slane %v2386, 4
      %v2389 = vshll.u32 %v2101, 16
      %v2391 = vrot.slane %v2389, 5
      %v2392 = vsel %vm305, %v2387, %v2391
      %v2393 = vshrl.u32 %v2101, 16
      %v2395 = vrot.slane %v2393, 4
      %v2396 = vor.u32 %v2395, %v2391
      %v2397 = vrot.slane %v2396, 4
      %v2399 = vshll.u32 %v2102, 16
      %v2401 = vrot.slane %v2399, 5
      %v2402 = vsel %vm305, %v2397, %v2401
      %v2404 = vshrl.u32 %v2103, 16
      %v2406 = vrot.slane %v2404, 4
      %v2407 = vshll.u32 %v2103, 16
      %v2409 = vrot.slane %v2407, 5
      %v2410 = vor.u32 %v2406, %v2409
      %v2411 = vrot.slane %v2410, 4
      %v2413 = vshll.u32 %v2104, 16
      %v2415 = vrot.slane %v2413, 5
      %v2416 = vsel %vm305, %v2411, %v2415
      %v2417 = vshrl.u32 %v2104, 16
      %v2419 = vrot.slane %v2417, 4
      %v2420 = vor.u32 %v2419, %v2415
      %v2421 = vrot.slane %v2420, 4
      %v2423 = vshll.u32 %v2105, 16
      %v2425 = vrot.slane %v2423, 5
      %v2426 = vsel %vm305, %v2421, %v2425
      %v2428 = vshrl.u32 %v2106, 16
      %v2430 = vrot.slane %v2428, 4
      %v2431 = vshll.u32 %v2106, 16
      %v2433 = vrot.slane %v2431, 5
      %v2434 = vor.u32 %v2430, %v2433
      %v2435 = vrot.slane %v2434, 4
      %v2437 = vshll.u32 %v2107, 16
      %v2439 = vrot.slane %v2437, 5
      %v2440 = vsel %vm305, %v2435, %v2439
      %v2441 = vshrl.u32 %v2107, 16
      %v2443 = vrot.slane %v2441, 4
      %v2444 = vor.u32 %v2443, %v2439
      %v2445 = vrot.slane %v2444, 4
      %v2447 = vshll.u32 %v2108, 16
      %v2449 = vrot.slane %v2447, 5
      %v2450 = vsel %vm305, %v2445, %v2449
      %v2452 = vshrl.u32 %v2109, 16
      %v2454 = vrot.slane %v2452, 4
      %v2455 = vshll.u32 %v2109, 16
      %v2457 = vrot.slane %v2455, 5
      %v2458 = vor.u32 %v2454, %v2457
      %v2459 = vrot.slane %v2458, 4
      %v2461 = vshll.u32 %v2110, 16
      %v2463 = vrot.slane %v2461, 5
      %v2464 = vsel %vm305, %v2459, %v2463
      %v2465 = vshrl.u32 %v2110, 16
      %v2467 = vrot.slane %v2465, 4
      %v2468 = vor.u32 %v2467, %v2463
      %v2469 = vrot.slane %v2468, 4
      %v2471 = vshll.u32 %v2111, 16
      %v2473 = vrot.slane %v2471, 5
      %v2474 = vsel %vm305, %v2469, %v2473
      %v2476 = vshrl.u32 %v2112, 16
      %v2478 = vrot.slane %v2476, 4
      %v2479 = vshll.u32 %v2112, 16
      %v2481 = vrot.slane %v2479, 5
      %v2482 = vor.u32 %v2478, %v2481
      %v2483 = vrot.slane %v2482, 4
      %v2485 = vshll.u32 %v2113, 16
      %v2487 = vrot.slane %v2485, 5
      %v2488 = vsel %vm305, %v2483, %v2487
      %v2489 = vshrl.u32 %v2113, 16
      %v2491 = vrot.slane %v2489, 4
      %v2492 = vor.u32 %v2491, %v2487
      %v2493 = vrot.slane %v2492, 4
      %v2495 = vshll.u32 %v2114, 16
      %v2497 = vrot.slane %v2495, 5
      %v2498 = vsel %vm305, %v2493, %v2497
      %v2499 = vld [vmem:[%s237 + $0x8] sm:$0x3]
      %v2500 = vunpack.c.l.b16 %v2128
      %v2501 = vunpack.c.l.b16 %v2138
      %v2502 = vunpack.c.l.b16 %v2152
      %v2503 = vunpack.c.l.b16 %v2162
      %v2504 = vunpack.c.l.b16 %v2176
      %v2505 = vunpack.c.l.b16 %v2186
      %v2506 = vunpack.c.l.b16 %v2200
      %v2507 = vunpack.c.l.b16 %v2210
      %v2508 = vunpack.c.l.b16 %v2224
      %v2509 = vunpack.c.l.b16 %v2234
      %v2510 = vunpack.c.l.b16 %v2248
      %v2511 = vunpack.c.l.b16 %v2258
      %v2512 = vunpack.c.l.b16 %v2272
      %v2513 = vunpack.c.l.b16 %v2282
      %v2514 = vunpack.c.l.b16 %v2296
      %v2515 = vunpack.c.l.b16 %v2306
      %v2516 = vunpack.c.l.b16 %v2320
      %v2517 = vunpack.c.l.b16 %v2330
      %v2518 = vunpack.c.l.b16 %v2344
      %v2519 = vunpack.c.l.b16 %v2354
      %v2520 = vunpack.c.l.b16 %v2368
      %v2521 = vunpack.c.l.b16 %v2378
      %v2522 = vunpack.c.l.b16 %v2392
      %v2523 = vunpack.c.l.b16 %v2402
      %v2524 = vunpack.c.l.b16 %v2416
      %v2525 = vunpack.c.l.b16 %v2426
      %v2526 = vunpack.c.l.b16 %v2440
      %v2527 = vunpack.c.l.b16 %v2450
      %v2528 = vunpack.c.l.b16 %v2464
      %v2529 = vunpack.c.l.b16 %v2474
      %v2530 = vunpack.c.l.b16 %v2488
      %v2531 = vunpack.c.l.b16 %v2498
      %v2532 = vpack.c.b16 %v2501, %v2500
      %v2533 = vpack.c.b16 %v2503, %v2502
      %v2534 = vpack.c.b16 %v2505, %v2504
      %v2535 = vpack.c.b16 %v2507, %v2506
      %v2536 = vpack.c.b16 %v2509, %v2508
      %v2537 = vpack.c.b16 %v2511, %v2510
      %v2538 = vpack.c.b16 %v2513, %v2512
      %v2539 = vpack.c.b16 %v2515, %v2514
      %v2540 = vpack.c.b16 %v2517, %v2516
      %v2541 = vpack.c.b16 %v2519, %v2518
      %v2542 = vpack.c.b16 %v2521, %v2520
      %v2543 = vpack.c.b16 %v2523, %v2522
      %v2544 = vpack.c.b16 %v2525, %v2524
      %v2545 = vpack.c.b16 %v2527, %v2526
      %v2546 = vpack.c.b16 %v2529, %v2528
      %v2547 = vpack.c.b16 %v2531, %v2530
      %v2549 = vsel %vm743, %v2532, 0
      %v2552 = vsel %vm743, %v2533, 0
      %v2555 = vsel %vm743, %v2534, 0
      %v2558 = vsel %vm743, %v2535, 0
      %v2561 = vsel %vm743, %v2536, 0
      %v2564 = vsel %vm743, %v2537, 0
      %v2567 = vsel %vm743, %v2538, 0
      %v2570 = vsel %vm743, %v2539, 0
      %v2573 = vsel %vm743, %v2540, 0
      %v2576 = vsel %vm743, %v2541, 0
      %v2579 = vsel %vm743, %v2542, 0
      %v2582 = vsel %vm743, %v2543, 0
      %v2585 = vsel %vm743, %v2544, 0
      %v2588 = vsel %vm743, %v2545, 0
      %v2591 = vsel %vm743, %v2546, 0
      %v2594 = vsel %vm743, %v2547, 0
      %v2597 = vsel %vm792, %v2499, 0
      %2599 = vmatprep.subr.bf16.mxu0 0
      %2600 = vmatpush1.bf16.msra.mxu0 %v2597
      %2601 = vmatprep.subr.bf16.mxu0 0
      %2602 = vmatpush1.bf16.msra.mxu0 0
      %2603 = vmatprep.subr.bf16.mxu0 0
      %2604 = vmatpush1.bf16.msra.mxu0 0
      %2605 = vmatprep.subr.bf16.mxu0 0
      %2606 = vmatpush1.bf16.msra.mxu0 0
      %2607 = vmatprep.subr.bf16.mxu0 0
      %2608 = vmatpush1.bf16.msra.mxu0 0
      %2609 = vmatprep.subr.bf16.mxu0 0
      %2610 = vmatpush1.bf16.msra.mxu0 0
      %2611 = vmatprep.subr.bf16.mxu0 0
      %2612 = vmatpush1.bf16.msra.mxu0 0
      %2613 = vmatprep.subr.bf16.mxu0 0
      %2614 = vmatpush1.bf16.msra.mxu0 0
      %2615 = vmatprep.subr.bf16.mxu0 0
      %2616 = vmatpush1.bf16.msra.mxu0 0
      %2617 = vmatprep.subr.bf16.mxu0 0
      %2618 = vmatpush1.bf16.msra.mxu0 0
      %2619 = vmatprep.subr.bf16.mxu0 0
      %2620 = vmatpush1.bf16.msra.mxu0 0
      %2621 = vmatprep.subr.bf16.mxu0 0
      %2622 = vmatpush1.bf16.msra.mxu0 0
      %2623 = vmatprep.subr.bf16.mxu0 0
      %2624 = vmatpush1.bf16.msra.mxu0 0
      %2625 = vmatprep.subr.bf16.mxu0 0
      %2626 = vmatpush1.bf16.msra.mxu0 0
      %2627 = vmatprep.subr.bf16.mxu0 0
      %2628 = vmatpush1.bf16.msra.mxu0 0
      %2629 = vmatprep.subr.bf16.mxu0 0
      %2630 = vmatpush1.bf16.msra.mxu0 0
      %2631 = vmatprep.mubr.bf16.mxu0 0
      %2632 = vmatmul.mubr.bf16.gmra.mrb[0].mxu0 %v2549
      %v2633 = vpop.f32.mrb[0].mxu0
      %v2634 = vadd.f32 0.0, %v2633
      %v2635 = vpop.f32.mrb[0].mxu0
      %v2636 = vpop.f32.mrb[0].mxu0
      %v2637 = vadd.f32 0.0, %v2636
      %v2638 = vpop.f32.mrb[0].mxu0
      %2639 = vmatprep.mubr.bf16.mxu0 0
      %2640 = vmatmul.mubr.bf16.gmra.mrb[0].mxu0 %v2552
      %v2641 = vpop.f32.mrb[0].mxu0
      %v2642 = vadd.f32 0.0, %v2641
      %v2643 = vpop.f32.mrb[0].mxu0
      %v2644 = vpop.f32.mrb[0].mxu0
      %v2645 = vadd.f32 0.0, %v2644
      %v2646 = vpop.f32.mrb[0].mxu0
      %2647 = vmatprep.mubr.bf16.mxu0 0
      %2648 = vmatmul.mubr.bf16.gmra.mrb[0].mxu0 %v2555
      %v2649 = vpop.f32.mrb[0].mxu0
      %v2650 = vadd.f32 0.0, %v2649
      %v2651 = vpop.f32.mrb[0].mxu0
      %v2652 = vpop.f32.mrb[0].mxu0
      %v2653 = vadd.f32 0.0, %v2652
      %v2654 = vpop.f32.mrb[0].mxu0
      %2655 = vmatprep.mubr.bf16.mxu0 0
      %2656 = vmatmul.mubr.bf16.gmra.mrb[0].mxu0 %v2558
      %v2657 = vpop.f32.mrb[0].mxu0
      %v2658 = vadd.f32 0.0, %v2657
      %v2659 = vpop.f32.mrb[0].mxu0
      %v2660 = vpop.f32.mrb[0].mxu0
      %v2661 = vadd.f32 0.0, %v2660
      %v2662 = vpop.f32.mrb[0].mxu0
      %2663 = vmatprep.mubr.bf16.mxu0 0
      %2664 = vmatmul.mubr.bf16.gmra.mrb[0].mxu0 %v2561
      %v2665 = vpop.f32.mrb[0].mxu0
      %v2666 = vadd.f32 0.0, %v2665
      %v2667 = vpop.f32.mrb[0].mxu0
      %v2668 = vpop.f32.mrb[0].mxu0
      %v2669 = vadd.f32 0.0, %v2668
      %v2670 = vpop.f32.mrb[0].mxu0
      %2671 = vmatprep.mubr.bf16.mxu0 0
      %2672 = vmatmul.mubr.bf16.gmra.mrb[0].mxu0 %v2564
      %v2673 = vpop.f32.mrb[0].mxu0
      %v2674 = vadd.f32 0.0, %v2673
      %v2675 = vpop.f32.mrb[0].mxu0
      %v2676 = vpop.f32.mrb[0].mxu0
      %v2677 = vadd.f32 0.0, %v2676
      %v2678 = vpop.f32.mrb[0].mxu0
      %2679 = vmatprep.mubr.bf16.mxu0 0
      %2680 = vmatmul.mubr.bf16.gmra.mrb[0].mxu0 %v2567
      %v2681 = vpop.f32.mrb[0].mxu0
      %v2682 = vadd.f32 0.0, %v2681
      %v2683 = vpop.f32.mrb[0].mxu0
      %v2684 = vpop.f32.mrb[0].mxu0
      %v2685 = vadd.f32 0.0, %v2684
      %v2686 = vpop.f32.mrb[0].mxu0
      %2687 = vmatprep.mubr.bf16.mxu0 0
      %2688 = vmatmul.mubr.bf16.gmra.mrb[0].mxu0 %v2570
      %v2689 = vpop.f32.mrb[0].mxu0
      %v2690 = vadd.f32 0.0, %v2689
      %v2691 = vpop.f32.mrb[0].mxu0
      %v2692 = vpop.f32.mrb[0].mxu0
      %v2693 = vadd.f32 0.0, %v2692
      %v2694 = vpop.f32.mrb[0].mxu0
      %2695 = vmatprep.mubr.bf16.mxu0 0
      %2696 = vmatmul.mubr.bf16.gmra.mrb[0].mxu0 %v2573
      %v2697 = vpop.f32.mrb[0].mxu0
      %v2698 = vadd.f32 0.0, %v2697
      %v2699 = vpop.f32.mrb[0].mxu0
      %v2700 = vpop.f32.mrb[0].mxu0
      %v2701 = vadd.f32 0.0, %v2700
      %v2702 = vpop.f32.mrb[0].mxu0
      %2703 = vmatprep.mubr.bf16.mxu0 0
      %2704 = vmatmul.mubr.bf16.gmra.mrb[0].mxu0 %v2576
      %v2705 = vpop.f32.mrb[0].mxu0
      %v2706 = vadd.f32 0.0, %v2705
      %v2707 = vpop.f32.mrb[0].mxu0
      %v2708 = vpop.f32.mrb[0].mxu0
      %v2709 = vadd.f32 0.0, %v2708
      %v2710 = vpop.f32.mrb[0].mxu0
      %2711 = vmatprep.mubr.bf16.mxu0 0
      %2712 = vmatmul.mubr.bf16.gmra.mrb[0].mxu0 %v2579
      %v2713 = vpop.f32.mrb[0].mxu0
      %v2714 = vadd.f32 0.0, %v2713
      %v2715 = vpop.f32.mrb[0].mxu0
      %v2716 = vpop.f32.mrb[0].mxu0
      %v2717 = vadd.f32 0.0, %v2716
      %v2718 = vpop.f32.mrb[0].mxu0
      %2719 = vmatprep.mubr.bf16.mxu0 0
      %2720 = vmatmul.mubr.bf16.gmra.mrb[0].mxu0 %v2582
      %v2721 = vpop.f32.mrb[0].mxu0
      %v2722 = vadd.f32 0.0, %v2721
      %v2723 = vpop.f32.mrb[0].mxu0
      %v2724 = vpop.f32.mrb[0].mxu0
      %v2725 = vadd.f32 0.0, %v2724
      %v2726 = vpop.f32.mrb[0].mxu0
      %2727 = vmatprep.mubr.bf16.mxu0 0
      %2728 = vmatmul.mubr.bf16.gmra.mrb[0].mxu0 %v2585
      %v2729 = vpop.f32.mrb[0].mxu0
      %v2730 = vadd.f32 0.0, %v2729
      %v2731 = vpop.f32.mrb[0].mxu0
      %v2732 = vpop.f32.mrb[0].mxu0
      %v2733 = vadd.f32 0.0, %v2732
      %v2734 = vpop.f32.mrb[0].mxu0
      %2735 = vmatprep.mubr.bf16.mxu0 0
      %2736 = vmatmul.mubr.bf16.gmra.mrb[0].mxu0 %v2588
      %v2737 = vpop.f32.mrb[0].mxu0
      %v2738 = vadd.f32 0.0, %v2737
      %v2739 = vpop.f32.mrb[0].mxu0
      %v2740 = vpop.f32.mrb[0].mxu0
      %v2741 = vadd.f32 0.0, %v2740
      %v2742 = vpop.f32.mrb[0].mxu0
      %2743 = vmatprep.mubr.bf16.mxu0 0
      %2744 = vmatmul.mubr.bf16.gmra.mrb[0].mxu0 %v2591
      %v2745 = vpop.f32.mrb[0].mxu0
      %v2746 = vadd.f32 0.0, %v2745
      %v2747 = vpop.f32.mrb[0].mxu0
      %v2748 = vpop.f32.mrb[0].mxu0
      %v2749 = vadd.f32 0.0, %v2748
      %v2750 = vpop.f32.mrb[0].mxu0
      %2751 = vmatprep.mubr.bf16.mxu0 0
      %2752 = vmatmul.mubr.bf16.gmra.mrb[0].mxu0 %v2594
      %v2753 = vpop.f32.mrb[0].mxu0
      %v2754 = vadd.f32 0.0, %v2753
      %v2755 = vpop.f32.mrb[0].mxu0
      %v2756 = vpop.f32.mrb[0].mxu0
      %v2757 = vadd.f32 0.0, %v2756
      %v2758 = vpop.f32.mrb[0].mxu0
      %2759 = vdwg.mxu0
      %v2760 = vadd.f32 %v2035, %v2634
      %v2761 = vadd.f32 %v2036, %v2637
      %v2762 = vadd.f32 %v2037, %v2642
      %v2763 = vadd.f32 %v2038, %v2645
      %v2764 = vadd.f32 %v2039, %v2650
      %v2765 = vadd.f32 %v2040, %v2653
      %v2766 = vadd.f32 %v2041, %v2658
      %v2767 = vadd.f32 %v2042, %v2661
      %v2768 = vadd.f32 %v2043, %v2666
      %v2769 = vadd.f32 %v2044, %v2669
      %v2770 = vadd.f32 %v2045, %v2674
      %v2771 = vadd.f32 %v2046, %v2677
      %v2772 = vadd.f32 %v2047, %v2682
      %v2773 = vadd.f32 %v2048, %v2685
      %v2774 = vadd.f32 %v2049, %v2690
      %v2775 = vadd.f32 %v2050, %v2693
      %v2776 = vadd.f32 %v2051, %v2698
      %v2777 = vadd.f32 %v2052, %v2701
      %v2778 = vadd.f32 %v2053, %v2706
      %v2779 = vadd.f32 %v2054, %v2709
      %v2780 = vadd.f32 %v2055, %v2714
      %v2781 = vadd.f32 %v2056, %v2717
      %v2782 = vadd.f32 %v2057, %v2722
      %v2783 = vadd.f32 %v2058, %v2725
      %v2784 = vadd.f32 %v2059, %v2730
      %v2785 = vadd.f32 %v2060, %v2733
      %v2786 = vadd.f32 %v2061, %v2738
      %v2787 = vadd.f32 %v2062, %v2741
      %v2788 = vadd.f32 %v2063, %v2746
      %v2789 = vadd.f32 %v2064, %v2749
      %v2790 = vadd.f32 %v2065, %v2754
      %v2791 = vadd.f32 %v2066, %v2757
      %v2792 = vld [vmem:[%s1705] sm:$0xe]
      %v2793 = vld [vmem:[%s1705 + $0xc] sm:$0xe]
      %v2794 = vld [vmem:[%s1705 + $0x18] sm:$0xe]
      %v2795 = vld [vmem:[%s1705 + $0x24] sm:$0xe]
      %v2796 = vld [vmem:[%s1705 + $0x30] sm:$0xe]
      %v2797 = vld [vmem:[%s1705 + $0x3c] sm:$0xe]
      %v2798 = vld [vmem:[%s1705 + $0x48] sm:$0xe]
      %v2799 = vld [vmem:[%s1705 + $0x54] sm:$0xe]
      %v2800 = vld [vmem:[%s1705 + $0x60] sm:$0xe]
      %v2801 = vld [vmem:[%s1705 + $0x6c] sm:$0xe]
      %v2802 = vld [vmem:[%s1705 + $0x78] sm:$0xe]
      %v2803 = vld [vmem:[%s1705 + $0x84] sm:$0xe]
      %v2804 = vld [vmem:[%s1705 + $0x90] sm:$0xe]
      %v2805 = vld [vmem:[%s1705 + $0x9c] sm:$0xe]
      %v2806 = vld [vmem:[%s1705 + $0xa8] sm:$0xe]
      %v2807 = vld [vmem:[%s1705 + $0xb4] sm:$0xe]
      %v2856 = vrot.slane %v2792, 5
      %v2857 = vrot.slane %v2856, 4
      %v2858 = vrot.slane %v2068, 5
      %v2859 = vsel %vm1299, %v2857, %v2858
      %v2860 = vrot.slane %v2858, 4
      %v2861 = vrot.slane %v2069, 5
      %v2862 = vsel %vm1299, %v2860, %v2861
      %v2863 = vrot.slane %v2793, 5
      %v2864 = vrot.slane %v2863, 4
      %v2865 = vrot.slane %v2071, 5
      %v2866 = vsel %vm1299, %v2864, %v2865
      %v2867 = vrot.slane %v2865, 4
      %v2868 = vrot.slane %v2072, 5
      %v2869 = vsel %vm1299, %v2867, %v2868
      %v2870 = vrot.slane %v2794, 5
      %v2871 = vrot.slane %v2870, 4
      %v2872 = vrot.slane %v2074, 5
      %v2873 = vsel %vm1299, %v2871, %v2872
      %v2874 = vrot.slane %v2872, 4
      %v2875 = vrot.slane %v2075, 5
      %v2876 = vsel %vm1299, %v2874, %v2875
      %v2877 = vrot.slane %v2795, 5
      %v2878 = vrot.slane %v2877, 4
      %v2879 = vrot.slane %v2077, 5
      %v2880 = vsel %vm1299, %v2878, %v2879
      %v2881 = vrot.slane %v2879, 4
      %v2882 = vrot.slane %v2078, 5
      %v2883 = vsel %vm1299, %v2881, %v2882
      %v2884 = vrot.slane %v2796, 5
      %v2885 = vrot.slane %v2884, 4
      %v2886 = vrot.slane %v2080, 5
      %v2887 = vsel %vm1299, %v2885, %v2886
      %v2888 = vrot.slane %v2886, 4
      %v2889 = vrot.slane %v2081, 5
      %v2890 = vsel %vm1299, %v2888, %v2889
      %v2891 = vrot.slane %v2797, 5
      %v2892 = vrot.slane %v2891, 4
      %v2893 = vrot.slane %v2083, 5
      %v2894 = vsel %vm1299, %v2892, %v2893
      %v2895 = vrot.slane %v2893, 4
      %v2896 = vrot.slane %v2084, 5
      %v2897 = vsel %vm1299, %v2895, %v2896
      %v2898 = vrot.slane %v2798, 5
      %v2899 = vrot.slane %v2898, 4
      %v2900 = vrot.slane %v2086, 5
      %v2901 = vsel %vm1299, %v2899, %v2900
      %v2902 = vrot.slane %v2900, 4
      %v2903 = vrot.slane %v2087, 5
      %v2904 = vsel %vm1299, %v2902, %v2903
      %v2905 = vrot.slane %v2799, 5
      %v2906 = vrot.slane %v2905, 4
      %v2907 = vrot.slane %v2089, 5
      %v2908 = vsel %vm1299, %v2906, %v2907
      %v2909 = vrot.slane %v2907, 4
      %v2910 = vrot.slane %v2090, 5
      %v2911 = vsel %vm1299, %v2909, %v2910
      %v2912 = vrot.slane %v2800, 5
      %v2913 = vrot.slane %v2912, 4
      %v2914 = vrot.slane %v2092, 5
      %v2915 = vsel %vm1299, %v2913, %v2914
      %v2916 = vrot.slane %v2914, 4
      %v2917 = vrot.slane %v2093, 5
      %v2918 = vsel %vm1299, %v2916, %v2917
      %v2919 = vrot.slane %v2801, 5
      %v2920 = vrot.slane %v2919, 4
      %v2921 = vrot.slane %v2095, 5
      %v2922 = vsel %vm1299, %v2920, %v2921
      %v2923 = vrot.slane %v2921, 4
      %v2924 = vrot.slane %v2096, 5
      %v2925 = vsel %vm1299, %v2923, %v2924
      %v2926 = vrot.slane %v2802, 5
      %v2927 = vrot.slane %v2926, 4
      %v2928 = vrot.slane %v2098, 5
      %v2929 = vsel %vm1299, %v2927, %v2928
      %v2930 = vrot.slane %v2928, 4
      %v2931 = vrot.slane %v2099, 5
      %v2932 = vsel %vm1299, %v2930, %v2931
      %v2933 = vrot.slane %v2803, 5
      %v2934 = vrot.slane %v2933, 4
      %v2935 = vrot.slane %v2101, 5
      %v2936 = vsel %vm1299, %v2934, %v2935
      %v2937 = vrot.slane %v2935, 4
      %v2938 = vrot.slane %v2102, 5
      %v2939 = vsel %vm1299, %v2937, %v2938
      %v2940 = vrot.slane %v2804, 5
      %v2941 = vrot.slane %v2940, 4
      %v2942 = vrot.slane %v2104, 5
      %v2943 = vsel %vm1299, %v2941, %v2942
      %v2944 = vrot.slane %v2942, 4
      %v2945 = vrot.slane %v2105, 5
      %v2946 = vsel %vm1299, %v2944, %v2945
      %v2947 = vrot.slane %v2805, 5
      %v2948 = vrot.slane %v2947, 4
      %v2949 = vrot.slane %v2107, 5
      %v2950 = vsel %vm1299, %v2948, %v2949
      %v2951 = vrot.slane %v2949, 4
      %v2952 = vrot.slane %v2108, 5
      %v2953 = vsel %vm1299, %v2951, %v2952
      %v2954 = vrot.slane %v2806, 5
      %v2955 = vrot.slane %v2954, 4
      %v2956 = vrot.slane %v2110, 5
      %v2957 = vsel %vm1299, %v2955, %v2956
      %v2958 = vrot.slane %v2956, 4
      %v2959 = vrot.slane %v2111, 5
      %v2960 = vsel %vm1299, %v2958, %v2959
      %v2961 = vrot.slane %v2807, 5
      %v2962 = vrot.slane %v2961, 4
      %v2963 = vrot.slane %v2113, 5
      %v2964 = vsel %vm1299, %v2962, %v2963
      %v2965 = vrot.slane %v2963, 4
      %v2966 = vrot.slane %v2114, 5
      %v2967 = vsel %vm1299, %v2965, %v2966
      %v2968 = vld [vmem:[%s237 + $0x8] sm:$0xc]
      %v2969 = vunpack.c.l.b16 %v2859
      %v2970 = vunpack.c.l.b16 %v2862
      %v2971 = vunpack.c.l.b16 %v2866
      %v2972 = vunpack.c.l.b16 %v2869
      %v2973 = vunpack.c.l.b16 %v2873
      %v2974 = vunpack.c.l.b16 %v2876
      %v2975 = vunpack.c.l.b16 %v2880
      %v2976 = vunpack.c.l.b16 %v2883
      %v2977 = vunpack.c.l.b16 %v2887
      %v2978 = vunpack.c.l.b16 %v2890
      %v2979 = vunpack.c.l.b16 %v2894
      %v2980 = vunpack.c.l.b16 %v2897
      %v2981 = vunpack.c.l.b16 %v2901
      %v2982 = vunpack.c.l.b16 %v2904
      %v2983 = vunpack.c.l.b16 %v2908
      %v2984 = vunpack.c.l.b16 %v2911
      %v2985 = vunpack.c.l.b16 %v2915
      %v2986 = vunpack.c.l.b16 %v2918
      %v2987 = vunpack.c.l.b16 %v2922
      %v2988 = vunpack.c.l.b16 %v2925
      %v2989 = vunpack.c.l.b16 %v2929
      %v2990 = vunpack.c.l.b16 %v2932
      %v2991 = vunpack.c.l.b16 %v2936
      %v2992 = vunpack.c.l.b16 %v2939
      %v2993 = vunpack.c.l.b16 %v2943
      %v2994 = vunpack.c.l.b16 %v2946
      %v2995 = vunpack.c.l.b16 %v2950
      %v2996 = vunpack.c.l.b16 %v2953
      %v2997 = vunpack.c.l.b16 %v2957
      %v2998 = vunpack.c.l.b16 %v2960
      %v2999 = vunpack.c.l.b16 %v2964
      %v3000 = vunpack.c.l.b16 %v2967
      %v3001 = vpack.c.b16 %v2970, %v2969
      %v3002 = vpack.c.b16 %v2972, %v2971
      %v3003 = vpack.c.b16 %v2974, %v2973
      %v3004 = vpack.c.b16 %v2976, %v2975
      %v3005 = vpack.c.b16 %v2978, %v2977
      %v3006 = vpack.c.b16 %v2980, %v2979
      %v3007 = vpack.c.b16 %v2982, %v2981
      %v3008 = vpack.c.b16 %v2984, %v2983
      %v3009 = vpack.c.b16 %v2986, %v2985
      %v3010 = vpack.c.b16 %v2988, %v2987
      %v3011 = vpack.c.b16 %v2990, %v2989
      %v3012 = vpack.c.b16 %v2992, %v2991
      %v3013 = vpack.c.b16 %v2994, %v2993
      %v3014 = vpack.c.b16 %v2996, %v2995
      %v3015 = vpack.c.b16 %v2998, %v2997
      %v3016 = vpack.c.b16 %v3000, %v2999
      %v3018 = vunpack.c.l.b16 %v2968
      %v3019 = vpack.c.b16 %v3018, %v3018
      %v3020 = vrot.slane %v3019, 2
      %v3022 = vsel %vm743, %v3001, 0
      %v3025 = vsel %vm743, %v3002, 0
      %v3028 = vsel %vm743, %v3003, 0
      %v3031 = vsel %vm743, %v3004, 0
      %v3034 = vsel %vm743, %v3005, 0
      %v3037 = vsel %vm743, %v3006, 0
      %v3040 = vsel %vm743, %v3007, 0
      %v3043 = vsel %vm743, %v3008, 0
      %v3046 = vsel %vm743, %v3009, 0
      %v3049 = vsel %vm743, %v3010, 0
      %v3052 = vsel %vm743, %v3011, 0
      %v3055 = vsel %vm743, %v3012, 0
      %v3058 = vsel %vm743, %v3013, 0
      %v3061 = vsel %vm743, %v3014, 0
      %v3064 = vsel %vm743, %v3015, 0
      %v3067 = vsel %vm743, %v3016, 0
      %v3070 = vsel %vm792, %v3020, 0
      %3072 = vmatprep.subr.bf16.mxu0 0
      %3073 = vmatpush1.bf16.msra.mxu0 %v3070
      %3074 = vmatprep.subr.bf16.mxu0 0
      %3075 = vmatpush1.bf16.msra.mxu0 0
      %3076 = vmatprep.subr.bf16.mxu0 0
      %3077 = vmatpush1.bf16.msra.mxu0 0
      %3078 = vmatprep.subr.bf16.mxu0 0
      %3079 = vmatpush1.bf16.msra.mxu0 0
      %3080 = vmatprep.subr.bf16.mxu0 0
      %3081 = vmatpush1.bf16.msra.mxu0 0
      %3082 = vmatprep.subr.bf16.mxu0 0
      %3083 = vmatpush1.bf16.msra.mxu0 0
      %3084 = vmatprep.subr.bf16.mxu0 0
      %3085 = vmatpush1.bf16.msra.mxu0 0
      %3086 = vmatprep.subr.bf16.mxu0 0
      %3087 = vmatpush1.bf16.msra.mxu0 0
      %3088 = vmatprep.subr.bf16.mxu0 0
      %3089 = vmatpush1.bf16.msra.mxu0 0
      %3090 = vmatprep.subr.bf16.mxu0 0
      %3091 = vmatpush1.bf16.msra.mxu0 0
      %3092 = vmatprep.subr.bf16.mxu0 0
      %3093 = vmatpush1.bf16.msra.mxu0 0
      %3094 = vmatprep.subr.bf16.mxu0 0
      %3095 = vmatpush1.bf16.msra.mxu0 0
      %3096 = vmatprep.subr.bf16.mxu0 0
      %3097 = vmatpush1.bf16.msra.mxu0 0
      %3098 = vmatprep.subr.bf16.mxu0 0
      %3099 = vmatpush1.bf16.msra.mxu0 0
      %3100 = vmatprep.subr.bf16.mxu0 0
      %3101 = vmatpush1.bf16.msra.mxu0 0
      %3102 = vmatprep.subr.bf16.mxu0 0
      %3103 = vmatpush1.bf16.msra.mxu0 0
      %3104 = vmatprep.mubr.bf16.mxu0 0
      %3105 = vmatmul.mubr.bf16.gmra.mrb[0].mxu0 %v3022
      %v3106 = vpop.f32.mrb[0].mxu0
      %v3107 = vadd.f32 0.0, %v3106
      %v3108 = vpop.f32.mrb[0].mxu0
      %v3109 = vpop.f32.mrb[0].mxu0
      %v3110 = vadd.f32 0.0, %v3109
      %v3111 = vpop.f32.mrb[0].mxu0
      %3112 = vmatprep.mubr.bf16.mxu0 0
      %3113 = vmatmul.mubr.bf16.gmra.mrb[0].mxu0 %v3025
      %v3114 = vpop.f32.mrb[0].mxu0
      %v3115 = vadd.f32 0.0, %v3114
      %v3116 = vpop.f32.mrb[0].mxu0
      %v3117 = vpop.f32.mrb[0].mxu0
      %v3118 = vadd.f32 0.0, %v3117
      %v3119 = vpop.f32.mrb[0].mxu0
      %3120 = vmatprep.mubr.bf16.mxu0 0
      %3121 = vmatmul.mubr.bf16.gmra.mrb[0].mxu0 %v3028
      %v3122 = vpop.f32.mrb[0].mxu0
      %v3123 = vadd.f32 0.0, %v3122
      %v3124 = vpop.f32.mrb[0].mxu0
      %v3125 = vpop.f32.mrb[0].mxu0
      %v3126 = vadd.f32 0.0, %v3125
      %v3127 = vpop.f32.mrb[0].mxu0
      %3128 = vmatprep.mubr.bf16.mxu0 0
      %3129 = vmatmul.mubr.bf16.gmra.mrb[0].mxu0 %v3031
      %v3130 = vpop.f32.mrb[0].mxu0
      %v3131 = vadd.f32 0.0, %v3130
      %v3132 = vpop.f32.mrb[0].mxu0
      %v3133 = vpop.f32.mrb[0].mxu0
      %v3134 = vadd.f32 0.0, %v3133
      %v3135 = vpop.f32.mrb[0].mxu0
      %3136 = vmatprep.mubr.bf16.mxu0 0
      %3137 = vmatmul.mubr.bf16.gmra.mrb[0].mxu0 %v3034
      %v3138 = vpop.f32.mrb[0].mxu0
      %v3139 = vadd.f32 0.0, %v3138
      %v3140 = vpop.f32.mrb[0].mxu0
      %v3141 = vpop.f32.mrb[0].mxu0
      %v3142 = vadd.f32 0.0, %v3141
      %v3143 = vpop.f32.mrb[0].mxu0
      %3144 = vmatprep.mubr.bf16.mxu0 0
      %3145 = vmatmul.mubr.bf16.gmra.mrb[0].mxu0 %v3037
      %v3146 = vpop.f32.mrb[0].mxu0
      %v3147 = vadd.f32 0.0, %v3146
      %v3148 = vpop.f32.mrb[0].mxu0
      %v3149 = vpop.f32.mrb[0].mxu0
      %v3150 = vadd.f32 0.0, %v3149
      %v3151 = vpop.f32.mrb[0].mxu0
      %3152 = vmatprep.mubr.bf16.mxu0 0
      %3153 = vmatmul.mubr.bf16.gmra.mrb[0].mxu0 %v3040
      %v3154 = vpop.f32.mrb[0].mxu0
      %v3155 = vadd.f32 0.0, %v3154
      %v3156 = vpop.f32.mrb[0].mxu0
      %v3157 = vpop.f32.mrb[0].mxu0
      %v3158 = vadd.f32 0.0, %v3157
      %v3159 = vpop.f32.mrb[0].mxu0
      %3160 = vmatprep.mubr.bf16.mxu0 0
      %3161 = vmatmul.mubr.bf16.gmra.mrb[0].mxu0 %v3043
      %v3162 = vpop.f32.mrb[0].mxu0
      %v3163 = vadd.f32 0.0, %v3162
      %v3164 = vpop.f32.mrb[0].mxu0
      %v3165 = vpop.f32.mrb[0].mxu0
      %v3166 = vadd.f32 0.0, %v3165
      %v3167 = vpop.f32.mrb[0].mxu0
      %3168 = vmatprep.mubr.bf16.mxu0 0
      %3169 = vmatmul.mubr.bf16.gmra.mrb[0].mxu0 %v3046
      %v3170 = vpop.f32.mrb[0].mxu0
      %v3171 = vadd.f32 0.0, %v3170
      %v3172 = vpop.f32.mrb[0].mxu0
      %v3173 = vpop.f32.mrb[0].mxu0
      %v3174 = vadd.f32 0.0, %v3173
      %v3175 = vpop.f32.mrb[0].mxu0
      %3176 = vmatprep.mubr.bf16.mxu0 0
      %3177 = vmatmul.mubr.bf16.gmra.mrb[0].mxu0 %v3049
      %v3178 = vpop.f32.mrb[0].mxu0
      %v3179 = vadd.f32 0.0, %v3178
      %v3180 = vpop.f32.mrb[0].mxu0
      %v3181 = vpop.f32.mrb[0].mxu0
      %v3182 = vadd.f32 0.0, %v3181
      %v3183 = vpop.f32.mrb[0].mxu0
      %3184 = vmatprep.mubr.bf16.mxu0 0
      %3185 = vmatmul.mubr.bf16.gmra.mrb[0].mxu0 %v3052
      %v3186 = vpop.f32.mrb[0].mxu0
      %v3187 = vadd.f32 0.0, %v3186
      %v3188 = vpop.f32.mrb[0].mxu0
      %v3189 = vpop.f32.mrb[0].mxu0
      %v3190 = vadd.f32 0.0, %v3189
      %v3191 = vpop.f32.mrb[0].mxu0
      %3192 = vmatprep.mubr.bf16.mxu0 0
      %3193 = vmatmul.mubr.bf16.gmra.mrb[0].mxu0 %v3055
      %v3194 = vpop.f32.mrb[0].mxu0
      %v3195 = vadd.f32 0.0, %v3194
      %v3196 = vpop.f32.mrb[0].mxu0
      %v3197 = vpop.f32.mrb[0].mxu0
      %v3198 = vadd.f32 0.0, %v3197
      %v3199 = vpop.f32.mrb[0].mxu0
      %3200 = vmatprep.mubr.bf16.mxu0 0
      %3201 = vmatmul.mubr.bf16.gmra.mrb[0].mxu0 %v3058
      %v3202 = vpop.f32.mrb[0].mxu0
      %v3203 = vadd.f32 0.0, %v3202
      %v3204 = vpop.f32.mrb[0].mxu0
      %v3205 = vpop.f32.mrb[0].mxu0
      %v3206 = vadd.f32 0.0, %v3205
      %v3207 = vpop.f32.mrb[0].mxu0
      %3208 = vmatprep.mubr.bf16.mxu0 0
      %3209 = vmatmul.mubr.bf16.gmra.mrb[0].mxu0 %v3061
      %v3210 = vpop.f32.mrb[0].mxu0
      %v3211 = vadd.f32 0.0, %v3210
      %v3212 = vpop.f32.mrb[0].mxu0
      %v3213 = vpop.f32.mrb[0].mxu0
      %v3214 = vadd.f32 0.0, %v3213
      %v3215 = vpop.f32.mrb[0].mxu0
      %3216 = vmatprep.mubr.bf16.mxu0 0
      %3217 = vmatmul.mubr.bf16.gmra.mrb[0].mxu0 %v3064
      %v3218 = vpop.f32.mrb[0].mxu0
      %v3219 = vadd.f32 0.0, %v3218
      %v3220 = vpop.f32.mrb[0].mxu0
      %v3221 = vpop.f32.mrb[0].mxu0
      %v3222 = vadd.f32 0.0, %v3221
      %v3223 = vpop.f32.mrb[0].mxu0
      %3224 = vmatprep.mubr.bf16.mxu0 0
      %3225 = vmatmul.mubr.bf16.gmra.mrb[0].mxu0 %v3067
      %v3226 = vpop.f32.mrb[0].mxu0
      %v3227 = vadd.f32 0.0, %v3226
      %v3228 = vpop.f32.mrb[0].mxu0
      %v3229 = vpop.f32.mrb[0].mxu0
      %v3230 = vadd.f32 0.0, %v3229
      %v3231 = vpop.f32.mrb[0].mxu0
      %3232 = vdwg.mxu0
      %v3233 = vadd.f32 %v2760, %v3107
      %v3234 = vadd.f32 %v2761, %v3110
      %v3235 = vadd.f32 %v2762, %v3115
      %v3236 = vadd.f32 %v2763, %v3118
      %v3237 = vadd.f32 %v2764, %v3123
      %v3238 = vadd.f32 %v2765, %v3126
      %v3239 = vadd.f32 %v2766, %v3131
      %v3240 = vadd.f32 %v2767, %v3134
      %v3241 = vadd.f32 %v2768, %v3139
      %v3242 = vadd.f32 %v2769, %v3142
      %v3243 = vadd.f32 %v2770, %v3147
      %v3244 = vadd.f32 %v2771, %v3150
      %v3245 = vadd.f32 %v2772, %v3155
      %v3246 = vadd.f32 %v2773, %v3158
      %v3247 = vadd.f32 %v2774, %v3163
      %v3248 = vadd.f32 %v2775, %v3166
      %v3249 = vadd.f32 %v2776, %v3171
      %v3250 = vadd.f32 %v2777, %v3174
      %v3251 = vadd.f32 %v2778, %v3179
      %v3252 = vadd.f32 %v2779, %v3182
      %v3253 = vadd.f32 %v2780, %v3187
      %v3254 = vadd.f32 %v2781, %v3190
      %v3255 = vadd.f32 %v2782, %v3195
      %v3256 = vadd.f32 %v2783, %v3198
      %v3257 = vadd.f32 %v2784, %v3203
      %v3258 = vadd.f32 %v2785, %v3206
      %v3259 = vadd.f32 %v2786, %v3211
      %v3260 = vadd.f32 %v2787, %v3214
      %v3261 = vadd.f32 %v2788, %v3219
      %v3262 = vadd.f32 %v2789, %v3222
      %v3263 = vadd.f32 %v2790, %v3227
      %v3264 = vadd.f32 %v2791, %v3230
      %s3265 = scalar_lea.vmem %s233, 24
      %v3266 = vld [vmem:[%s3265] sm:$0xf]
      %v3267 = vld [vmem:[%s3265 + $0x4] sm:$0xf]
      %v3268 = vld [vmem:[%s3265 + $0xc] sm:$0xf]
      %v3269 = vld [vmem:[%s3265 + $0x10] sm:$0xf]
      %v3270 = vld [vmem:[%s3265 + $0x18] sm:$0xf]
      %v3271 = vld [vmem:[%s3265 + $0x1c] sm:$0xf]
      %v3272 = vld [vmem:[%s3265 + $0x24] sm:$0xf]
      %v3273 = vld [vmem:[%s3265 + $0x28] sm:$0xf]
      %v3274 = vld [vmem:[%s3265 + $0x30] sm:$0xf]
      %v3275 = vld [vmem:[%s3265 + $0x34] sm:$0xf]
      %v3276 = vld [vmem:[%s3265 + $0x3c] sm:$0xf]
      %v3277 = vld [vmem:[%s3265 + $0x40] sm:$0xf]
      %v3278 = vld [vmem:[%s3265 + $0x48] sm:$0xf]
      %v3279 = vld [vmem:[%s3265 + $0x4c] sm:$0xf]
      %v3280 = vld [vmem:[%s3265 + $0x54] sm:$0xf]
      %v3281 = vld [vmem:[%s3265 + $0x58] sm:$0xf]
      %v3282 = vld [vmem:[%s3265 + $0x60] sm:$0xf]
      %v3283 = vld [vmem:[%s3265 + $0x64] sm:$0xf]
      %v3284 = vld [vmem:[%s3265 + $0x6c] sm:$0xf]
      %v3285 = vld [vmem:[%s3265 + $0x70] sm:$0xf]
      %v3286 = vld [vmem:[%s3265 + $0x78] sm:$0xf]
      %v3287 = vld [vmem:[%s3265 + $0x7c] sm:$0xf]
      %v3288 = vld [vmem:[%s3265 + $0x84] sm:$0xf]
      %v3289 = vld [vmem:[%s3265 + $0x88] sm:$0xf]
      %v3290 = vld [vmem:[%s3265 + $0x90] sm:$0xf]
      %v3291 = vld [vmem:[%s3265 + $0x94] sm:$0xf]
      %v3292 = vld [vmem:[%s3265 + $0x9c] sm:$0xf]
      %v3293 = vld [vmem:[%s3265 + $0xa0] sm:$0xf]
      %v3294 = vld [vmem:[%s3265 + $0xa8] sm:$0xf]
      %v3295 = vld [vmem:[%s3265 + $0xac] sm:$0xf]
      %v3296 = vld [vmem:[%s3265 + $0xb4] sm:$0xf]
      %v3297 = vld [vmem:[%s3265 + $0xb8] sm:$0xf]
      %v3298 = vld [vmem:[%s237 + $0xc] sm:$0x3]
      %v3331 = vunpack.c.l.b16 %v3266
      %v3332 = vunpack.c.l.b16 %v3267
      %v3333 = vunpack.c.l.b16 %v3268
      %v3334 = vunpack.c.l.b16 %v3269
      %v3335 = vunpack.c.l.b16 %v3270
      %v3336 = vunpack.c.l.b16 %v3271
      %v3337 = vunpack.c.l.b16 %v3272
      %v3338 = vunpack.c.l.b16 %v3273
      %v3339 = vunpack.c.l.b16 %v3274
      %v3340 = vunpack.c.l.b16 %v3275
      %v3341 = vunpack.c.l.b16 %v3276
      %v3342 = vunpack.c.l.b16 %v3277
      %v3343 = vunpack.c.l.b16 %v3278
      %v3344 = vunpack.c.l.b16 %v3279
      %v3345 = vunpack.c.l.b16 %v3280
      %v3346 = vunpack.c.l.b16 %v3281
      %v3347 = vunpack.c.l.b16 %v3282
      %v3348 = vunpack.c.l.b16 %v3283
      %v3349 = vunpack.c.l.b16 %v3284
      %v3350 = vunpack.c.l.b16 %v3285
      %v3351 = vunpack.c.l.b16 %v3286
      %v3352 = vunpack.c.l.b16 %v3287
      %v3353 = vunpack.c.l.b16 %v3288
      %v3354 = vunpack.c.l.b16 %v3289
      %v3355 = vunpack.c.l.b16 %v3290
      %v3356 = vunpack.c.l.b16 %v3291
      %v3357 = vunpack.c.l.b16 %v3292
      %v3358 = vunpack.c.l.b16 %v3293
      %v3359 = vunpack.c.l.b16 %v3294
      %v3360 = vunpack.c.l.b16 %v3295
      %v3361 = vunpack.c.l.b16 %v3296
      %v3362 = vunpack.c.l.b16 %v3297
      %v3363 = vpack.c.b16 %v3332, %v3331
      %v3364 = vpack.c.b16 %v3334, %v3333
      %v3365 = vpack.c.b16 %v3336, %v3335
      %v3366 = vpack.c.b16 %v3338, %v3337
      %v3367 = vpack.c.b16 %v3340, %v3339
      %v3368 = vpack.c.b16 %v3342, %v3341
      %v3369 = vpack.c.b16 %v3344, %v3343
      %v3370 = vpack.c.b16 %v3346, %v3345
      %v3371 = vpack.c.b16 %v3348, %v3347
      %v3372 = vpack.c.b16 %v3350, %v3349
      %v3373 = vpack.c.b16 %v3352, %v3351
      %v3374 = vpack.c.b16 %v3354, %v3353
      %v3375 = vpack.c.b16 %v3356, %v3355
      %v3376 = vpack.c.b16 %v3358, %v3357
      %v3377 = vpack.c.b16 %v3360, %v3359
      %v3378 = vpack.c.b16 %v3362, %v3361
      %v3380 = vsel %vm743, %v3363, 0
      %v3383 = vsel %vm743, %v3364, 0
      %v3386 = vsel %vm743, %v3365, 0
      %v3389 = vsel %vm743, %v3366, 0
      %v3392 = vsel %vm743, %v3367, 0
      %v3395 = vsel %vm743, %v3368, 0
      %v3398 = vsel %vm743, %v3369, 0
      %v3401 = vsel %vm743, %v3370, 0
      %v3404 = vsel %vm743, %v3371, 0
      %v3407 = vsel %vm743, %v3372, 0
      %v3410 = vsel %vm743, %v3373, 0
      %v3413 = vsel %vm743, %v3374, 0
      %v3416 = vsel %vm743, %v3375, 0
      %v3419 = vsel %vm743, %v3376, 0
      %v3422 = vsel %vm743, %v3377, 0
      %v3425 = vsel %vm743, %v3378, 0
      %v3428 = vsel %vm792, %v3298, 0
      %3430 = vmatprep.subr.bf16.mxu0 0
      %3431 = vmatpush1.bf16.msra.mxu0 %v3428
      %3432 = vmatprep.subr.bf16.mxu0 0
      %3433 = vmatpush1.bf16.msra.mxu0 0
      %3434 = vmatprep.subr.bf16.mxu0 0
      %3435 = vmatpush1.bf16.msra.mxu0 0
      %3436 = vmatprep.subr.bf16.mxu0 0
      %3437 = vmatpush1.bf16.msra.mxu0 0
      %3438 = vmatprep.subr.bf16.mxu0 0
      %3439 = vmatpush1.bf16.msra.mxu0 0
      %3440 = vmatprep.subr.bf16.mxu0 0
      %3441 = vmatpush1.bf16.msra.mxu0 0
      %3442 = vmatprep.subr.bf16.mxu0 0
      %3443 = vmatpush1.bf16.msra.mxu0 0
      %3444 = vmatprep.subr.bf16.mxu0 0
      %3445 = vmatpush1.bf16.msra.mxu0 0
      %3446 = vmatprep.subr.bf16.mxu0 0
      %3447 = vmatpush1.bf16.msra.mxu0 0
      %3448 = vmatprep.subr.bf16.mxu0 0
      %3449 = vmatpush1.bf16.msra.mxu0 0
      %3450 = vmatprep.subr.bf16.mxu0 0
      %3451 = vmatpush1.bf16.msra.mxu0 0
      %3452 = vmatprep.subr.bf16.mxu0 0
      %3453 = vmatpush1.bf16.msra.mxu0 0
      %3454 = vmatprep.subr.bf16.mxu0 0
      %3455 = vmatpush1.bf16.msra.mxu0 0
      %3456 = vmatprep.subr.bf16.mxu0 0
      %3457 = vmatpush1.bf16.msra.mxu0 0
      %3458 = vmatprep.subr.bf16.mxu0 0
      %3459 = vmatpush1.bf16.msra.mxu0 0
      %3460 = vmatprep.subr.bf16.mxu0 0
      %3461 = vmatpush1.bf16.msra.mxu0 0
      %3462 = vmatprep.mubr.bf16.mxu0 0
      %3463 = vmatmul.mubr.bf16.gmra.mrb[0].mxu0 %v3380
      %v3464 = vpop.f32.mrb[0].mxu0
      %v3465 = vadd.f32 0.0, %v3464
      %v3466 = vpop.f32.mrb[0].mxu0
      %v3467 = vpop.f32.mrb[0].mxu0
      %v3468 = vadd.f32 0.0, %v3467
      %v3469 = vpop.f32.mrb[0].mxu0
      %3470 = vmatprep.mubr.bf16.mxu0 0
      %3471 = vmatmul.mubr.bf16.gmra.mrb[0].mxu0 %v3383
      %v3472 = vpop.f32.mrb[0].mxu0
      %v3473 = vadd.f32 0.0, %v3472
      %v3474 = vpop.f32.mrb[0].mxu0
      %v3475 = vpop.f32.mrb[0].mxu0
      %v3476 = vadd.f32 0.0, %v3475
      %v3477 = vpop.f32.mrb[0].mxu0
      %3478 = vmatprep.mubr.bf16.mxu0 0
      %3479 = vmatmul.mubr.bf16.gmra.mrb[0].mxu0 %v3386
      %v3480 = vpop.f32.mrb[0].mxu0
      %v3481 = vadd.f32 0.0, %v3480
      %v3482 = vpop.f32.mrb[0].mxu0
      %v3483 = vpop.f32.mrb[0].mxu0
      %v3484 = vadd.f32 0.0, %v3483
      %v3485 = vpop.f32.mrb[0].mxu0
      %3486 = vmatprep.mubr.bf16.mxu0 0
      %3487 = vmatmul.mubr.bf16.gmra.mrb[0].mxu0 %v3389
      %v3488 = vpop.f32.mrb[0].mxu0
      %v3489 = vadd.f32 0.0, %v3488
      %v3490 = vpop.f32.mrb[0].mxu0
      %v3491 = vpop.f32.mrb[0].mxu0
      %v3492 = vadd.f32 0.0, %v3491
      %v3493 = vpop.f32.mrb[0].mxu0
      %3494 = vmatprep.mubr.bf16.mxu0 0
      %3495 = vmatmul.mubr.bf16.gmra.mrb[0].mxu0 %v3392
      %v3496 = vpop.f32.mrb[0].mxu0
      %v3497 = vadd.f32 0.0, %v3496
      %v3498 = vpop.f32.mrb[0].mxu0
      %v3499 = vpop.f32.mrb[0].mxu0
      %v3500 = vadd.f32 0.0, %v3499
      %v3501 = vpop.f32.mrb[0].mxu0
      %3502 = vmatprep.mubr.bf16.mxu0 0
      %3503 = vmatmul.mubr.bf16.gmra.mrb[0].mxu0 %v3395
      %v3504 = vpop.f32.mrb[0].mxu0
      %v3505 = vadd.f32 0.0, %v3504
      %v3506 = vpop.f32.mrb[0].mxu0
      %v3507 = vpop.f32.mrb[0].mxu0
      %v3508 = vadd.f32 0.0, %v3507
      %v3509 = vpop.f32.mrb[0].mxu0
      %3510 = vmatprep.mubr.bf16.mxu0 0
      %3511 = vmatmul.mubr.bf16.gmra.mrb[0].mxu0 %v3398
      %v3512 = vpop.f32.mrb[0].mxu0
      %v3513 = vadd.f32 0.0, %v3512
      %v3514 = vpop.f32.mrb[0].mxu0
      %v3515 = vpop.f32.mrb[0].mxu0
      %v3516 = vadd.f32 0.0, %v3515
      %v3517 = vpop.f32.mrb[0].mxu0
      %3518 = vmatprep.mubr.bf16.mxu0 0
      %3519 = vmatmul.mubr.bf16.gmra.mrb[0].mxu0 %v3401
      %v3520 = vpop.f32.mrb[0].mxu0
      %v3521 = vadd.f32 0.0, %v3520
      %v3522 = vpop.f32.mrb[0].mxu0
      %v3523 = vpop.f32.mrb[0].mxu0
      %v3524 = vadd.f32 0.0, %v3523
      %v3525 = vpop.f32.mrb[0].mxu0
      %3526 = vmatprep.mubr.bf16.mxu0 0
      %3527 = vmatmul.mubr.bf16.gmra.mrb[0].mxu0 %v3404
      %v3528 = vpop.f32.mrb[0].mxu0
      %v3529 = vadd.f32 0.0, %v3528
      %v3530 = vpop.f32.mrb[0].mxu0
      %v3531 = vpop.f32.mrb[0].mxu0
      %v3532 = vadd.f32 0.0, %v3531
      %v3533 = vpop.f32.mrb[0].mxu0
      %3534 = vmatprep.mubr.bf16.mxu0 0
      %3535 = vmatmul.mubr.bf16.gmra.mrb[0].mxu0 %v3407
      %v3536 = vpop.f32.mrb[0].mxu0
      %v3537 = vadd.f32 0.0, %v3536
      %v3538 = vpop.f32.mrb[0].mxu0
      %v3539 = vpop.f32.mrb[0].mxu0
      %v3540 = vadd.f32 0.0, %v3539
      %v3541 = vpop.f32.mrb[0].mxu0
      %3542 = vmatprep.mubr.bf16.mxu0 0
      %3543 = vmatmul.mubr.bf16.gmra.mrb[0].mxu0 %v3410
      %v3544 = vpop.f32.mrb[0].mxu0
      %v3545 = vadd.f32 0.0, %v3544
      %v3546 = vpop.f32.mrb[0].mxu0
      %v3547 = vpop.f32.mrb[0].mxu0
      %v3548 = vadd.f32 0.0, %v3547
      %v3549 = vpop.f32.mrb[0].mxu0
      %3550 = vmatprep.mubr.bf16.mxu0 0
      %3551 = vmatmul.mubr.bf16.gmra.mrb[0].mxu0 %v3413
      %v3552 = vpop.f32.mrb[0].mxu0
      %v3553 = vadd.f32 0.0, %v3552
      %v3554 = vpop.f32.mrb[0].mxu0
      %v3555 = vpop.f32.mrb[0].mxu0
      %v3556 = vadd.f32 0.0, %v3555
      %v3557 = vpop.f32.mrb[0].mxu0
      %3558 = vmatprep.mubr.bf16.mxu0 0
      %3559 = vmatmul.mubr.bf16.gmra.mrb[0].mxu0 %v3416
      %v3560 = vpop.f32.mrb[0].mxu0
      %v3561 = vadd.f32 0.0, %v3560
      %v3562 = vpop.f32.mrb[0].mxu0
      %v3563 = vpop.f32.mrb[0].mxu0
      %v3564 = vadd.f32 0.0, %v3563
      %v3565 = vpop.f32.mrb[0].mxu0
      %3566 = vmatprep.mubr.bf16.mxu0 0
      %3567 = vmatmul.mubr.bf16.gmra.mrb[0].mxu0 %v3419
      %v3568 = vpop.f32.mrb[0].mxu0
      %v3569 = vadd.f32 0.0, %v3568
      %v3570 = vpop.f32.mrb[0].mxu0
      %v3571 = vpop.f32.mrb[0].mxu0
      %v3572 = vadd.f32 0.0, %v3571
      %v3573 = vpop.f32.mrb[0].mxu0
      %3574 = vmatprep.mubr.bf16.mxu0 0
      %3575 = vmatmul.mubr.bf16.gmra.mrb[0].mxu0 %v3422
      %v3576 = vpop.f32.mrb[0].mxu0
      %v3577 = vadd.f32 0.0, %v3576
      %v3578 = vpop.f32.mrb[0].mxu0
      %v3579 = vpop.f32.mrb[0].mxu0
      %v3580 = vadd.f32 0.0, %v3579
      %v3581 = vpop.f32.mrb[0].mxu0
      %3582 = vmatprep.mubr.bf16.mxu0 0
      %3583 = vmatmul.mubr.bf16.gmra.mrb[0].mxu0 %v3425
      %v3584 = vpop.f32.mrb[0].mxu0
      %v3585 = vadd.f32 0.0, %v3584
      %v3586 = vpop.f32.mrb[0].mxu0
      %v3587 = vpop.f32.mrb[0].mxu0
      %v3588 = vadd.f32 0.0, %v3587
      %v3589 = vpop.f32.mrb[0].mxu0
      %3590 = vdwg.mxu0
      %v3591 = vadd.f32 %v3233, %v3465
      %v3592 = vadd.f32 %v3234, %v3468
      %v3593 = vadd.f32 %v3235, %v3473
      %v3594 = vadd.f32 %v3236, %v3476
      %v3595 = vadd.f32 %v3237, %v3481
      %v3596 = vadd.f32 %v3238, %v3484
      %v3597 = vadd.f32 %v3239, %v3489
      %v3598 = vadd.f32 %v3240, %v3492
      %v3599 = vadd.f32 %v3241, %v3497
      %v3600 = vadd.f32 %v3242, %v3500
      %v3601 = vadd.f32 %v3243, %v3505
      %v3602 = vadd.f32 %v3244, %v3508
      %v3603 = vadd.f32 %v3245, %v3513
      %v3604 = vadd.f32 %v3246, %v3516
      %v3605 = vadd.f32 %v3247, %v3521
      %v3606 = vadd.f32 %v3248, %v3524
      %v3607 = vadd.f32 %v3249, %v3529
      %v3608 = vadd.f32 %v3250, %v3532
      %v3609 = vadd.f32 %v3251, %v3537
      %v3610 = vadd.f32 %v3252, %v3540
      %v3611 = vadd.f32 %v3253, %v3545
      %v3612 = vadd.f32 %v3254, %v3548
      %v3613 = vadd.f32 %v3255, %v3553
      %v3614 = vadd.f32 %v3256, %v3556
      %v3615 = vadd.f32 %v3257, %v3561
      %v3616 = vadd.f32 %v3258, %v3564
      %v3617 = vadd.f32 %v3259, %v3569
      %v3618 = vadd.f32 %v3260, %v3572
      %v3619 = vadd.f32 %v3261, %v3577
      %v3620 = vadd.f32 %v3262, %v3580
      %v3621 = vadd.f32 %v3263, %v3585
      %v3622 = vadd.f32 %v3264, %v3588
      %v3623 = vld [vmem:[%s3265] sm:$0xf]
      %v3624 = vld [vmem:[%s3265 + $0x4] sm:$0xf]
      %v3625 = vld [vmem:[%s3265 + $0x8] sm:$0x1]
      %v3626 = vld [vmem:[%s3265 + $0xc] sm:$0xf]
      %v3627 = vld [vmem:[%s3265 + $0x10] sm:$0xf]
      %v3628 = vld [vmem:[%s3265 + $0x14] sm:$0x1]
      %v3629 = vld [vmem:[%s3265 + $0x18] sm:$0xf]
      %v3630 = vld [vmem:[%s3265 + $0x1c] sm:$0xf]
      %v3631 = vld [vmem:[%s3265 + $0x20] sm:$0x1]
      %v3632 = vld [vmem:[%s3265 + $0x24] sm:$0xf]
      %v3633 = vld [vmem:[%s3265 + $0x28] sm:$0xf]
      %v3634 = vld [vmem:[%s3265 + $0x2c] sm:$0x1]
      %v3635 = vld [vmem:[%s3265 + $0x30] sm:$0xf]
      %v3636 = vld [vmem:[%s3265 + $0x34] sm:$0xf]
      %v3637 = vld [vmem:[%s3265 + $0x38] sm:$0x1]
      %v3638 = vld [vmem:[%s3265 + $0x3c] sm:$0xf]
      %v3639 = vld [vmem:[%s3265 + $0x40] sm:$0xf]
      %v3640 = vld [vmem:[%s3265 + $0x44] sm:$0x1]
      %v3641 = vld [vmem:[%s3265 + $0x48] sm:$0xf]
      %v3642 = vld [vmem:[%s3265 + $0x4c] sm:$0xf]
      %v3643 = vld [vmem:[%s3265 + $0x50] sm:$0x1]
      %v3644 = vld [vmem:[%s3265 + $0x54] sm:$0xf]
      %v3645 = vld [vmem:[%s3265 + $0x58] sm:$0xf]
      %v3646 = vld [vmem:[%s3265 + $0x5c] sm:$0x1]
      %v3647 = vld [vmem:[%s3265 + $0x60] sm:$0xf]
      %v3648 = vld [vmem:[%s3265 + $0x64] sm:$0xf]
      %v3649 = vld [vmem:[%s3265 + $0x68] sm:$0x1]
      %v3650 = vld [vmem:[%s3265 + $0x6c] sm:$0xf]
      %v3651 = vld [vmem:[%s3265 + $0x70] sm:$0xf]
      %v3652 = vld [vmem:[%s3265 + $0x74] sm:$0x1]
      %v3653 = vld [vmem:[%s3265 + $0x78] sm:$0xf]
      %v3654 = vld [vmem:[%s3265 + $0x7c] sm:$0xf]
      %v3655 = vld [vmem:[%s3265 + $0x80] sm:$0x1]
      %v3656 = vld [vmem:[%s3265 + $0x84] sm:$0xf]
      %v3657 = vld [vmem:[%s3265 + $0x88] sm:$0xf]
      %v3658 = vld [vmem:[%s3265 + $0x8c] sm:$0x1]
      %v3659 = vld [vmem:[%s3265 + $0x90] sm:$0xf]
      %v3660 = vld [vmem:[%s3265 + $0x94] sm:$0xf]
      %v3661 = vld [vmem:[%s3265 + $0x98] sm:$0x1]
      %v3662 = vld [vmem:[%s3265 + $0x9c] sm:$0xf]
      %v3663 = vld [vmem:[%s3265 + $0xa0] sm:$0xf]
      %v3664 = vld [vmem:[%s3265 + $0xa4] sm:$0x1]
      %v3665 = vld [vmem:[%s3265 + $0xa8] sm:$0xf]
      %v3666 = vld [vmem:[%s3265 + $0xac] sm:$0xf]
      %v3667 = vld [vmem:[%s3265 + $0xb0] sm:$0x1]
      %v3668 = vld [vmem:[%s3265 + $0xb4] sm:$0xf]
      %v3669 = vld [vmem:[%s3265 + $0xb8] sm:$0xf]
      %v3670 = vld [vmem:[%s3265 + $0xbc] sm:$0x1]
      %v3672 = vshrl.u32 %v3623, 16
      %v3674 = vrot.slane %v3672, 4
      %v3675 = vshll.u32 %v3623, 16
      %v3677 = vrot.slane %v3675, 5
      %v3678 = vor.u32 %v3674, %v3677
      %v3679 = vrot.slane %v3678, 4
      %v3681 = vshll.u32 %v3624, 16
      %v3683 = vrot.slane %v3681, 5
      %v3684 = vsel %vm305, %v3679, %v3683
      %v3685 = vshrl.u32 %v3624, 16
      %v3687 = vrot.slane %v3685, 4
      %v3688 = vor.u32 %v3687, %v3683
      %v3689 = vrot.slane %v3688, 4
      %v3691 = vshll.u32 %v3625, 16
      %v3693 = vrot.slane %v3691, 5
      %v3694 = vsel %vm305, %v3689, %v3693
      %v3696 = vshrl.u32 %v3626, 16
      %v3698 = vrot.slane %v3696, 4
      %v3699 = vshll.u32 %v3626, 16
      %v3701 = vrot.slane %v3699, 5
      %v3702 = vor.u32 %v3698, %v3701
      %v3703 = vrot.slane %v3702, 4
      %v3705 = vshll.u32 %v3627, 16
      %v3707 = vrot.slane %v3705, 5
      %v3708 = vsel %vm305, %v3703, %v3707
      %v3709 = vshrl.u32 %v3627, 16
      %v3711 = vrot.slane %v3709, 4
      %v3712 = vor.u32 %v3711, %v3707
      %v3713 = vrot.slane %v3712, 4
      %v3715 = vshll.u32 %v3628, 16
      %v3717 = vrot.slane %v3715, 5
      %v3718 = vsel %vm305, %v3713, %v3717
      %v3720 = vshrl.u32 %v3629, 16
      %v3722 = vrot.slane %v3720, 4
      %v3723 = vshll.u32 %v3629, 16
      %v3725 = vrot.slane %v3723, 5
      %v3726 = vor.u32 %v3722, %v3725
      %v3727 = vrot.slane %v3726, 4
      %v3729 = vshll.u32 %v3630, 16
      %v3731 = vrot.slane %v3729, 5
      %v3732 = vsel %vm305, %v3727, %v3731
      %v3733 = vshrl.u32 %v3630, 16
      %v3735 = vrot.slane %v3733, 4
      %v3736 = vor.u32 %v3735, %v3731
      %v3737 = vrot.slane %v3736, 4
      %v3739 = vshll.u32 %v3631, 16
      %v3741 = vrot.slane %v3739, 5
      %v3742 = vsel %vm305, %v3737, %v3741
      %v3744 = vshrl.u32 %v3632, 16
      %v3746 = vrot.slane %v3744, 4
      %v3747 = vshll.u32 %v3632, 16
      %v3749 = vrot.slane %v3747, 5
      %v3750 = vor.u32 %v3746, %v3749
      %v3751 = vrot.slane %v3750, 4
      %v3753 = vshll.u32 %v3633, 16
      %v3755 = vrot.slane %v3753, 5
      %v3756 = vsel %vm305, %v3751, %v3755
      %v3757 = vshrl.u32 %v3633, 16
      %v3759 = vrot.slane %v3757, 4
      %v3760 = vor.u32 %v3759, %v3755
      %v3761 = vrot.slane %v3760, 4
      %v3763 = vshll.u32 %v3634, 16
      %v3765 = vrot.slane %v3763, 5
      %v3766 = vsel %vm305, %v3761, %v3765
      %v3768 = vshrl.u32 %v3635, 16
      %v3770 = vrot.slane %v3768, 4
      %v3771 = vshll.u32 %v3635, 16
      %v3773 = vrot.slane %v3771, 5
      %v3774 = vor.u32 %v3770, %v3773
      %v3775 = vrot.slane %v3774, 4
      %v3777 = vshll.u32 %v3636, 16
      %v3779 = vrot.slane %v3777, 5
      %v3780 = vsel %vm305, %v3775, %v3779
      %v3781 = vshrl.u32 %v3636, 16
      %v3783 = vrot.slane %v3781, 4
      %v3784 = vor.u32 %v3783, %v3779
      %v3785 = vrot.slane %v3784, 4
      %v3787 = vshll.u32 %v3637, 16
      %v3789 = vrot.slane %v3787, 5
      %v3790 = vsel %vm305, %v3785, %v3789
      %v3792 = vshrl.u32 %v3638, 16
      %v3794 = vrot.slane %v3792, 4
      %v3795 = vshll.u32 %v3638, 16
      %v3797 = vrot.slane %v3795, 5
      %v3798 = vor.u32 %v3794, %v3797
      %v3799 = vrot.slane %v3798, 4
      %v3801 = vshll.u32 %v3639, 16
      %v3803 = vrot.slane %v3801, 5
      %v3804 = vsel %vm305, %v3799, %v3803
      %v3805 = vshrl.u32 %v3639, 16
      %v3807 = vrot.slane %v3805, 4
      %v3808 = vor.u32 %v3807, %v3803
      %v3809 = vrot.slane %v3808, 4
      %v3811 = vshll.u32 %v3640, 16
      %v3813 = vrot.slane %v3811, 5
      %v3814 = vsel %vm305, %v3809, %v3813
      %v3816 = vshrl.u32 %v3641, 16
      %v3818 = vrot.slane %v3816, 4
      %v3819 = vshll.u32 %v3641, 16
      %v3821 = vrot.slane %v3819, 5
      %v3822 = vor.u32 %v3818, %v3821
      %v3823 = vrot.slane %v3822, 4
      %v3825 = vshll.u32 %v3642, 16
      %v3827 = vrot.slane %v3825, 5
      %v3828 = vsel %vm305, %v3823, %v3827
      %v3829 = vshrl.u32 %v3642, 16
      %v3831 = vrot.slane %v3829, 4
      %v3832 = vor.u32 %v3831, %v3827
      %v3833 = vrot.slane %v3832, 4
      %v3835 = vshll.u32 %v3643, 16
      %v3837 = vrot.slane %v3835, 5
      %v3838 = vsel %vm305, %v3833, %v3837
      %v3840 = vshrl.u32 %v3644, 16
      %v3842 = vrot.slane %v3840, 4
      %v3843 = vshll.u32 %v3644, 16
      %v3845 = vrot.slane %v3843, 5
      %v3846 = vor.u32 %v3842, %v3845
      %v3847 = vrot.slane %v3846, 4
      %v3849 = vshll.u32 %v3645, 16
      %v3851 = vrot.slane %v3849, 5
      %v3852 = vsel %vm305, %v3847, %v3851
      %v3853 = vshrl.u32 %v3645, 16
      %v3855 = vrot.slane %v3853, 4
      %v3856 = vor.u32 %v3855, %v3851
      %v3857 = vrot.slane %v3856, 4
      %v3859 = vshll.u32 %v3646, 16
      %v3861 = vrot.slane %v3859, 5
      %v3862 = vsel %vm305, %v3857, %v3861
      %v3864 = vshrl.u32 %v3647, 16
      %v3866 = vrot.slane %v3864, 4
      %v3867 = vshll.u32 %v3647, 16
      %v3869 = vrot.slane %v3867, 5
      %v3870 = vor.u32 %v3866, %v3869
      %v3871 = vrot.slane %v3870, 4
      %v3873 = vshll.u32 %v3648, 16
      %v3875 = vrot.slane %v3873, 5
      %v3876 = vsel %vm305, %v3871, %v3875
      %v3877 = vshrl.u32 %v3648, 16
      %v3879 = vrot.slane %v3877, 4
      %v3880 = vor.u32 %v3879, %v3875
      %v3881 = vrot.slane %v3880, 4
      %v3883 = vshll.u32 %v3649, 16
      %v3885 = vrot.slane %v3883, 5
      %v3886 = vsel %vm305, %v3881, %v3885
      %v3888 = vshrl.u32 %v3650, 16
      %v3890 = vrot.slane %v3888, 4
      %v3891 = vshll.u32 %v3650, 16
      %v3893 = vrot.slane %v3891, 5
      %v3894 = vor.u32 %v3890, %v3893
      %v3895 = vrot.slane %v3894, 4
      %v3897 = vshll.u32 %v3651, 16
      %v3899 = vrot.slane %v3897, 5
      %v3900 = vsel %vm305, %v3895, %v3899
      %v3901 = vshrl.u32 %v3651, 16
      %v3903 = vrot.slane %v3901, 4
      %v3904 = vor.u32 %v3903, %v3899
      %v3905 = vrot.slane %v3904, 4
      %v3907 = vshll.u32 %v3652, 16
      %v3909 = vrot.slane %v3907, 5
      %v3910 = vsel %vm305, %v3905, %v3909
      %v3912 = vshrl.u32 %v3653, 16
      %v3914 = vrot.slane %v3912, 4
      %v3915 = vshll.u32 %v3653, 16
      %v3917 = vrot.slane %v3915, 5
      %v3918 = vor.u32 %v3914, %v3917
      %v3919 = vrot.slane %v3918, 4
      %v3921 = vshll.u32 %v3654, 16
      %v3923 = vrot.slane %v3921, 5
      %v3924 = vsel %vm305, %v3919, %v3923
      %v3925 = vshrl.u32 %v3654, 16
      %v3927 = vrot.slane %v3925, 4
      %v3928 = vor.u32 %v3927, %v3923
      %v3929 = vrot.slane %v3928, 4
      %v3931 = vshll.u32 %v3655, 16
      %v3933 = vrot.slane %v3931, 5
      %v3934 = vsel %vm305, %v3929, %v3933
      %v3936 = vshrl.u32 %v3656, 16
      %v3938 = vrot.slane %v3936, 4
      %v3939 = vshll.u32 %v3656, 16
      %v3941 = vrot.slane %v3939, 5
      %v3942 = vor.u32 %v3938, %v3941
      %v3943 = vrot.slane %v3942, 4
      %v3945 = vshll.u32 %v3657, 16
      %v3947 = vrot.slane %v3945, 5
      %v3948 = vsel %vm305, %v3943, %v3947
      %v3949 = vshrl.u32 %v3657, 16
      %v3951 = vrot.slane %v3949, 4
      %v3952 = vor.u32 %v3951, %v3947
      %v3953 = vrot.slane %v3952, 4
      %v3955 = vshll.u32 %v3658, 16
      %v3957 = vrot.slane %v3955, 5
      %v3958 = vsel %vm305, %v3953, %v3957
      %v3960 = vshrl.u32 %v3659, 16
      %v3962 = vrot.slane %v3960, 4
      %v3963 = vshll.u32 %v3659, 16
      %v3965 = vrot.slane %v3963, 5
      %v3966 = vor.u32 %v3962, %v3965
      %v3967 = vrot.slane %v3966, 4
      %v3969 = vshll.u32 %v3660, 16
      %v3971 = vrot.slane %v3969, 5
      %v3972 = vsel %vm305, %v3967, %v3971
      %v3973 = vshrl.u32 %v3660, 16
      %v3975 = vrot.slane %v3973, 4
      %v3976 = vor.u32 %v3975, %v3971
      %v3977 = vrot.slane %v3976, 4
      %v3979 = vshll.u32 %v3661, 16
      %v3981 = vrot.slane %v3979, 5
      %v3982 = vsel %vm305, %v3977, %v3981
      %v3984 = vshrl.u32 %v3662, 16
      %v3986 = vrot.slane %v3984, 4
      %v3987 = vshll.u32 %v3662, 16
      %v3989 = vrot.slane %v3987, 5
      %v3990 = vor.u32 %v3986, %v3989
      %v3991 = vrot.slane %v3990, 4
      %v3993 = vshll.u32 %v3663, 16
      %v3995 = vrot.slane %v3993, 5
      %v3996 = vsel %vm305, %v3991, %v3995
      %v3997 = vshrl.u32 %v3663, 16
      %v3999 = vrot.slane %v3997, 4
      %v4000 = vor.u32 %v3999, %v3995
      %v4001 = vrot.slane %v4000, 4
      %v4003 = vshll.u32 %v3664, 16
      %v4005 = vrot.slane %v4003, 5
      %v4006 = vsel %vm305, %v4001, %v4005
      %v4008 = vshrl.u32 %v3665, 16
      %v4010 = vrot.slane %v4008, 4
      %v4011 = vshll.u32 %v3665, 16
      %v4013 = vrot.slane %v4011, 5
      %v4014 = vor.u32 %v4010, %v4013
      %v4015 = vrot.slane %v4014, 4
      %v4017 = vshll.u32 %v3666, 16
      %v4019 = vrot.slane %v4017, 5
      %v4020 = vsel %vm305, %v4015, %v4019
      %v4021 = vshrl.u32 %v3666, 16
      %v4023 = vrot.slane %v4021, 4
      %v4024 = vor.u32 %v4023, %v4019
      %v4025 = vrot.slane %v4024, 4
      %v4027 = vshll.u32 %v3667, 16
      %v4029 = vrot.slane %v4027, 5
      %v4030 = vsel %vm305, %v4025, %v4029
      %v4032 = vshrl.u32 %v3668, 16
      %v4034 = vrot.slane %v4032, 4
      %v4035 = vshll.u32 %v3668, 16
      %v4037 = vrot.slane %v4035, 5
      %v4038 = vor.u32 %v4034, %v4037
      %v4039 = vrot.slane %v4038, 4
      %v4041 = vshll.u32 %v3669, 16
      %v4043 = vrot.slane %v4041, 5
      %v4044 = vsel %vm305, %v4039, %v4043
      %v4045 = vshrl.u32 %v3669, 16
      %v4047 = vrot.slane %v4045, 4
      %v4048 = vor.u32 %v4047, %v4043
      %v4049 = vrot.slane %v4048, 4
      %v4051 = vshll.u32 %v3670, 16
      %v4053 = vrot.slane %v4051, 5
      %v4054 = vsel %vm305, %v4049, %v4053
      %v4055 = vld [vmem:[%s237 + $0xc] sm:$0xc]
      %v4056 = vunpack.c.l.b16 %v3684
      %v4057 = vunpack.c.l.b16 %v3694
      %v4058 = vunpack.c.l.b16 %v3708
      %v4059 = vunpack.c.l.b16 %v3718
      %v4060 = vunpack.c.l.b16 %v3732
      %v4061 = vunpack.c.l.b16 %v3742
      %v4062 = vunpack.c.l.b16 %v3756
      %v4063 = vunpack.c.l.b16 %v3766
      %v4064 = vunpack.c.l.b16 %v3780
      %v4065 = vunpack.c.l.b16 %v3790
      %v4066 = vunpack.c.l.b16 %v3804
      %v4067 = vunpack.c.l.b16 %v3814
      %v4068 = vunpack.c.l.b16 %v3828
      %v4069 = vunpack.c.l.b16 %v3838
      %v4070 = vunpack.c.l.b16 %v3852
      %v4071 = vunpack.c.l.b16 %v3862
      %v4072 = vunpack.c.l.b16 %v3876
      %v4073 = vunpack.c.l.b16 %v3886
      %v4074 = vunpack.c.l.b16 %v3900
      %v4075 = vunpack.c.l.b16 %v3910
      %v4076 = vunpack.c.l.b16 %v3924
      %v4077 = vunpack.c.l.b16 %v3934
      %v4078 = vunpack.c.l.b16 %v3948
      %v4079 = vunpack.c.l.b16 %v3958
      %v4080 = vunpack.c.l.b16 %v3972
      %v4081 = vunpack.c.l.b16 %v3982
      %v4082 = vunpack.c.l.b16 %v3996
      %v4083 = vunpack.c.l.b16 %v4006
      %v4084 = vunpack.c.l.b16 %v4020
      %v4085 = vunpack.c.l.b16 %v4030
      %v4086 = vunpack.c.l.b16 %v4044
      %v4087 = vunpack.c.l.b16 %v4054
      %v4088 = vpack.c.b16 %v4057, %v4056
      %v4089 = vpack.c.b16 %v4059, %v4058
      %v4090 = vpack.c.b16 %v4061, %v4060
      %v4091 = vpack.c.b16 %v4063, %v4062
      %v4092 = vpack.c.b16 %v4065, %v4064
      %v4093 = vpack.c.b16 %v4067, %v4066
      %v4094 = vpack.c.b16 %v4069, %v4068
      %v4095 = vpack.c.b16 %v4071, %v4070
      %v4096 = vpack.c.b16 %v4073, %v4072
      %v4097 = vpack.c.b16 %v4075, %v4074
      %v4098 = vpack.c.b16 %v4077, %v4076
      %v4099 = vpack.c.b16 %v4079, %v4078
      %v4100 = vpack.c.b16 %v4081, %v4080
      %v4101 = vpack.c.b16 %v4083, %v4082
      %v4102 = vpack.c.b16 %v4085, %v4084
      %v4103 = vpack.c.b16 %v4087, %v4086
      %v4105 = vunpack.c.l.b16 %v4055
      %v4106 = vpack.c.b16 %v4105, %v4105
      %v4107 = vrot.slane %v4106, 2
      %v4109 = vsel %vm743, %v4088, 0
      %v4112 = vsel %vm743, %v4089, 0
      %v4115 = vsel %vm743, %v4090, 0
      %v4118 = vsel %vm743, %v4091, 0
      %v4121 = vsel %vm743, %v4092, 0
      %v4124 = vsel %vm743, %v4093, 0
      %v4127 = vsel %vm743, %v4094, 0
      %v4130 = vsel %vm743, %v4095, 0
      %v4133 = vsel %vm743, %v4096, 0
      %v4136 = vsel %vm743, %v4097, 0
      %v4139 = vsel %vm743, %v4098, 0
      %v4142 = vsel %vm743, %v4099, 0
      %v4145 = vsel %vm743, %v4100, 0
      %v4148 = vsel %vm743, %v4101, 0
      %v4151 = vsel %vm743, %v4102, 0
      %v4154 = vsel %vm743, %v4103, 0
      %v4157 = vsel %vm792, %v4107, 0
      %4159 = vmatprep.subr.bf16.mxu0 0
      %4160 = vmatpush1.bf16.msra.mxu0 %v4157
      %4161 = vmatprep.subr.bf16.mxu0 0
      %4162 = vmatpush1.bf16.msra.mxu0 0
      %4163 = vmatprep.subr.bf16.mxu0 0
      %4164 = vmatpush1.bf16.msra.mxu0 0
      %4165 = vmatprep.subr.bf16.mxu0 0
      %4166 = vmatpush1.bf16.msra.mxu0 0
      %4167 = vmatprep.subr.bf16.mxu0 0
      %4168 = vmatpush1.bf16.msra.mxu0 0
      %4169 = vmatprep.subr.bf16.mxu0 0
      %4170 = vmatpush1.bf16.msra.mxu0 0
      %4171 = vmatprep.subr.bf16.mxu0 0
      %4172 = vmatpush1.bf16.msra.mxu0 0
      %4173 = vmatprep.subr.bf16.mxu0 0
      %4174 = vmatpush1.bf16.msra.mxu0 0
      %4175 = vmatprep.subr.bf16.mxu0 0
      %4176 = vmatpush1.bf16.msra.mxu0 0
      %4177 = vmatprep.subr.bf16.mxu0 0
      %4178 = vmatpush1.bf16.msra.mxu0 0
      %4179 = vmatprep.subr.bf16.mxu0 0
      %4180 = vmatpush1.bf16.msra.mxu0 0
      %4181 = vmatprep.subr.bf16.mxu0 0
      %4182 = vmatpush1.bf16.msra.mxu0 0
      %4183 = vmatprep.subr.bf16.mxu0 0
      %4184 = vmatpush1.bf16.msra.mxu0 0
      %4185 = vmatprep.subr.bf16.mxu0 0
      %4186 = vmatpush1.bf16.msra.mxu0 0
      %4187 = vmatprep.subr.bf16.mxu0 0
      %4188 = vmatpush1.bf16.msra.mxu0 0
      %4189 = vmatprep.subr.bf16.mxu0 0
      %4190 = vmatpush1.bf16.msra.mxu0 0
      %4191 = vmatprep.mubr.bf16.mxu0 0
      %4192 = vmatmul.mubr.bf16.gmra.mrb[0].mxu0 %v4109
      %v4193 = vpop.f32.mrb[0].mxu0
      %v4194 = vadd.f32 0.0, %v4193
      %v4195 = vpop.f32.mrb[0].mxu0
      %v4196 = vpop.f32.mrb[0].mxu0
      %v4197 = vadd.f32 0.0, %v4196
      %v4198 = vpop.f32.mrb[0].mxu0
      %4199 = vmatprep.mubr.bf16.mxu0 0
      %4200 = vmatmul.mubr.bf16.gmra.mrb[0].mxu0 %v4112
      %v4201 = vpop.f32.mrb[0].mxu0
      %v4202 = vadd.f32 0.0, %v4201
      %v4203 = vpop.f32.mrb[0].mxu0
      %v4204 = vpop.f32.mrb[0].mxu0
      %v4205 = vadd.f32 0.0, %v4204
      %v4206 = vpop.f32.mrb[0].mxu0
      %4207 = vmatprep.mubr.bf16.mxu0 0
      %4208 = vmatmul.mubr.bf16.gmra.mrb[0].mxu0 %v4115
      %v4209 = vpop.f32.mrb[0].mxu0
      %v4210 = vadd.f32 0.0, %v4209
      %v4211 = vpop.f32.mrb[0].mxu0
      %v4212 = vpop.f32.mrb[0].mxu0
      %v4213 = vadd.f32 0.0, %v4212
      %v4214 = vpop.f32.mrb[0].mxu0
      %4215 = vmatprep.mubr.bf16.mxu0 0
      %4216 = vmatmul.mubr.bf16.gmra.mrb[0].mxu0 %v4118
      %v4217 = vpop.f32.mrb[0].mxu0
      %v4218 = vadd.f32 0.0, %v4217
      %v4219 = vpop.f32.mrb[0].mxu0
      %v4220 = vpop.f32.mrb[0].mxu0
      %v4221 = vadd.f32 0.0, %v4220
      %v4222 = vpop.f32.mrb[0].mxu0
      %4223 = vmatprep.mubr.bf16.mxu0 0
      %4224 = vmatmul.mubr.bf16.gmra.mrb[0].mxu0 %v4121
      %v4225 = vpop.f32.mrb[0].mxu0
      %v4226 = vadd.f32 0.0, %v4225
      %v4227 = vpop.f32.mrb[0].mxu0
      %v4228 = vpop.f32.mrb[0].mxu0
      %v4229 = vadd.f32 0.0, %v4228
      %v4230 = vpop.f32.mrb[0].mxu0
      %4231 = vmatprep.mubr.bf16.mxu0 0
      %4232 = vmatmul.mubr.bf16.gmra.mrb[0].mxu0 %v4124
      %v4233 = vpop.f32.mrb[0].mxu0
      %v4234 = vadd.f32 0.0, %v4233
      %v4235 = vpop.f32.mrb[0].mxu0
      %v4236 = vpop.f32.mrb[0].mxu0
      %v4237 = vadd.f32 0.0, %v4236
      %v4238 = vpop.f32.mrb[0].mxu0
      %4239 = vmatprep.mubr.bf16.mxu0 0
      %4240 = vmatmul.mubr.bf16.gmra.mrb[0].mxu0 %v4127
      %v4241 = vpop.f32.mrb[0].mxu0
      %v4242 = vadd.f32 0.0, %v4241
      %v4243 = vpop.f32.mrb[0].mxu0
      %v4244 = vpop.f32.mrb[0].mxu0
      %v4245 = vadd.f32 0.0, %v4244
      %v4246 = vpop.f32.mrb[0].mxu0
      %4247 = vmatprep.mubr.bf16.mxu0 0
      %4248 = vmatmul.mubr.bf16.gmra.mrb[0].mxu0 %v4130
      %v4249 = vpop.f32.mrb[0].mxu0
      %v4250 = vadd.f32 0.0, %v4249
      %v4251 = vpop.f32.mrb[0].mxu0
      %v4252 = vpop.f32.mrb[0].mxu0
      %v4253 = vadd.f32 0.0, %v4252
      %v4254 = vpop.f32.mrb[0].mxu0
      %4255 = vmatprep.mubr.bf16.mxu0 0
      %4256 = vmatmul.mubr.bf16.gmra.mrb[0].mxu0 %v4133
      %v4257 = vpop.f32.mrb[0].mxu0
      %v4258 = vadd.f32 0.0, %v4257
      %v4259 = vpop.f32.mrb[0].mxu0
      %v4260 = vpop.f32.mrb[0].mxu0
      %v4261 = vadd.f32 0.0, %v4260
      %v4262 = vpop.f32.mrb[0].mxu0
      %4263 = vmatprep.mubr.bf16.mxu0 0
      %4264 = vmatmul.mubr.bf16.gmra.mrb[0].mxu0 %v4136
      %v4265 = vpop.f32.mrb[0].mxu0
      %v4266 = vadd.f32 0.0, %v4265
      %v4267 = vpop.f32.mrb[0].mxu0
      %v4268 = vpop.f32.mrb[0].mxu0
      %v4269 = vadd.f32 0.0, %v4268
      %v4270 = vpop.f32.mrb[0].mxu0
      %4271 = vmatprep.mubr.bf16.mxu0 0
      %4272 = vmatmul.mubr.bf16.gmra.mrb[0].mxu0 %v4139
      %v4273 = vpop.f32.mrb[0].mxu0
      %v4274 = vadd.f32 0.0, %v4273
      %v4275 = vpop.f32.mrb[0].mxu0
      %v4276 = vpop.f32.mrb[0].mxu0
      %v4277 = vadd.f32 0.0, %v4276
      %v4278 = vpop.f32.mrb[0].mxu0
      %4279 = vmatprep.mubr.bf16.mxu0 0
      %4280 = vmatmul.mubr.bf16.gmra.mrb[0].mxu0 %v4142
      %v4281 = vpop.f32.mrb[0].mxu0
      %v4282 = vadd.f32 0.0, %v4281
      %v4283 = vpop.f32.mrb[0].mxu0
      %v4284 = vpop.f32.mrb[0].mxu0
      %v4285 = vadd.f32 0.0, %v4284
      %v4286 = vpop.f32.mrb[0].mxu0
      %4287 = vmatprep.mubr.bf16.mxu0 0
      %4288 = vmatmul.mubr.bf16.gmra.mrb[0].mxu0 %v4145
      %v4289 = vpop.f32.mrb[0].mxu0
      %v4290 = vadd.f32 0.0, %v4289
      %v4291 = vpop.f32.mrb[0].mxu0
      %v4292 = vpop.f32.mrb[0].mxu0
      %v4293 = vadd.f32 0.0, %v4292
      %v4294 = vpop.f32.mrb[0].mxu0
      %4295 = vmatprep.mubr.bf16.mxu0 0
      %4296 = vmatmul.mubr.bf16.gmra.mrb[0].mxu0 %v4148
      %v4297 = vpop.f32.mrb[0].mxu0
      %v4298 = vadd.f32 0.0, %v4297
      %v4299 = vpop.f32.mrb[0].mxu0
      %v4300 = vpop.f32.mrb[0].mxu0
      %v4301 = vadd.f32 0.0, %v4300
      %v4302 = vpop.f32.mrb[0].mxu0
      %4303 = vmatprep.mubr.bf16.mxu0 0
      %4304 = vmatmul.mubr.bf16.gmra.mrb[0].mxu0 %v4151
      %v4305 = vpop.f32.mrb[0].mxu0
      %v4306 = vadd.f32 0.0, %v4305
      %v4307 = vpop.f32.mrb[0].mxu0
      %v4308 = vpop.f32.mrb[0].mxu0
      %v4309 = vadd.f32 0.0, %v4308
      %v4310 = vpop.f32.mrb[0].mxu0
      %4311 = vmatprep.mubr.bf16.mxu0 0
      %4312 = vmatmul.mubr.bf16.gmra.mrb[0].mxu0 %v4154
      %v4313 = vpop.f32.mrb[0].mxu0
      %v4314 = vadd.f32 0.0, %v4313
      %v4315 = vpop.f32.mrb[0].mxu0
      %v4316 = vpop.f32.mrb[0].mxu0
      %v4317 = vadd.f32 0.0, %v4316
      %v4318 = vpop.f32.mrb[0].mxu0
      %4319 = vdwg.mxu0
      %v4320 = vadd.f32 %v3591, %v4194
      %v4321 = vadd.f32 %v3592, %v4197
      %v4322 = vadd.f32 %v3593, %v4202
      %v4323 = vadd.f32 %v3594, %v4205
      %v4324 = vadd.f32 %v3595, %v4210
      %v4325 = vadd.f32 %v3596, %v4213
      %v4326 = vadd.f32 %v3597, %v4218
      %v4327 = vadd.f32 %v3598, %v4221
      %v4328 = vadd.f32 %v3599, %v4226
      %v4329 = vadd.f32 %v3600, %v4229
      %v4330 = vadd.f32 %v3601, %v4234
      %v4331 = vadd.f32 %v3602, %v4237
      %v4332 = vadd.f32 %v3603, %v4242
      %v4333 = vadd.f32 %v3604, %v4245
      %v4334 = vadd.f32 %v3605, %v4250
      %v4335 = vadd.f32 %v3606, %v4253
      %v4336 = vadd.f32 %v3607, %v4258
      %v4337 = vadd.f32 %v3608, %v4261
      %v4338 = vadd.f32 %v3609, %v4266
      %v4339 = vadd.f32 %v3610, %v4269
      %v4340 = vadd.f32 %v3611, %v4274
      %v4341 = vadd.f32 %v3612, %v4277
      %v4342 = vadd.f32 %v3613, %v4282
      %v4343 = vadd.f32 %v3614, %v4285
      %v4344 = vadd.f32 %v3615, %v4290
      %v4345 = vadd.f32 %v3616, %v4293
      %v4346 = vadd.f32 %v3617, %v4298
      %v4347 = vadd.f32 %v3618, %v4301
      %v4348 = vadd.f32 %v3619, %v4306
      %v4349 = vadd.f32 %v3620, %v4309
      %v4350 = vadd.f32 %v3621, %v4314
      %v4351 = vadd.f32 %v3622, %v4317
      %v4352 = vld [vmem:[%s3265] sm:$0xe]
      %v4353 = vld [vmem:[%s3265 + $0xc] sm:$0xe]
      %v4354 = vld [vmem:[%s3265 + $0x18] sm:$0xe]
      %v4355 = vld [vmem:[%s3265 + $0x24] sm:$0xe]
      %v4356 = vld [vmem:[%s3265 + $0x30] sm:$0xe]
      %v4357 = vld [vmem:[%s3265 + $0x3c] sm:$0xe]
      %v4358 = vld [vmem:[%s3265 + $0x48] sm:$0xe]
      %v4359 = vld [vmem:[%s3265 + $0x54] sm:$0xe]
      %v4360 = vld [vmem:[%s3265 + $0x60] sm:$0xe]
      %v4361 = vld [vmem:[%s3265 + $0x6c] sm:$0xe]
      %v4362 = vld [vmem:[%s3265 + $0x78] sm:$0xe]
      %v4363 = vld [vmem:[%s3265 + $0x84] sm:$0xe]
      %v4364 = vld [vmem:[%s3265 + $0x90] sm:$0xe]
      %v4365 = vld [vmem:[%s3265 + $0x9c] sm:$0xe]
      %v4366 = vld [vmem:[%s3265 + $0xa8] sm:$0xe]
      %v4367 = vld [vmem:[%s3265 + $0xb4] sm:$0xe]
      %v4416 = vrot.slane %v4352, 5
      %v4417 = vrot.slane %v4416, 4
      %v4418 = vrot.slane %v3624, 5
      %v4419 = vsel %vm1299, %v4417, %v4418
      %v4420 = vrot.slane %v4418, 4
      %v4421 = vrot.slane %v3625, 5
      %v4422 = vsel %vm1299, %v4420, %v4421
      %v4423 = vrot.slane %v4353, 5
      %v4424 = vrot.slane %v4423, 4
      %v4425 = vrot.slane %v3627, 5
      %v4426 = vsel %vm1299, %v4424, %v4425
      %v4427 = vrot.slane %v4425, 4
      %v4428 = vrot.slane %v3628, 5
      %v4429 = vsel %vm1299, %v4427, %v4428
      %v4430 = vrot.slane %v4354, 5
      %v4431 = vrot.slane %v4430, 4
      %v4432 = vrot.slane %v3630, 5
      %v4433 = vsel %vm1299, %v4431, %v4432
      %v4434 = vrot.slane %v4432, 4
      %v4435 = vrot.slane %v3631, 5
      %v4436 = vsel %vm1299, %v4434, %v4435
      %v4437 = vrot.slane %v4355, 5
      %v4438 = vrot.slane %v4437, 4
      %v4439 = vrot.slane %v3633, 5
      %v4440 = vsel %vm1299, %v4438, %v4439
      %v4441 = vrot.slane %v4439, 4
      %v4442 = vrot.slane %v3634, 5
      %v4443 = vsel %vm1299, %v4441, %v4442
      %v4444 = vrot.slane %v4356, 5
      %v4445 = vrot.slane %v4444, 4
      %v4446 = vrot.slane %v3636, 5
      %v4447 = vsel %vm1299, %v4445, %v4446
      %v4448 = vrot.slane %v4446, 4
      %v4449 = vrot.slane %v3637, 5
      %v4450 = vsel %vm1299, %v4448, %v4449
      %v4451 = vrot.slane %v4357, 5
      %v4452 = vrot.slane %v4451, 4
      %v4453 = vrot.slane %v3639, 5
      %v4454 = vsel %vm1299, %v4452, %v4453
      %v4455 = vrot.slane %v4453, 4
      %v4456 = vrot.slane %v3640, 5
      %v4457 = vsel %vm1299, %v4455, %v4456
      %v4458 = vrot.slane %v4358, 5
      %v4459 = vrot.slane %v4458, 4
      %v4460 = vrot.slane %v3642, 5
      %v4461 = vsel %vm1299, %v4459, %v4460
      %v4462 = vrot.slane %v4460, 4
      %v4463 = vrot.slane %v3643, 5
      %v4464 = vsel %vm1299, %v4462, %v4463
      %v4465 = vrot.slane %v4359, 5
      %v4466 = vrot.slane %v4465, 4
      %v4467 = vrot.slane %v3645, 5
      %v4468 = vsel %vm1299, %v4466, %v4467
      %v4469 = vrot.slane %v4467, 4
      %v4470 = vrot.slane %v3646, 5
      %v4471 = vsel %vm1299, %v4469, %v4470
      %v4472 = vrot.slane %v4360, 5
      %v4473 = vrot.slane %v4472, 4
      %v4474 = vrot.slane %v3648, 5
      %v4475 = vsel %vm1299, %v4473, %v4474
      %v4476 = vrot.slane %v4474, 4
      %v4477 = vrot.slane %v3649, 5
      %v4478 = vsel %vm1299, %v4476, %v4477
      %v4479 = vrot.slane %v4361, 5
      %v4480 = vrot.slane %v4479, 4
      %v4481 = vrot.slane %v3651, 5
      %v4482 = vsel %vm1299, %v4480, %v4481
      %v4483 = vrot.slane %v4481, 4
      %v4484 = vrot.slane %v3652, 5
      %v4485 = vsel %vm1299, %v4483, %v4484
      %v4486 = vrot.slane %v4362, 5
      %v4487 = vrot.slane %v4486, 4
      %v4488 = vrot.slane %v3654, 5
      %v4489 = vsel %vm1299, %v4487, %v4488
      %v4490 = vrot.slane %v4488, 4
      %v4491 = vrot.slane %v3655, 5
      %v4492 = vsel %vm1299, %v4490, %v4491
      %v4493 = vrot.slane %v4363, 5
      %v4494 = vrot.slane %v4493, 4
      %v4495 = vrot.slane %v3657, 5
      %v4496 = vsel %vm1299, %v4494, %v4495
      %v4497 = vrot.slane %v4495, 4
      %v4498 = vrot.slane %v3658, 5
      %v4499 = vsel %vm1299, %v4497, %v4498
      %v4500 = vrot.slane %v4364, 5
      %v4501 = vrot.slane %v4500, 4
      %v4502 = vrot.slane %v3660, 5
      %v4503 = vsel %vm1299, %v4501, %v4502
      %v4504 = vrot.slane %v4502, 4
      %v4505 = vrot.slane %v3661, 5
      %v4506 = vsel %vm1299, %v4504, %v4505
      %v4507 = vrot.slane %v4365, 5
      %v4508 = vrot.slane %v4507, 4
      %v4509 = vrot.slane %v3663, 5
      %v4510 = vsel %vm1299, %v4508, %v4509
      %v4511 = vrot.slane %v4509, 4
      %v4512 = vrot.slane %v3664, 5
      %v4513 = vsel %vm1299, %v4511, %v4512
      %v4514 = vrot.slane %v4366, 5
      %v4515 = vrot.slane %v4514, 4
      %v4516 = vrot.slane %v3666, 5
      %v4517 = vsel %vm1299, %v4515, %v4516
      %v4518 = vrot.slane %v4516, 4
      %v4519 = vrot.slane %v3667, 5
      %v4520 = vsel %vm1299, %v4518, %v4519
      %v4521 = vrot.slane %v4367, 5
      %v4522 = vrot.slane %v4521, 4
      %v4523 = vrot.slane %v3669, 5
      %v4524 = vsel %vm1299, %v4522, %v4523
      %v4525 = vrot.slane %v4523, 4
      %v4526 = vrot.slane %v3670, 5
      %v4527 = vsel %vm1299, %v4525, %v4526
      %v4528 = vld [vmem:[%s237 + $0x10] sm:$0x3]
      %v4529 = vunpack.c.l.b16 %v4419
      %v4530 = vunpack.c.l.b16 %v4422
      %v4531 = vunpack.c.l.b16 %v4426
      %v4532 = vunpack.c.l.b16 %v4429
      %v4533 = vunpack.c.l.b16 %v4433
      %v4534 = vunpack.c.l.b16 %v4436
      %v4535 = vunpack.c.l.b16 %v4440
      %v4536 = vunpack.c.l.b16 %v4443
      %v4537 = vunpack.c.l.b16 %v4447
      %v4538 = vunpack.c.l.b16 %v4450
      %v4539 = vunpack.c.l.b16 %v4454
      %v4540 = vunpack.c.l.b16 %v4457
      %v4541 = vunpack.c.l.b16 %v4461
      %v4542 = vunpack.c.l.b16 %v4464
      %v4543 = vunpack.c.l.b16 %v4468
      %v4544 = vunpack.c.l.b16 %v4471
      %v4545 = vunpack.c.l.b16 %v4475
      %v4546 = vunpack.c.l.b16 %v4478
      %v4547 = vunpack.c.l.b16 %v4482
      %v4548 = vunpack.c.l.b16 %v4485
      %v4549 = vunpack.c.l.b16 %v4489
      %v4550 = vunpack.c.l.b16 %v4492
      %v4551 = vunpack.c.l.b16 %v4496
      %v4552 = vunpack.c.l.b16 %v4499
      %v4553 = vunpack.c.l.b16 %v4503
      %v4554 = vunpack.c.l.b16 %v4506
      %v4555 = vunpack.c.l.b16 %v4510
      %v4556 = vunpack.c.l.b16 %v4513
      %v4557 = vunpack.c.l.b16 %v4517
      %v4558 = vunpack.c.l.b16 %v4520
      %v4559 = vunpack.c.l.b16 %v4524
      %v4560 = vunpack.c.l.b16 %v4527
      %v4561 = vpack.c.b16 %v4530, %v4529
      %v4562 = vpack.c.b16 %v4532, %v4531
      %v4563 = vpack.c.b16 %v4534, %v4533
      %v4564 = vpack.c.b16 %v4536, %v4535
      %v4565 = vpack.c.b16 %v4538, %v4537
      %v4566 = vpack.c.b16 %v4540, %v4539
      %v4567 = vpack.c.b16 %v4542, %v4541
      %v4568 = vpack.c.b16 %v4544, %v4543
      %v4569 = vpack.c.b16 %v4546, %v4545
      %v4570 = vpack.c.b16 %v4548, %v4547
      %v4571 = vpack.c.b16 %v4550, %v4549
      %v4572 = vpack.c.b16 %v4552, %v4551
      %v4573 = vpack.c.b16 %v4554, %v4553
      %v4574 = vpack.c.b16 %v4556, %v4555
      %v4575 = vpack.c.b16 %v4558, %v4557
      %v4576 = vpack.c.b16 %v4560, %v4559
      %v4578 = vsel %vm743, %v4561, 0
      %v4581 = vsel %vm743, %v4562, 0
      %v4584 = vsel %vm743, %v4563, 0
      %v4587 = vsel %vm743, %v4564, 0
      %v4590 = vsel %vm743, %v4565, 0
      %v4593 = vsel %vm743, %v4566, 0
      %v4596 = vsel %vm743, %v4567, 0
      %v4599 = vsel %vm743, %v4568, 0
      %v4602 = vsel %vm743, %v4569, 0
      %v4605 = vsel %vm743, %v4570, 0
      %v4608 = vsel %vm743, %v4571, 0
      %v4611 = vsel %vm743, %v4572, 0
      %v4614 = vsel %vm743, %v4573, 0
      %v4617 = vsel %vm743, %v4574, 0
      %v4620 = vsel %vm743, %v4575, 0
      %v4623 = vsel %vm743, %v4576, 0
      %v4626 = vsel %vm792, %v4528, 0
      %4628 = vmatprep.subr.bf16.mxu0 0
      %4629 = vmatpush1.bf16.msra.mxu0 %v4626
      %4630 = vmatprep.subr.bf16.mxu0 0
      %4631 = vmatpush1.bf16.msra.mxu0 0
      %4632 = vmatprep.subr.bf16.mxu0 0
      %4633 = vmatpush1.bf16.msra.mxu0 0
      %4634 = vmatprep.subr.bf16.mxu0 0
      %4635 = vmatpush1.bf16.msra.mxu0 0
      %4636 = vmatprep.subr.bf16.mxu0 0
      %4637 = vmatpush1.bf16.msra.mxu0 0
      %4638 = vmatprep.subr.bf16.mxu0 0
      %4639 = vmatpush1.bf16.msra.mxu0 0
      %4640 = vmatprep.subr.bf16.mxu0 0
      %4641 = vmatpush1.bf16.msra.mxu0 0
      %4642 = vmatprep.subr.bf16.mxu0 0
      %4643 = vmatpush1.bf16.msra.mxu0 0
      %4644 = vmatprep.subr.bf16.mxu0 0
      %4645 = vmatpush1.bf16.msra.mxu0 0
      %4646 = vmatprep.subr.bf16.mxu0 0
      %4647 = vmatpush1.bf16.msra.mxu0 0
      %4648 = vmatprep.subr.bf16.mxu0 0
      %4649 = vmatpush1.bf16.msra.mxu0 0
      %4650 = vmatprep.subr.bf16.mxu0 0
      %4651 = vmatpush1.bf16.msra.mxu0 0
      %4652 = vmatprep.subr.bf16.mxu0 0
      %4653 = vmatpush1.bf16.msra.mxu0 0
      %4654 = vmatprep.subr.bf16.mxu0 0
      %4655 = vmatpush1.bf16.msra.mxu0 0
      %4656 = vmatprep.subr.bf16.mxu0 0
      %4657 = vmatpush1.bf16.msra.mxu0 0
      %4658 = vmatprep.subr.bf16.mxu0 0
      %4659 = vmatpush1.bf16.msra.mxu0 0
      %4660 = vmatprep.mubr.bf16.mxu0 0
      %4661 = vmatmul.mubr.bf16.gmra.mrb[0].mxu0 %v4578
      %v4662 = vpop.f32.mrb[0].mxu0
      %v4663 = vadd.f32 0.0, %v4662
      %v4664 = vpop.f32.mrb[0].mxu0
      %v4665 = vpop.f32.mrb[0].mxu0
      %v4666 = vadd.f32 0.0, %v4665
      %v4667 = vpop.f32.mrb[0].mxu0
      %4668 = vmatprep.mubr.bf16.mxu0 0
      %4669 = vmatmul.mubr.bf16.gmra.mrb[0].mxu0 %v4581
      %v4670 = vpop.f32.mrb[0].mxu0
      %v4671 = vadd.f32 0.0, %v4670
      %v4672 = vpop.f32.mrb[0].mxu0
      %v4673 = vpop.f32.mrb[0].mxu0
      %v4674 = vadd.f32 0.0, %v4673
      %v4675 = vpop.f32.mrb[0].mxu0
      %4676 = vmatprep.mubr.bf16.mxu0 0
      %4677 = vmatmul.mubr.bf16.gmra.mrb[0].mxu0 %v4584
      %v4678 = vpop.f32.mrb[0].mxu0
      %v4679 = vadd.f32 0.0, %v4678
      %v4680 = vpop.f32.mrb[0].mxu0
      %v4681 = vpop.f32.mrb[0].mxu0
      %v4682 = vadd.f32 0.0, %v4681
      %v4683 = vpop.f32.mrb[0].mxu0
      %4684 = vmatprep.mubr.bf16.mxu0 0
      %4685 = vmatmul.mubr.bf16.gmra.mrb[0].mxu0 %v4587
      %v4686 = vpop.f32.mrb[0].mxu0
      %v4687 = vadd.f32 0.0, %v4686
      %v4688 = vpop.f32.mrb[0].mxu0
      %v4689 = vpop.f32.mrb[0].mxu0
      %v4690 = vadd.f32 0.0, %v4689
      %v4691 = vpop.f32.mrb[0].mxu0
      %4692 = vmatprep.mubr.bf16.mxu0 0
      %4693 = vmatmul.mubr.bf16.gmra.mrb[0].mxu0 %v4590
      %v4694 = vpop.f32.mrb[0].mxu0
      %v4695 = vadd.f32 0.0, %v4694
      %v4696 = vpop.f32.mrb[0].mxu0
      %v4697 = vpop.f32.mrb[0].mxu0
      %v4698 = vadd.f32 0.0, %v4697
      %v4699 = vpop.f32.mrb[0].mxu0
      %4700 = vmatprep.mubr.bf16.mxu0 0
      %4701 = vmatmul.mubr.bf16.gmra.mrb[0].mxu0 %v4593
      %v4702 = vpop.f32.mrb[0].mxu0
      %v4703 = vadd.f32 0.0, %v4702
      %v4704 = vpop.f32.mrb[0].mxu0
      %v4705 = vpop.f32.mrb[0].mxu0
      %v4706 = vadd.f32 0.0, %v4705
      %v4707 = vpop.f32.mrb[0].mxu0
      %4708 = vmatprep.mubr.bf16.mxu0 0
      %4709 = vmatmul.mubr.bf16.gmra.mrb[0].mxu0 %v4596
      %v4710 = vpop.f32.mrb[0].mxu0
      %v4711 = vadd.f32 0.0, %v4710
      %v4712 = vpop.f32.mrb[0].mxu0
      %v4713 = vpop.f32.mrb[0].mxu0
      %v4714 = vadd.f32 0.0, %v4713
      %v4715 = vpop.f32.mrb[0].mxu0
      %4716 = vmatprep.mubr.bf16.mxu0 0
      %4717 = vmatmul.mubr.bf16.gmra.mrb[0].mxu0 %v4599
      %v4718 = vpop.f32.mrb[0].mxu0
      %v4719 = vadd.f32 0.0, %v4718
      %v4720 = vpop.f32.mrb[0].mxu0
      %v4721 = vpop.f32.mrb[0].mxu0
      %v4722 = vadd.f32 0.0, %v4721
      %v4723 = vpop.f32.mrb[0].mxu0
      %4724 = vmatprep.mubr.bf16.mxu0 0
      %4725 = vmatmul.mubr.bf16.gmra.mrb[0].mxu0 %v4602
      %v4726 = vpop.f32.mrb[0].mxu0
      %v4727 = vadd.f32 0.0, %v4726
      %v4728 = vpop.f32.mrb[0].mxu0
      %v4729 = vpop.f32.mrb[0].mxu0
      %v4730 = vadd.f32 0.0, %v4729
      %v4731 = vpop.f32.mrb[0].mxu0
      %4732 = vmatprep.mubr.bf16.mxu0 0
      %4733 = vmatmul.mubr.bf16.gmra.mrb[0].mxu0 %v4605
      %v4734 = vpop.f32.mrb[0].mxu0
      %v4735 = vadd.f32 0.0, %v4734
      %v4736 = vpop.f32.mrb[0].mxu0
      %v4737 = vpop.f32.mrb[0].mxu0
      %v4738 = vadd.f32 0.0, %v4737
      %v4739 = vpop.f32.mrb[0].mxu0
      %4740 = vmatprep.mubr.bf16.mxu0 0
      %4741 = vmatmul.mubr.bf16.gmra.mrb[0].mxu0 %v4608
      %v4742 = vpop.f32.mrb[0].mxu0
      %v4743 = vadd.f32 0.0, %v4742
      %v4744 = vpop.f32.mrb[0].mxu0
      %v4745 = vpop.f32.mrb[0].mxu0
      %v4746 = vadd.f32 0.0, %v4745
      %v4747 = vpop.f32.mrb[0].mxu0
      %4748 = vmatprep.mubr.bf16.mxu0 0
      %4749 = vmatmul.mubr.bf16.gmra.mrb[0].mxu0 %v4611
      %v4750 = vpop.f32.mrb[0].mxu0
      %v4751 = vadd.f32 0.0, %v4750
      %v4752 = vpop.f32.mrb[0].mxu0
      %v4753 = vpop.f32.mrb[0].mxu0
      %v4754 = vadd.f32 0.0, %v4753
      %v4755 = vpop.f32.mrb[0].mxu0
      %4756 = vmatprep.mubr.bf16.mxu0 0
      %4757 = vmatmul.mubr.bf16.gmra.mrb[0].mxu0 %v4614
      %v4758 = vpop.f32.mrb[0].mxu0
      %v4759 = vadd.f32 0.0, %v4758
      %v4760 = vpop.f32.mrb[0].mxu0
      %v4761 = vpop.f32.mrb[0].mxu0
      %v4762 = vadd.f32 0.0, %v4761
      %v4763 = vpop.f32.mrb[0].mxu0
      %4764 = vmatprep.mubr.bf16.mxu0 0
      %4765 = vmatmul.mubr.bf16.gmra.mrb[0].mxu0 %v4617
      %v4766 = vpop.f32.mrb[0].mxu0
      %v4767 = vadd.f32 0.0, %v4766
      %v4768 = vpop.f32.mrb[0].mxu0
      %v4769 = vpop.f32.mrb[0].mxu0
      %v4770 = vadd.f32 0.0, %v4769
      %v4771 = vpop.f32.mrb[0].mxu0
      %4772 = vmatprep.mubr.bf16.mxu0 0
      %4773 = vmatmul.mubr.bf16.gmra.mrb[0].mxu0 %v4620
      %v4774 = vpop.f32.mrb[0].mxu0
      %v4775 = vadd.f32 0.0, %v4774
      %v4776 = vpop.f32.mrb[0].mxu0
      %v4777 = vpop.f32.mrb[0].mxu0
      %v4778 = vadd.f32 0.0, %v4777
      %v4779 = vpop.f32.mrb[0].mxu0
      %4780 = vmatprep.mubr.bf16.mxu0 0
      %4781 = vmatmul.mubr.bf16.gmra.mrb[0].mxu0 %v4623
      %v4782 = vpop.f32.mrb[0].mxu0
      %v4783 = vadd.f32 0.0, %v4782
      %v4784 = vpop.f32.mrb[0].mxu0
      %v4785 = vpop.f32.mrb[0].mxu0
      %v4786 = vadd.f32 0.0, %v4785
      %v4787 = vpop.f32.mrb[0].mxu0
      %4788 = vdwg.mxu0
      %v4789 = vadd.f32 %v4320, %v4663
      %v4790 = vadd.f32 %v4321, %v4666
      %v4791 = vadd.f32 %v4322, %v4671
      %v4792 = vadd.f32 %v4323, %v4674
      %v4793 = vadd.f32 %v4324, %v4679
      %v4794 = vadd.f32 %v4325, %v4682
      %v4795 = vadd.f32 %v4326, %v4687
      %v4796 = vadd.f32 %v4327, %v4690
      %v4797 = vadd.f32 %v4328, %v4695
      %v4798 = vadd.f32 %v4329, %v4698
      %v4799 = vadd.f32 %v4330, %v4703
      %v4800 = vadd.f32 %v4331, %v4706
      %v4801 = vadd.f32 %v4332, %v4711
      %v4802 = vadd.f32 %v4333, %v4714
      %v4803 = vadd.f32 %v4334, %v4719
      %v4804 = vadd.f32 %v4335, %v4722
      %v4805 = vadd.f32 %v4336, %v4727
      %v4806 = vadd.f32 %v4337, %v4730
      %v4807 = vadd.f32 %v4338, %v4735
      %v4808 = vadd.f32 %v4339, %v4738
      %v4809 = vadd.f32 %v4340, %v4743
      %v4810 = vadd.f32 %v4341, %v4746
      %v4811 = vadd.f32 %v4342, %v4751
      %v4812 = vadd.f32 %v4343, %v4754
      %v4813 = vadd.f32 %v4344, %v4759
      %v4814 = vadd.f32 %v4345, %v4762
      %v4815 = vadd.f32 %v4346, %v4767
      %v4816 = vadd.f32 %v4347, %v4770
      %v4817 = vadd.f32 %v4348, %v4775
      %v4818 = vadd.f32 %v4349, %v4778
      %v4819 = vadd.f32 %v4350, %v4783
      %v4820 = vadd.f32 %v4351, %v4786
      %4821 = vst [vmem:[%s245] sm:$0xff] %v4789
      %4822 = vst [vmem:[%s245 + $0x8] sm:$0xff] %v4790
      %4823 = vst [vmem:[%s245 + $0x10] sm:$0xff] %v4791
      %4824 = vst [vmem:[%s245 + $0x18] sm:$0xff] %v4792
      %4825 = vst [vmem:[%s245 + $0x20] sm:$0xff] %v4793
      %4826 = vst [vmem:[%s245 + $0x28] sm:$0xff] %v4794
      %4827 = vst [vmem:[%s245 + $0x30] sm:$0xff] %v4795
      %4828 = vst [vmem:[%s245 + $0x38] sm:$0xff] %v4796
      %4829 = vst [vmem:[%s245 + $0x40] sm:$0xff] %v4797
      %4830 = vst [vmem:[%s245 + $0x48] sm:$0xff] %v4798
      %4831 = vst [vmem:[%s245 + $0x50] sm:$0xff] %v4799
      %4832 = vst [vmem:[%s245 + $0x58] sm:$0xff] %v4800
      %4833 = vst [vmem:[%s245 + $0x60] sm:$0xff] %v4801
      %4834 = vst [vmem:[%s245 + $0x68] sm:$0xff] %v4802
      %4835 = vst [vmem:[%s245 + $0x70] sm:$0xff] %v4803
      %4836 = vst [vmem:[%s245 + $0x78] sm:$0xff] %v4804
      %4837 = vst [vmem:[%s245 + $0x80] sm:$0xff] %v4805
      %4838 = vst [vmem:[%s245 + $0x88] sm:$0xff] %v4806
      %4839 = vst [vmem:[%s245 + $0x90] sm:$0xff] %v4807
      %4840 = vst [vmem:[%s245 + $0x98] sm:$0xff] %v4808
      %4841 = vst [vmem:[%s245 + $0xa0] sm:$0xff] %v4809
      %4842 = vst [vmem:[%s245 + $0xa8] sm:$0xff] %v4810
      %4843 = vst [vmem:[%s245 + $0xb0] sm:$0xff] %v4811
      %4844 = vst [vmem:[%s245 + $0xb8] sm:$0xff] %v4812
      %4845 = vst [vmem:[%s245 + $0xc0] sm:$0xff] %v4813
      %4846 = vst [vmem:[%s245 + $0xc8] sm:$0xff] %v4814
      %4847 = vst [vmem:[%s245 + $0xd0] sm:$0xff] %v4815
      %4848 = vst [vmem:[%s245 + $0xd8] sm:$0xff] %v4816
      %4849 = vst [vmem:[%s245 + $0xe0] sm:$0xff] %v4817
      %4850 = vst [vmem:[%s245 + $0xe8] sm:$0xff] %v4818
      %4851 = vst [vmem:[%s245 + $0xf0] sm:$0xff] %v4819
      %4852 = vst [vmem:[%s245 + $0xf8] sm:$0xff] %v4820
      %v4853 = vadd.f32 %v4789, %v4790
      %v4854 = vadd.f32 %v4853, %v4791
      %v4855 = vadd.f32 %v4854, %v4792
      %v4856 = vadd.f32 %v4855, %v4793
      %v4857 = vadd.f32 %v4856, %v4794
      %v4858 = vadd.f32 %v4857, %v4795
      %v4859 = vadd.f32 %v4858, %v4796
      %v4860 = vadd.f32 %v4859, %v4797
      %v4861 = vadd.f32 %v4860, %v4798
      %v4862 = vadd.f32 %v4861, %v4799
      %v4863 = vadd.f32 %v4862, %v4800
      %v4864 = vadd.f32 %v4863, %v4801
      %v4865 = vadd.f32 %v4864, %v4802
      %v4866 = vadd.f32 %v4865, %v4803
      %v4867 = vadd.f32 %v4866, %v4804
      %v4868 = vadd.f32 %v4867, %v4805
      %v4869 = vadd.f32 %v4868, %v4806
      %v4870 = vadd.f32 %v4869, %v4807
      %v4871 = vadd.f32 %v4870, %v4808
      %v4872 = vadd.f32 %v4871, %v4809
      %v4873 = vadd.f32 %v4872, %v4810
      %v4874 = vadd.f32 %v4873, %v4811
      %v4875 = vadd.f32 %v4874, %v4812
      %v4876 = vadd.f32 %v4875, %v4813
      %v4877 = vadd.f32 %v4876, %v4814
      %v4878 = vadd.f32 %v4877, %v4815
      %v4879 = vadd.f32 %v4878, %v4816
      %v4880 = vadd.f32 %v4879, %v4817
      %v4881 = vadd.f32 %v4880, %v4818
      %v4882 = vadd.f32 %v4881, %v4819
      %v4883 = vadd.f32 %v4882, %v4820
      %v4884 = vrot.slane %v4883, 4
      %v4885 = vadd.f32 %v4883, %v4884
      %v4886 = vrot.slane %v4885, 2
      %v4887 = vadd.f32 %v4885, %v4886
      %v4888 = vrot.slane %v4887, 1
      %v4889 = vadd.f32 %v4887, %v4888
      %v4890 = vmul.f32 %v4789, %v4789
      %v4891 = vmul.f32 %v4790, %v4790
      %v4892 = vmul.f32 %v4791, %v4791
      %v4893 = vmul.f32 %v4792, %v4792
      %v4894 = vmul.f32 %v4793, %v4793
      %v4895 = vmul.f32 %v4794, %v4794
      %v4896 = vmul.f32 %v4795, %v4795
      %v4897 = vmul.f32 %v4796, %v4796
      %v4898 = vmul.f32 %v4797, %v4797
      %v4899 = vmul.f32 %v4798, %v4798
      %v4900 = vmul.f32 %v4799, %v4799
      %v4901 = vmul.f32 %v4800, %v4800
      %v4902 = vmul.f32 %v4801, %v4801
      %v4903 = vmul.f32 %v4802, %v4802
      %v4904 = vmul.f32 %v4803, %v4803
      %v4905 = vmul.f32 %v4804, %v4804
      %v4906 = vmul.f32 %v4805, %v4805
      %v4907 = vmul.f32 %v4806, %v4806
      %v4908 = vmul.f32 %v4807, %v4807
      %v4909 = vmul.f32 %v4808, %v4808
      %v4910 = vmul.f32 %v4809, %v4809
      %v4911 = vmul.f32 %v4810, %v4810
      %v4912 = vmul.f32 %v4811, %v4811
      %v4913 = vmul.f32 %v4812, %v4812
      %v4914 = vmul.f32 %v4813, %v4813
      %v4915 = vmul.f32 %v4814, %v4814
      %v4916 = vmul.f32 %v4815, %v4815
      %v4917 = vmul.f32 %v4816, %v4816
      %v4918 = vmul.f32 %v4817, %v4817
      %v4919 = vmul.f32 %v4818, %v4818
      %v4920 = vmul.f32 %v4819, %v4819
      %v4921 = vmul.f32 %v4820, %v4820
      %v4922 = vadd.f32 %v4890, %v4891
      %v4923 = vadd.f32 %v4922, %v4892
      %v4924 = vadd.f32 %v4923, %v4893
      %v4925 = vadd.f32 %v4924, %v4894
      %v4926 = vadd.f32 %v4925, %v4895
      %v4927 = vadd.f32 %v4926, %v4896
      %v4928 = vadd.f32 %v4927, %v4897
      %v4929 = vadd.f32 %v4928, %v4898
      %v4930 = vadd.f32 %v4929, %v4899
      %v4931 = vadd.f32 %v4930, %v4900
      %v4932 = vadd.f32 %v4931, %v4901
      %v4933 = vadd.f32 %v4932, %v4902
      %v4934 = vadd.f32 %v4933, %v4903
      %v4935 = vadd.f32 %v4934, %v4904
      %v4936 = vadd.f32 %v4935, %v4905
      %v4937 = vadd.f32 %v4936, %v4906
      %v4938 = vadd.f32 %v4937, %v4907
      %v4939 = vadd.f32 %v4938, %v4908
      %v4940 = vadd.f32 %v4939, %v4909
      %v4941 = vadd.f32 %v4940, %v4910
      %v4942 = vadd.f32 %v4941, %v4911
      %v4943 = vadd.f32 %v4942, %v4912
      %v4944 = vadd.f32 %v4943, %v4913
      %v4945 = vadd.f32 %v4944, %v4914
      %v4946 = vadd.f32 %v4945, %v4915
      %v4947 = vadd.f32 %v4946, %v4916
      %v4948 = vadd.f32 %v4947, %v4917
      %v4949 = vadd.f32 %v4948, %v4918
      %v4950 = vadd.f32 %v4949, %v4919
      %v4951 = vadd.f32 %v4950, %v4920
      %v4952 = vadd.f32 %v4951, %v4921
      %v4953 = vrot.slane %v4952, 4
      %v4954 = vadd.f32 %v4952, %v4953
      %v4955 = vrot.slane %v4954, 2
      %v4956 = vadd.f32 %v4954, %v4955
      %v4957 = vrot.slane %v4956, 1
      %v4958 = vadd.f32 %v4956, %v4957
      %p4959 = scmp.eq.s32.totalorder %s21, 0
      // Predicated region
      $region29: #{conv_block_forward.2} parent=27 // pred_check
        %p4960 = pneg %p4959
      $region30: #{conv_block_forward.2} parent=27 // pred_check_branch
        %4962 = sbr.rel (%p4960) target = $region32
      $region31: #{conv_block_forward.2} parent=27 // pred_region
        %4963 = vst [vmem:[%s249] sm:$0x1] %v4889
        %4964 = vst [vmem:[%s252] sm:$0x1] %v4958
      $region32: #{conv_block_forward.2} parent=27 // pred_fallthru
        _
      %p4965 = scmp.gt.s32.totalorder %s21, 0
      // Predicated region
      $region33: #{conv_block_forward.2} parent=27 // pred_check
        %p4966 = pneg %p4965
      $region34: #{conv_block_forward.2} parent=27 // pred_check_branch
        %4968 = sbr.rel (%p4966) target = $region36
      $region35: #{conv_block_forward.2} parent=27 // pred_region
        %v4969 = vld [vmem:[%s249] sm:$0x1]
        %v4970 = vadd.f32 %v4969, %v4889
        %4971 = vst [vmem:[%s249] sm:$0x1] %v4970
        %v4972 = vld [vmem:[%s252] sm:$0x1]
        %v4973 = vadd.f32 %v4972, %v4958
        %4974 = vst [vmem:[%s252] sm:$0x1] %v4973
      $region36: #{conv_block_forward.2} parent=27 // pred_fallthru
        _
      %s4975 = smul.u32 32, %s21
      %p4976 = scmp.lt.s32.totalorder %s4975, 63
      %s4977 = scalar_select %p4976, %s4975, 63
      %p4978 = scmp.lt.s32.totalorder %s20, 0
      %s4979 = scalar_select %p4978, %s20, 0
      %s4980 = sadd.s32 %s4979, %s4977
      %s4981 = smul.addr %s4980, 8
      %s4982 = scalar_lea.vmem %s2, %s4981
      %p4983 = scmp.lt.s32.totalorder %s20, 0
      %s4984 = scalar_select %p4983, %s20, 0
      %s4985 = scalar_lea.vmem %s3, %s4984
      %p4986 = scmp.lt.s32.totalorder %s20, 0
      %s4987 = scalar_select %p4986, %s20, 0
      %s4988 = scalar_lea.vmem %s4, %s4987
      // Predicated region
      $region37: #{conv_block_forward.2} parent=27 // pred_check
        %p4989 = pneg %p100
      $region38: #{conv_block_forward.2} parent=27 // pred_check_branch
        %4991 = sbr.rel (%p4989) target = $region40
      $region39: #{conv_block_forward.2} parent=27 // pred_region
        %s4992 = smul.u32 32, %s21
      $region40: #{conv_block_forward.2} parent=27 // pred_fallthru
        _
      // Predicated region
      $region41: #{conv_block_forward.2} parent=27 // pred_check
        %p4993 = pneg %p126
      $region42: #{conv_block_forward.2} parent=27 // pred_check_branch
        %4995 = sbr.rel (%p4993) target = $region44
      $region43: #{conv_block_forward.2} parent=27 // pred_region
        _
      $region44: #{conv_block_forward.2} parent=27 // pred_fallthru
        _
      // Predicated region
      $region45: #{conv_block_forward.2} parent=27 // pred_check
        %p4996 = pneg %p152
      $region46: #{conv_block_forward.2} parent=27 // pred_check_branch
        %4998 = sbr.rel (%p4996) target = $region48
      $region47: #{conv_block_forward.2} parent=27 // pred_region
        _
      $region48: #{conv_block_forward.2} parent=27 // pred_fallthru
        _
      // Predicated region
      $region49: #{conv_block_forward.2} parent=27 // pred_check
        %p4999 = pneg %p126
      $region50: #{conv_block_forward.2} parent=27 // pred_check_branch
        %5001 = sbr.rel (%p4999) target = $region52
      $region51: #{conv_block_forward.2} parent=27 // pred_region
        %p5002 = scmp.lt.s32.totalorder %s20, 0
        %s5003 = scalar_select %p5002, %s20, 0
        %s5004 = scalar_lea.vmem %s3, %s5003
      $region52: #{conv_block_forward.2} parent=27 // pred_fallthru
        _
      // Predicated region
      $region53: #{conv_block_forward.2} parent=27 // pred_check
        %p5005 = pneg %p152
      $region54: #{conv_block_forward.2} parent=27 // pred_check_branch
        %5007 = sbr.rel (%p5005) target = $region56
      $region55: #{conv_block_forward.2} parent=27 // pred_region
        %p5008 = scmp.lt.s32.totalorder %s20, 0
        %s5009 = scalar_select %p5008, %s20, 0
        %s5010 = scalar_lea.vmem %s4, %s5009
      $region56: #{conv_block_forward.2} parent=27 // pred_fallthru
        _
    $region28: #{conv_block_forward.2} parent=5 // pred_fallthru
      _
    %p5011 = scmp.le.s32.totalorder 2, %s11
    // Predicated region
    $region57: #{conv_block_forward.2} parent=5 // pred_check
      %p5012 = pneg %p5011
    $region58: #{conv_block_forward.2} parent=5 // pred_check_branch
      %5014 = sbr.rel (%p5012) target = $region60
    $region59: #{conv_block_forward.2} parent=5 // pred_region
      %s5015 = ssub.s32 %s11, 2
      // Predicated region
      $region61: #{conv_block_forward.2} parent=59 // pred_check
        %p5016 = pneg %p106
      $region62: #{conv_block_forward.2} parent=59 // pred_check_branch
        %5018 = sbr.rel (%p5016) target = $region64
      $region63: #{conv_block_forward.2} parent=59 // pred_region
        %s5019 = smul.u32 32, %s23
        %p5020 = scmp.lt.s32.totalorder %s5019, 63
        %s5021 = scalar_select %p5020, %s5019, 63
        %p5022 = scmp.lt.s32.totalorder %s22, 0
        %s5023 = scalar_select %p5022, %s22, 0
        %s5024 = sadd.s32 %s5023, %s5021
        %s5025 = smul.addr %s5024, 8
        %s5026 = scalar_lea.vmem %s2, %s5025
      $region64: #{conv_block_forward.2} parent=59 // pred_fallthru
        _
    $region60: #{conv_block_forward.2} parent=5 // pred_fallthru
      _
  $region6: #{conv_block_forward.2} parent=0 // loop_footer
    %s15 = sadd.s32 1, %s11
  $region7: #{conv_block_forward.2} parent=0 // loop_footer_branch
    %10 = sbr.rel target = $region3
  $region8: #{conv_block_forward.2} parent=0 // loop_exit
    _

</llo_original>
